<compile_context>
chip_gen: v5e
topology: v5e:2x2
jax: 0.10.0
libtpu: 0.0.40
codegen_flags: <defaults>
</compile_context>

<pallas_src>
import functools
import math

import jax
import jax.numpy as jnp
from jax.experimental import pallas as pl
from jax.experimental.pallas import tpu as pltpu


MATMUL_DTYPE = jnp.bfloat16          # MXU-native on v5e/v6e/v7x (f32 accumulate)
VMEM_LIMIT_BYTES = 48 * 1024 * 1024  # raise scoped VMEM (safe on v5e/v6e/v7x)


# ----------------------------- in-kernel helpers -----------------------------

def _layer_norm(x, gamma, beta, eps=1e-12):
    mean = jnp.mean(x, axis=-1, keepdims=True)
    var = jnp.mean((x - mean) ** 2, axis=-1, keepdims=True)
    return (x - mean) * jax.lax.rsqrt(var + eps) * gamma + beta


def _gelu_exact(x):
    # PyTorch default gelu = exact erf-based gelu.
    return 0.5 * x * (1.0 + jax.lax.erf(x * (1.0 / math.sqrt(2.0))))


def _softmax_last(x):
    m = jnp.max(x, axis=-1, keepdims=True)
    e = jnp.exp(x - m)
    # EUP approximate reciprocal: frees VALU slots in the softmax epilogue.
    return e * pl.reciprocal(jnp.sum(e, axis=-1, keepdims=True), approx=True)


# ------------------------------- BertLayer kernel -----------------------------

def bert_layer_kernel(h_ref, mask_ref, *rest,
                      num_heads, head_size, ffn_chunk, write_slots):
    if write_slots:
        c_ref, n_ref, st_ref = rest[0], rest[1], rest[2]
        rest = rest[3:]
    else:
        c_ref = n_ref = st_ref = None
    (wq_ref, bq_ref, wk_ref, bk_ref, wv_ref, bv_ref,
     wao_ref, bao_ref, g1_ref, b1_ref,
     wi_ref, bi_ref, wo_ref, bo_ref, g2_ref, b2_ref, o_ref) = rest

    TA, S, D = h_ref.shape
    rows = TA * S
    cdt = wq_ref.dtype                     # compute dtype for matmuls (bf16)

    h3 = h_ref[...].astype(jnp.float32)                          # (TA, S, D)

    if write_slots:
        # Fused slot writes: token 0 <- center, 1 <- neighbor, 2 <- station.
        # Pure VPU selects on a sequence-index iota; avoids host-level copies
        # of the full hidden tensor.
        seq_idx = jax.lax.broadcasted_iota(jnp.int32, (TA, S, D), 1)
        c = c_ref[...].astype(jnp.float32)                       # (TA, 1, D)
        n = n_ref[...].astype(jnp.float32)
        st = st_ref[...].astype(jnp.float32)
        h3 = jnp.where(seq_idx == 0, c, h3)
        h3 = jnp.where(seq_idx == 1, n, h3)
        h3 = jnp.where(seq_idx == 2, st, h3)

    # Flatten the node block: all dense layers operate on a (TA*S, D) slab.
    h0 = h3.reshape(rows, D)
    hc = h0.astype(cdt)

    # --- BertSelfAttention: Q/K/V projections (bf16 in, f32 accumulate) ---
    q = jnp.dot(hc, wq_ref[...], preferred_element_type=jnp.float32) + bq_ref[...]
    k = jnp.dot(hc, wk_ref[...], preferred_element_type=jnp.float32) + bk_ref[...]
    v = jnp.dot(hc, wv_ref[...], preferred_element_type=jnp.float32) + bv_ref[...]

    scale = 1.0 / math.sqrt(head_size)
    q_c = (q * scale).astype(cdt)
    k_c = k.astype(cdt)
    v_c = v.astype(cdt)

    # Hoist the additive-mask broadcast out of the head loop (no CSE in JAX).
    mask_full = jnp.broadcast_to(mask_ref[...].astype(jnp.float32), (TA, S, S))

    # Per-head scores/softmax, node-batched (3-D einsum = single-batch-dim
    # dot_general, the documented Mosaic-safe pattern).  The attention-output
    # projection distributes over head blocks, so we accumulate
    #   attn_out = bias + sum_h ctx_h @ wao[h]
    # and never materialize a lane concatenate.
    attn_out = jnp.zeros((rows, D), jnp.float32) + bao_ref[...]
    for h_idx in range(num_heads):
        sl = slice(h_idx * head_size, (h_idx + 1) * head_size)
        qh = q_c[:, sl].reshape(TA, S, head_size)
        kh = k_c[:, sl].reshape(TA, S, head_size)
        vh = v_c[:, sl].reshape(TA, S, head_size)
        scores = jnp.einsum('aqd,akd->aqk', qh, kh,
                            preferred_element_type=jnp.float32)
        scores = scores + mask_full
        probs = _softmax_last(scores)
        ctx_h = jnp.einsum('aqk,akd->aqd', probs.astype(cdt), vh,
                           preferred_element_type=jnp.float32)       # (TA,S,hs)
        attn_out = attn_out + jnp.dot(
            ctx_h.reshape(rows, head_size).astype(cdt), wao_ref[h_idx],
            preferred_element_type=jnp.float32)

    # --- BertSelfOutput: residual LayerNorm (f32 statistics) ---
    h1 = _layer_norm(attn_out + h0, g1_ref[...], b1_ref[...])
    h1c = h1.astype(cdt)

    # --- BertIntermediate + BertOutput, chunked over the intermediate dim I so
    #     the live (rows, I) intermediate stays bounded (matters on v7x). ---
    I = wi_ref.shape[1]
    out = jnp.zeros((rows, D), jnp.float32) + bo_ref[...]
    for c0 in range(0, I, ffn_chunk):
        c1 = min(c0 + ffn_chunk, I)
        inter = _gelu_exact(
            jnp.dot(h1c, wi_ref[:, c0:c1], preferred_element_type=jnp.float32)
            + bi_ref[:, c0:c1])
        out = out + jnp.dot(inter.astype(cdt), wo_ref[c0:c1, :],
                            preferred_element_type=jnp.float32)

    h2 = _layer_norm(out + h1, g2_ref[...], b2_ref[...])
    # TODO(synk): for production sizes pad D to a multiple of 128 so this store
    # is an unmasked lane-dense vst instead of a masked partial store.
    o_ref[...] = h2.reshape(TA, S, D).astype(o_ref.dtype)


def _pick_block(total, inner, max_rows=1024):
    """Largest divisor `t` of `total` with t*inner <= max_rows (nodes per step)."""
    best = 1
    for t in range(1, total + 1):
        if total % t == 0 and t * inner <= max_rows:
            best = t
    return best


def bert_layer_call(hidden, mask3d, p, num_heads, slots=None):
    A, S, D = hidden.shape
    head_size = D // num_heads
    ta = _pick_block(A, S)                       # nodes per grid step
    I = p["wi"].shape[1]
    ffn_chunk = I if I <= 1024 else 1024

    cdt = MATMUL_DTYPE
    # wao is pre-reshaped to (H, head_size, D) so the kernel indexes the head
    # dim directly (no sublane slicing of packed bf16).
    weights = [p["wq"].astype(cdt), p["bq"], p["wk"].astype(cdt), p["bk"],
               p["wv"].astype(cdt), p["bv"],
               p["wao"].reshape(num_heads, head_size, D).astype(cdt), p["bao"],
               p["g1"], p["b1"],
               p["wi"].astype(cdt), p["bi"], p["wo"].astype(cdt), p["bo"],
               p["g2"], p["b2"]]

    def full_spec(arr):
        nd = arr.ndim
        return pl.BlockSpec(arr.shape, lambda i, _nd=nd: (0,) * _nd)

    in_specs = [pl.BlockSpec((ta, S, D), lambda i: (i, 0, 0)),
                pl.BlockSpec((ta, 1, S), lambda i: (i, 0, 0))]
    args = [hidden, mask3d]
    if slots is not None:
        # Per-node slot embeddings, shaped (A, 1, D) so the last two block dims
        # equal the full array dims (respects the (8,128) constraint).
        slot_spec = pl.BlockSpec((ta, 1, D), lambda i: (i, 0, 0))
        in_specs += [slot_spec] * 3
        args += list(slots)
    in_specs += [full_spec(w) for w in weights]
    args += weights

    kernel = functools.partial(bert_layer_kernel, num_heads=num_heads,
                               head_size=head_size, ffn_chunk=ffn_chunk,
                               write_slots=(slots is not None))

    return pl.pallas_call(
        kernel,
        out_shape=jax.ShapeDtypeStruct((A, S, D), hidden.dtype),
        grid=(A // ta,),
        in_specs=in_specs,
        out_specs=pl.BlockSpec((ta, S, D), lambda i: (i, 0, 0)),
        compiler_params=pltpu.CompilerParams(
            dimension_semantics=("parallel",),        # v7x: shard over 2 TCs
            vmem_limit_bytes=VMEM_LIMIT_BYTES),
    )(*args)


# --------------------------- GraphAggregation kernel ---------------------------

def graph_attention_kernel(h_ref, mask_ref,
                           wq_ref, bq_ref, wk_ref, bk_ref, wv_ref, bv_ref,
                           o_ref, *, num_heads, head_size):
    TB, N, D = h_ref.shape
    rows = TB * N
    cdt = wq_ref.dtype

    h2d = h_ref[...].reshape(rows, D).astype(jnp.float32)
    hc = h2d.astype(cdt)

    q = jnp.dot(hc, wq_ref[...], preferred_element_type=jnp.float32) + bq_ref[...]
    k = jnp.dot(hc, wk_ref[...], preferred_element_type=jnp.float32) + bk_ref[...]
    v = jnp.dot(hc, wv_ref[...], preferred_element_type=jnp.float32) + bv_ref[...]

    scale = 1.0 / math.sqrt(head_size)
    q_c = (q * scale).astype(cdt)
    k_c = k.astype(cdt)
    v_c = v.astype(cdt)

    mask_full = jnp.broadcast_to(mask_ref[...].astype(jnp.float32), (TB, N, N))

    parts = []
    for h_idx in range(num_heads):
        sl = slice(h_idx * head_size, (h_idx + 1) * head_size)
        qh = q_c[:, sl].reshape(TB, N, head_size)
        kh = k_c[:, sl].reshape(TB, N, head_size)
        vh = v_c[:, sl].reshape(TB, N, head_size)
        scores = jnp.einsum('bqd,bkd->bqk', qh, kh,
                            preferred_element_type=jnp.float32)
        scores = scores + mask_full
        probs = _softmax_last(scores)
        parts.append(jnp.einsum('bqk,bkd->bqd', probs.astype(cdt), vh,
                                preferred_element_type=jnp.float32))
    ctx = jnp.concatenate(parts, axis=-1)          # (TB, N, D) — BERT head layout
    o_ref[...] = ctx.astype(o_ref.dtype)


def graph_attention_call(cls_emb, nmask3d, gp, num_heads):
    B, N, D = cls_emb.shape
    head_size = D // num_heads
    tb = _pick_block(B, N)

    cdt = MATMUL_DTYPE
    weights = [gp["wq"].astype(cdt), gp["bq"], gp["wk"].astype(cdt), gp["bk"],
               gp["wv"].astype(cdt), gp["bv"]]

    def full_spec(arr):
        nd = arr.ndim
        return pl.BlockSpec(arr.shape, lambda b, _nd=nd: (0,) * _nd)

    in_specs = ([pl.BlockSpec((tb, N, D), lambda b: (b, 0, 0)),
                 pl.BlockSpec((tb, 1, N), lambda b: (b, 0, 0))]
                + [full_spec(w) for w in weights])

    kernel = functools.partial(graph_attention_kernel, num_heads=num_heads,
                               head_size=head_size)

    return pl.pallas_call(
        kernel,
        out_shape=jax.ShapeDtypeStruct((B, N, D), cls_emb.dtype),
        grid=(B // tb,),
        in_specs=in_specs,
        out_specs=pl.BlockSpec((tb, N, D), lambda b: (b, 0, 0)),
        compiler_params=pltpu.CompilerParams(
            dimension_semantics=("parallel",),
            vmem_limit_bytes=VMEM_LIMIT_BYTES),
    )(cls_emb, nmask3d, *weights)


# ------------------------------ Encoder forward --------------------------------

def edgeformer_encoder_forward(hidden_states, attention_mask, center_embedding,
                               neighbor_embedding, neighbor_mask, params,
                               num_heads):
    all_nodes_num, seq_length, emb_dim = hidden_states.shape
    batch_size = neighbor_mask.shape[0]
    subgraph_node_num = neighbor_embedding.shape[1]

    # Pre-squeeze masks to (nodes, 1, seq) so kernels get them directly
    # (no in-kernel reshape of a (1,1,1,S) block).
    mask3d = attention_mask.reshape(all_nodes_num, 1, seq_length)
    mask0_3d = attention_mask.at[:, :, :, :3].set(-10000.0).reshape(
        all_nodes_num, 1, seq_length)
    nmask3d = neighbor_mask.reshape(batch_size, 1, subgraph_node_num)

    # Layer-invariant per-node slot embeddings (hoisted out of the layer loop).
    center_pn = jnp.broadcast_to(
        center_embedding[:, None, :],
        (batch_size, subgraph_node_num, emb_dim)).reshape(all_nodes_num, 1, emb_dim)
    neighbor_pn = neighbor_embedding.reshape(all_nodes_num, 1, emb_dim)

    hidden = hidden_states
    for i, lp in enumerate(params["layers"]):
        if i > 0:
            # GraphAggregation over the subgraph-node axis on the CLS slot
            # (token index 3), then write slots 0/1/2 *inside* the BertLayer
            # kernel (fused — no host-level full-hidden copies).
            cls_emb = hidden.reshape(batch_size, subgraph_node_num, seq_length,
                                     emb_dim)[:, :, 3]            # (B, N, D)
            station_emb = graph_attention_call(cls_emb, nmask3d,
                                               params["graph"], num_heads)
            station_pn = station_emb.reshape(all_nodes_num, 1, emb_dim)
            hidden = bert_layer_call(hidden, mask3d, lp, num_heads,
                                     slots=(center_pn, neighbor_pn, station_pn))
        else:
            hidden = bert_layer_call(hidden, mask0_3d, lp, num_heads)
    # TODO(synk): dropout layers are eval-mode no-ops; output_attentions /
    # output_hidden_states are False, so the output tuple is (hidden_states,).
    return (hidden,)


# ------------------------------- parameter init --------------------------------

def init_params(key, num_layers, D, I):
    def dense(k, fan_in, fan_out):
        kw, kb = jax.random.split(k)
        w = jax.random.normal(kw, (fan_in, fan_out), jnp.float32) * 0.02
        b = jax.random.normal(kb, (1, fan_out), jnp.float32) * 0.02
        return w, b

    keys = jax.random.split(key, num_layers + 1)
    layers = []
    for lk in keys[:num_layers]:
        ks = jax.random.split(lk, 6)
        wq, bq = dense(ks[0], D, D)
        wk, bk = dense(ks[1], D, D)
        wv, bv = dense(ks[2], D, D)
        wao, bao = dense(ks[3], D, D)
        wi, bi = dense(ks[4], D, I)
        wo, bo = dense(ks[5], I, D)
        layers.append(dict(wq=wq, bq=bq, wk=wk, bk=bk, wv=wv, bv=bv,
                           wao=wao, bao=bao,
                           g1=jnp.ones((1, D), jnp.float32),
                           b1=jnp.zeros((1, D), jnp.float32),
                           wi=wi, bi=bi, wo=wo, bo=bo,
                           g2=jnp.ones((1, D), jnp.float32),
                           b2=jnp.zeros((1, D), jnp.float32)))
    gk = jax.random.split(keys[-1], 3)
    gwq, gbq = dense(gk[0], D, D)
    gwk, gbk = dense(gk[1], D, D)
    gwv, gbv = dense(gk[2], D, D)
    graph = dict(wq=gwq, bq=gbq, wk=gwk, bk=gbk, wv=gwv, bv=gbv)
    return dict(layers=layers, graph=graph)


# ------------------------------------ main --------------------------------------

if __name__ == "__main__":
    key = jax.random.PRNGKey(0)
    B = 2            # batch_size (number of subgraphs)
    N = 4            # subgraph_node_num
    S = 8            # seq_length (>= 4, since token index 3 is the CLS slot)
    D = 32           # hidden_size
    H = 4            # num_attention_heads
    I = 64           # intermediate_size
    L = 2            # num_hidden_layers
    A = B * N        # all_nodes_num

    k0, k1, k2, k3 = jax.random.split(key, 4)
    hidden_states = jax.random.normal(k0, (A, S, D), jnp.float32)
    attention_mask = jnp.zeros((A, 1, 1, S), jnp.float32)
    attention_mask = attention_mask.at[:, :, :, -1].set(-10000.0)  # deterministic padding
    center_embedding = jax.random.normal(k1, (B, D), jnp.float32)
    neighbor_embedding = jax.random.normal(k2, (B, N, D), jnp.float32)
    neighbor_mask = jnp.zeros((B, 1, 1, N), jnp.float32)

    params = init_params(k3, L, D, I)

    outputs = edgeformer_encoder_forward(hidden_states, attention_mask,
                                         center_embedding, neighbor_embedding,
                                         neighbor_mask, params, num_heads=H)
    out = jax.block_until_ready(outputs[0])
    assert out.shape == (A, S, D)
    assert jnp.all(jnp.isfinite(out))
    print("KERNEL_OK")
</pallas_src>

<mosaic_0001>
module attributes {stable_mosaic.version = 11 : i64} {
  func.func @bert_layer_kernel(%arg0: i32, %arg1: memref<8x8x32xf32, #tpu.memory_space<vmem>>, %arg2: memref<8x1x8xf32, #tpu.memory_space<vmem>>, %arg3: memref<32x32xbf16, #tpu.memory_space<vmem>>, %arg4: memref<1x32xf32, #tpu.memory_space<vmem>>, %arg5: memref<32x32xbf16, #tpu.memory_space<vmem>>, %arg6: memref<1x32xf32, #tpu.memory_space<vmem>>, %arg7: memref<32x32xbf16, #tpu.memory_space<vmem>>, %arg8: memref<1x32xf32, #tpu.memory_space<vmem>>, %arg9: memref<4x8x32xbf16, #tpu.memory_space<vmem>>, %arg10: memref<1x32xf32, #tpu.memory_space<vmem>>, %arg11: memref<1x32xf32, #tpu.memory_space<vmem>>, %arg12: memref<1x32xf32, #tpu.memory_space<vmem>>, %arg13: memref<32x64xbf16, #tpu.memory_space<vmem>>, %arg14: memref<1x64xf32, #tpu.memory_space<vmem>>, %arg15: memref<64x32xbf16, #tpu.memory_space<vmem>>, %arg16: memref<1x32xf32, #tpu.memory_space<vmem>>, %arg17: memref<1x32xf32, #tpu.memory_space<vmem>>, %arg18: memref<1x32xf32, #tpu.memory_space<vmem>>, %arg19: memref<8x8x32xf32, #tpu.memory_space<vmem>>) attributes {dimension_semantics = [#tpu.dimension_semantics<parallel>], iteration_bounds = array<i64: 1>, scalar_prefetch = 0 : i64, scratch_operands = 0 : i64, tpu.core_type = #tpu.core_type<tc>, window_params = [{transform_indices = @transform_0, window_bounds = array<i64: 8, 8, 32>}, {transform_indices = @transform_1, window_bounds = array<i64: 8, 1, 8>}, {pipeline_mode = #tpu.pipeline_mode<synchronous>, transform_indices = @transform_2, window_bounds = array<i64: 32, 32>}, {pipeline_mode = #tpu.pipeline_mode<synchronous>, transform_indices = @transform_3, window_bounds = array<i64: 1, 32>}, {pipeline_mode = #tpu.pipeline_mode<synchronous>, transform_indices = @transform_4, window_bounds = array<i64: 32, 32>}, {pipeline_mode = #tpu.pipeline_mode<synchronous>, transform_indices = @transform_5, window_bounds = array<i64: 1, 32>}, {pipeline_mode = #tpu.pipeline_mode<synchronous>, transform_indices = @transform_6, window_bounds = array<i64: 32, 32>}, {pipeline_mode = #tpu.pipeline_mode<synchronous>, transform_indices = @transform_7, window_bounds = array<i64: 1, 32>}, {pipeline_mode = #tpu.pipeline_mode<synchronous>, transform_indices = @transform_8, window_bounds = array<i64: 4, 8, 32>}, {pipeline_mode = #tpu.pipeline_mode<synchronous>, transform_indices = @transform_9, window_bounds = array<i64: 1, 32>}, {pipeline_mode = #tpu.pipeline_mode<synchronous>, transform_indices = @transform_10, window_bounds = array<i64: 1, 32>}, {pipeline_mode = #tpu.pipeline_mode<synchronous>, transform_indices = @transform_11, window_bounds = array<i64: 1, 32>}, {pipeline_mode = #tpu.pipeline_mode<synchronous>, transform_indices = @transform_12, window_bounds = array<i64: 32, 64>}, {pipeline_mode = #tpu.pipeline_mode<synchronous>, transform_indices = @transform_13, window_bounds = array<i64: 1, 64>}, {pipeline_mode = #tpu.pipeline_mode<synchronous>, transform_indices = @transform_14, window_bounds = array<i64: 64, 32>}, {pipeline_mode = #tpu.pipeline_mode<synchronous>, transform_indices = @transform_15, window_bounds = array<i64: 1, 32>}, {pipeline_mode = #tpu.pipeline_mode<synchronous>, transform_indices = @transform_16, window_bounds = array<i64: 1, 32>}, {pipeline_mode = #tpu.pipeline_mode<synchronous>, transform_indices = @transform_17, window_bounds = array<i64: 1, 32>}, {transform_indices = @transform_18, window_bounds = array<i64: 8, 8, 32>}]} {
    %c0 = arith.constant 0 : index
    %c0_0 = arith.constant 0 : index
    %c0_1 = arith.constant 0 : index
    %0 = vector.load %arg1[%c0, %c0_0, %c0_1] : memref<8x8x32xf32, #tpu.memory_space<vmem>>, vector<8x8x32xf32>
    %1 = vector.shape_cast %0 : vector<8x8x32xf32> to vector<64x32xf32>
    %2 = arith.truncf %1 : vector<64x32xf32> to vector<64x32xbf16>
    %c0_2 = arith.constant 0 : index
    %c0_3 = arith.constant 0 : index
    %3 = vector.load %arg3[%c0_2, %c0_3] : memref<32x32xbf16, #tpu.memory_space<vmem>>, vector<32x32xbf16>
    %cst = arith.constant dense<0.000000e+00> : vector<64x32xf32>
    %4 = tpu.matmul %2, %3, %cst {dimension_numbers = #tpu.dot_dimension_numbers<[1], [0], [0], [1], [0, 0, 1, 1], [], []>} : vector<64x32xbf16>, vector<32x32xbf16>, vector<64x32xf32> -> vector<64x32xf32>
    %c0_4 = arith.constant 0 : index
    %c0_5 = arith.constant 0 : index
    %5 = vector.load %arg4[%c0_4, %c0_5] : memref<1x32xf32, #tpu.memory_space<vmem>>, vector<1x32xf32>
    %6 = vector.broadcast %5 : vector<1x32xf32> to vector<64x32xf32>
    %7 = arith.addf %4, %6 : vector<64x32xf32>
    %c0_6 = arith.constant 0 : index
    %c0_7 = arith.constant 0 : index
    %8 = vector.load %arg5[%c0_6, %c0_7] : memref<32x32xbf16, #tpu.memory_space<vmem>>, vector<32x32xbf16>
    %cst_8 = arith.constant dense<0.000000e+00> : vector<64x32xf32>
    %9 = tpu.matmul %2, %8, %cst_8 {dimension_numbers = #tpu.dot_dimension_numbers<[1], [0], [0], [1], [0, 0, 1, 1], [], []>} : vector<64x32xbf16>, vector<32x32xbf16>, vector<64x32xf32> -> vector<64x32xf32>
    %c0_9 = arith.constant 0 : index
    %c0_10 = arith.constant 0 : index
    %10 = vector.load %arg6[%c0_9, %c0_10] : memref<1x32xf32, #tpu.memory_space<vmem>>, vector<1x32xf32>
    %11 = vector.broadcast %10 : vector<1x32xf32> to vector<64x32xf32>
    %12 = arith.addf %9, %11 : vector<64x32xf32>
    %c0_11 = arith.constant 0 : index
    %c0_12 = arith.constant 0 : index
    %13 = vector.load %arg7[%c0_11, %c0_12] : memref<32x32xbf16, #tpu.memory_space<vmem>>, vector<32x32xbf16>
    %cst_13 = arith.constant dense<0.000000e+00> : vector<64x32xf32>
    %14 = tpu.matmul %2, %13, %cst_13 {dimension_numbers = #tpu.dot_dimension_numbers<[1], [0], [0], [1], [0, 0, 1, 1], [], []>} : vector<64x32xbf16>, vector<32x32xbf16>, vector<64x32xf32> -> vector<64x32xf32>
    %c0_14 = arith.constant 0 : index
    %c0_15 = arith.constant 0 : index
    %15 = vector.load %arg8[%c0_14, %c0_15] : memref<1x32xf32, #tpu.memory_space<vmem>>, vector<1x32xf32>
    %16 = vector.broadcast %15 : vector<1x32xf32> to vector<64x32xf32>
    %17 = arith.addf %14, %16 : vector<64x32xf32>
    %cst_16 = arith.constant 0.353553385 : f32
    %18 = vector.broadcast %cst_16 : f32 to vector<64x32xf32>
    %19 = arith.mulf %7, %18 : vector<64x32xf32>
    %20 = arith.truncf %19 : vector<64x32xf32> to vector<64x32xbf16>
    %21 = arith.truncf %12 : vector<64x32xf32> to vector<64x32xbf16>
    %22 = arith.truncf %17 : vector<64x32xf32> to vector<64x32xbf16>
    %c0_17 = arith.constant 0 : index
    %c0_18 = arith.constant 0 : index
    %c0_19 = arith.constant 0 : index
    %23 = vector.load %arg2[%c0_17, %c0_18, %c0_19] : memref<8x1x8xf32, #tpu.memory_space<vmem>>, vector<8x1x8xf32>
    %24 = vector.shape_cast %23 : vector<8x1x8xf32> to vector<8x1x8xf32>
    %25 = vector.broadcast %24 : vector<8x1x8xf32> to vector<8x8x8xf32>
    %cst_20 = arith.constant 0.000000e+00 : f32
    %26 = vector.broadcast %cst_20 : f32 to vector<64x32xf32>
    %c0_21 = arith.constant 0 : index
    %c0_22 = arith.constant 0 : index
    %27 = vector.load %arg10[%c0_21, %c0_22] : memref<1x32xf32, #tpu.memory_space<vmem>>, vector<1x32xf32>
    %28 = vector.broadcast %27 : vector<1x32xf32> to vector<64x32xf32>
    %29 = arith.addf %26, %28 : vector<64x32xf32>
    %30 = vector.extract_strided_slice %20 {offsets = [0, 0], sizes = [64, 8], strides = [1, 1]} : vector<64x32xbf16> to vector<64x8xbf16>
    %31 = vector.shape_cast %30 : vector<64x8xbf16> to vector<8x8x8xbf16>
    %32 = vector.extract_strided_slice %21 {offsets = [0, 0], sizes = [64, 8], strides = [1, 1]} : vector<64x32xbf16> to vector<64x8xbf16>
    %33 = vector.shape_cast %32 : vector<64x8xbf16> to vector<8x8x8xbf16>
    %34 = vector.extract_strided_slice %22 {offsets = [0, 0], sizes = [64, 8], strides = [1, 1]} : vector<64x32xbf16> to vector<64x8xbf16>
    %35 = vector.shape_cast %34 : vector<64x8xbf16> to vector<8x8x8xbf16>
    "tpu.trace_start"() <{level = 10 : i32, message = "aqd,akd->aqk"}> : () -> ()
    %cst_23 = arith.constant dense<0.000000e+00> : vector<8x8x8xf32>
    %36 = tpu.matmul %31, %33, %cst_23 {dimension_numbers = #tpu.dot_dimension_numbers<[2], [2], [1], [1], [0, 0, 0, 1, 1, 1], [0], [0]>} : vector<8x8x8xbf16>, vector<8x8x8xbf16>, vector<8x8x8xf32> -> vector<8x8x8xf32>
    "tpu.trace_stop"() : () -> ()
    %37 = arith.addf %36, %25 : vector<8x8x8xf32>
    %cst_24 = arith.constant dense<0xFF800000> : vector<8x8xf32>
    %38 = vector.multi_reduction <maximumf>, %37, %cst_24 [2] : vector<8x8x8xf32> to vector<8x8xf32>
    %39 = vector.shape_cast %38 : vector<8x8xf32> to vector<8x8x1xf32>
    %40 = vector.broadcast %39 : vector<8x8x1xf32> to vector<8x8x8xf32>
    %41 = arith.subf %37, %40 : vector<8x8x8xf32>
    %42 = math.exp %41 : vector<8x8x8xf32>
    %cst_25 = arith.constant dense<0.000000e+00> : vector<8x8xf32>
    %43 = vector.multi_reduction <add>, %42, %cst_25 [2] : vector<8x8x8xf32> to vector<8x8xf32>
    %44 = vector.shape_cast %43 : vector<8x8xf32> to vector<8x8x1xf32>
    %45 = tpu.reciprocal %44 {approx = true} : vector<8x8x1xf32> -> vector<8x8x1xf32>
    %46 = vector.broadcast %45 : vector<8x8x1xf32> to vector<8x8x8xf32>
    %47 = arith.mulf %42, %46 : vector<8x8x8xf32>
    %48 = arith.truncf %47 : vector<8x8x8xf32> to vector<8x8x8xbf16>
    "tpu.trace_start"() <{level = 10 : i32, message = "aqk,akd->aqd"}> : () -> ()
    %cst_26 = arith.constant dense<0.000000e+00> : vector<8x8x8xf32>
    %49 = tpu.matmul %48, %35, %cst_26 {dimension_numbers = #tpu.dot_dimension_numbers<[2], [1], [1], [2], [0, 0, 0, 1, 1, 2], [0], [0]>} : vector<8x8x8xbf16>, vector<8x8x8xbf16>, vector<8x8x8xf32> -> vector<8x8x8xf32>
    "tpu.trace_stop"() : () -> ()
    %50 = vector.shape_cast %49 : vector<8x8x8xf32> to vector<64x8xf32>
    %51 = arith.truncf %50 : vector<64x8xf32> to vector<64x8xbf16>
    %c0_27 = arith.constant 0 : index
    %c0_28 = arith.constant 0 : index
    %c0_29 = arith.constant 0 : index
    %52 = vector.load %arg9[%c0_27, %c0_28, %c0_29] : memref<4x8x32xbf16, #tpu.memory_space<vmem>>, vector<1x8x32xbf16>
    %53 = vector.shape_cast %52 : vector<1x8x32xbf16> to vector<8x32xbf16>
    %cst_30 = arith.constant dense<0.000000e+00> : vector<64x32xf32>
    %54 = tpu.matmul %51, %53, %cst_30 {dimension_numbers = #tpu.dot_dimension_numbers<[1], [0], [0], [1], [0, 0, 1, 1], [], []>} : vector<64x8xbf16>, vector<8x32xbf16>, vector<64x32xf32> -> vector<64x32xf32>
    %55 = arith.addf %29, %54 : vector<64x32xf32>
    %56 = vector.extract_strided_slice %20 {offsets = [0, 8], sizes = [64, 8], strides = [1, 1]} : vector<64x32xbf16> to vector<64x8xbf16>
    %57 = vector.shape_cast %56 : vector<64x8xbf16> to vector<8x8x8xbf16>
    %58 = vector.extract_strided_slice %21 {offsets = [0, 8], sizes = [64, 8], strides = [1, 1]} : vector<64x32xbf16> to vector<64x8xbf16>
    %59 = vector.shape_cast %58 : vector<64x8xbf16> to vector<8x8x8xbf16>
    %60 = vector.extract_strided_slice %22 {offsets = [0, 8], sizes = [64, 8], strides = [1, 1]} : vector<64x32xbf16> to vector<64x8xbf16>
    %61 = vector.shape_cast %60 : vector<64x8xbf16> to vector<8x8x8xbf16>
    "tpu.trace_start"() <{level = 10 : i32, message = "aqd,akd->aqk"}> : () -> ()
    %cst_31 = arith.constant dense<0.000000e+00> : vector<8x8x8xf32>
    %62 = tpu.matmul %57, %59, %cst_31 {dimension_numbers = #tpu.dot_dimension_numbers<[2], [2], [1], [1], [0, 0, 0, 1, 1, 1], [0], [0]>} : vector<8x8x8xbf16>, vector<8x8x8xbf16>, vector<8x8x8xf32> -> vector<8x8x8xf32>
    "tpu.trace_stop"() : () -> ()
    %63 = arith.addf %62, %25 : vector<8x8x8xf32>
    %cst_32 = arith.constant dense<0xFF800000> : vector<8x8xf32>
    %64 = vector.multi_reduction <maximumf>, %63, %cst_32 [2] : vector<8x8x8xf32> to vector<8x8xf32>
    %65 = vector.shape_cast %64 : vector<8x8xf32> to vector<8x8x1xf32>
    %66 = vector.broadcast %65 : vector<8x8x1xf32> to vector<8x8x8xf32>
    %67 = arith.subf %63, %66 : vector<8x8x8xf32>
    %68 = math.exp %67 : vector<8x8x8xf32>
    %cst_33 = arith.constant dense<0.000000e+00> : vector<8x8xf32>
    %69 = vector.multi_reduction <add>, %68, %cst_33 [2] : vector<8x8x8xf32> to vector<8x8xf32>
    %70 = vector.shape_cast %69 : vector<8x8xf32> to vector<8x8x1xf32>
    %71 = tpu.reciprocal %70 {approx = true} : vector<8x8x1xf32> -> vector<8x8x1xf32>
    %72 = vector.broadcast %71 : vector<8x8x1xf32> to vector<8x8x8xf32>
    %73 = arith.mulf %68, %72 : vector<8x8x8xf32>
    %74 = arith.truncf %73 : vector<8x8x8xf32> to vector<8x8x8xbf16>
    "tpu.trace_start"() <{level = 10 : i32, message = "aqk,akd->aqd"}> : () -> ()
    %cst_34 = arith.constant dense<0.000000e+00> : vector<8x8x8xf32>
    %75 = tpu.matmul %74, %61, %cst_34 {dimension_numbers = #tpu.dot_dimension_numbers<[2], [1], [1], [2], [0, 0, 0, 1, 1, 2], [0], [0]>} : vector<8x8x8xbf16>, vector<8x8x8xbf16>, vector<8x8x8xf32> -> vector<8x8x8xf32>
    "tpu.trace_stop"() : () -> ()
    %76 = vector.shape_cast %75 : vector<8x8x8xf32> to vector<64x8xf32>
    %77 = arith.truncf %76 : vector<64x8xf32> to vector<64x8xbf16>
    %c1 = arith.constant 1 : index
    %c0_35 = arith.constant 0 : index
    %c0_36 = arith.constant 0 : index
    %78 = vector.load %arg9[%c1, %c0_35, %c0_36] : memref<4x8x32xbf16, #tpu.memory_space<vmem>>, vector<1x8x32xbf16>
    %79 = vector.shape_cast %78 : vector<1x8x32xbf16> to vector<8x32xbf16>
    %cst_37 = arith.constant dense<0.000000e+00> : vector<64x32xf32>
    %80 = tpu.matmul %77, %79, %cst_37 {dimension_numbers = #tpu.dot_dimension_numbers<[1], [0], [0], [1], [0, 0, 1, 1], [], []>} : vector<64x8xbf16>, vector<8x32xbf16>, vector<64x32xf32> -> vector<64x32xf32>
    %81 = arith.addf %55, %80 : vector<64x32xf32>
    %82 = vector.extract_strided_slice %20 {offsets = [0, 16], sizes = [64, 8], strides = [1, 1]} : vector<64x32xbf16> to vector<64x8xbf16>
    %83 = vector.shape_cast %82 : vector<64x8xbf16> to vector<8x8x8xbf16>
    %84 = vector.extract_strided_slice %21 {offsets = [0, 16], sizes = [64, 8], strides = [1, 1]} : vector<64x32xbf16> to vector<64x8xbf16>
    %85 = vector.shape_cast %84 : vector<64x8xbf16> to vector<8x8x8xbf16>
    %86 = vector.extract_strided_slice %22 {offsets = [0, 16], sizes = [64, 8], strides = [1, 1]} : vector<64x32xbf16> to vector<64x8xbf16>
    %87 = vector.shape_cast %86 : vector<64x8xbf16> to vector<8x8x8xbf16>
    "tpu.trace_start"() <{level = 10 : i32, message = "aqd,akd->aqk"}> : () -> ()
    %cst_38 = arith.constant dense<0.000000e+00> : vector<8x8x8xf32>
    %88 = tpu.matmul %83, %85, %cst_38 {dimension_numbers = #tpu.dot_dimension_numbers<[2], [2], [1], [1], [0, 0, 0, 1, 1, 1], [0], [0]>} : vector<8x8x8xbf16>, vector<8x8x8xbf16>, vector<8x8x8xf32> -> vector<8x8x8xf32>
    "tpu.trace_stop"() : () -> ()
    %89 = arith.addf %88, %25 : vector<8x8x8xf32>
    %cst_39 = arith.constant dense<0xFF800000> : vector<8x8xf32>
    %90 = vector.multi_reduction <maximumf>, %89, %cst_39 [2] : vector<8x8x8xf32> to vector<8x8xf32>
    %91 = vector.shape_cast %90 : vector<8x8xf32> to vector<8x8x1xf32>
    %92 = vector.broadcast %91 : vector<8x8x1xf32> to vector<8x8x8xf32>
    %93 = arith.subf %89, %92 : vector<8x8x8xf32>
    %94 = math.exp %93 : vector<8x8x8xf32>
    %cst_40 = arith.constant dense<0.000000e+00> : vector<8x8xf32>
    %95 = vector.multi_reduction <add>, %94, %cst_40 [2] : vector<8x8x8xf32> to vector<8x8xf32>
    %96 = vector.shape_cast %95 : vector<8x8xf32> to vector<8x8x1xf32>
    %97 = tpu.reciprocal %96 {approx = true} : vector<8x8x1xf32> -> vector<8x8x1xf32>
    %98 = vector.broadcast %97 : vector<8x8x1xf32> to vector<8x8x8xf32>
    %99 = arith.mulf %94, %98 : vector<8x8x8xf32>
    %100 = arith.truncf %99 : vector<8x8x8xf32> to vector<8x8x8xbf16>
    "tpu.trace_start"() <{level = 10 : i32, message = "aqk,akd->aqd"}> : () -> ()
    %cst_41 = arith.constant dense<0.000000e+00> : vector<8x8x8xf32>
    %101 = tpu.matmul %100, %87, %cst_41 {dimension_numbers = #tpu.dot_dimension_numbers<[2], [1], [1], [2], [0, 0, 0, 1, 1, 2], [0], [0]>} : vector<8x8x8xbf16>, vector<8x8x8xbf16>, vector<8x8x8xf32> -> vector<8x8x8xf32>
    "tpu.trace_stop"() : () -> ()
    %102 = vector.shape_cast %101 : vector<8x8x8xf32> to vector<64x8xf32>
    %103 = arith.truncf %102 : vector<64x8xf32> to vector<64x8xbf16>
    %c2 = arith.constant 2 : index
    %c0_42 = arith.constant 0 : index
    %c0_43 = arith.constant 0 : index
    %104 = vector.load %arg9[%c2, %c0_42, %c0_43] : memref<4x8x32xbf16, #tpu.memory_space<vmem>>, vector<1x8x32xbf16>
    %105 = vector.shape_cast %104 : vector<1x8x32xbf16> to vector<8x32xbf16>
    %cst_44 = arith.constant dense<0.000000e+00> : vector<64x32xf32>
    %106 = tpu.matmul %103, %105, %cst_44 {dimension_numbers = #tpu.dot_dimension_numbers<[1], [0], [0], [1], [0, 0, 1, 1], [], []>} : vector<64x8xbf16>, vector<8x32xbf16>, vector<64x32xf32> -> vector<64x32xf32>
    %107 = arith.addf %81, %106 : vector<64x32xf32>
    %108 = vector.extract_strided_slice %20 {offsets = [0, 24], sizes = [64, 8], strides = [1, 1]} : vector<64x32xbf16> to vector<64x8xbf16>
    %109 = vector.shape_cast %108 : vector<64x8xbf16> to vector<8x8x8xbf16>
    %110 = vector.extract_strided_slice %21 {offsets = [0, 24], sizes = [64, 8], strides = [1, 1]} : vector<64x32xbf16> to vector<64x8xbf16>
    %111 = vector.shape_cast %110 : vector<64x8xbf16> to vector<8x8x8xbf16>
    %112 = vector.extract_strided_slice %22 {offsets = [0, 24], sizes = [64, 8], strides = [1, 1]} : vector<64x32xbf16> to vector<64x8xbf16>
    %113 = vector.shape_cast %112 : vector<64x8xbf16> to vector<8x8x8xbf16>
    "tpu.trace_start"() <{level = 10 : i32, message = "aqd,akd->aqk"}> : () -> ()
    %cst_45 = arith.constant dense<0.000000e+00> : vector<8x8x8xf32>
    %114 = tpu.matmul %109, %111, %cst_45 {dimension_numbers = #tpu.dot_dimension_numbers<[2], [2], [1], [1], [0, 0, 0, 1, 1, 1], [0], [0]>} : vector<8x8x8xbf16>, vector<8x8x8xbf16>, vector<8x8x8xf32> -> vector<8x8x8xf32>
    "tpu.trace_stop"() : () -> ()
    %115 = arith.addf %114, %25 : vector<8x8x8xf32>
    %cst_46 = arith.constant dense<0xFF800000> : vector<8x8xf32>
    %116 = vector.multi_reduction <maximumf>, %115, %cst_46 [2] : vector<8x8x8xf32> to vector<8x8xf32>
    %117 = vector.shape_cast %116 : vector<8x8xf32> to vector<8x8x1xf32>
    %118 = vector.broadcast %117 : vector<8x8x1xf32> to vector<8x8x8xf32>
    %119 = arith.subf %115, %118 : vector<8x8x8xf32>
    %120 = math.exp %119 : vector<8x8x8xf32>
    %cst_47 = arith.constant dense<0.000000e+00> : vector<8x8xf32>
    %121 = vector.multi_reduction <add>, %120, %cst_47 [2] : vector<8x8x8xf32> to vector<8x8xf32>
    %122 = vector.shape_cast %121 : vector<8x8xf32> to vector<8x8x1xf32>
    %123 = tpu.reciprocal %122 {approx = true} : vector<8x8x1xf32> -> vector<8x8x1xf32>
    %124 = vector.broadcast %123 : vector<8x8x1xf32> to vector<8x8x8xf32>
    %125 = arith.mulf %120, %124 : vector<8x8x8xf32>
    %126 = arith.truncf %125 : vector<8x8x8xf32> to vector<8x8x8xbf16>
    "tpu.trace_start"() <{level = 10 : i32, message = "aqk,akd->aqd"}> : () -> ()
    %cst_48 = arith.constant dense<0.000000e+00> : vector<8x8x8xf32>
    %127 = tpu.matmul %126, %113, %cst_48 {dimension_numbers = #tpu.dot_dimension_numbers<[2], [1], [1], [2], [0, 0, 0, 1, 1, 2], [0], [0]>} : vector<8x8x8xbf16>, vector<8x8x8xbf16>, vector<8x8x8xf32> -> vector<8x8x8xf32>
    "tpu.trace_stop"() : () -> ()
    %128 = vector.shape_cast %127 : vector<8x8x8xf32> to vector<64x8xf32>
    %129 = arith.truncf %128 : vector<64x8xf32> to vector<64x8xbf16>
    %c3 = arith.constant 3 : index
    %c0_49 = arith.constant 0 : index
    %c0_50 = arith.constant 0 : index
    %130 = vector.load %arg9[%c3, %c0_49, %c0_50] : memref<4x8x32xbf16, #tpu.memory_space<vmem>>, vector<1x8x32xbf16>
    %131 = vector.shape_cast %130 : vector<1x8x32xbf16> to vector<8x32xbf16>
    %cst_51 = arith.constant dense<0.000000e+00> : vector<64x32xf32>
    %132 = tpu.matmul %129, %131, %cst_51 {dimension_numbers = #tpu.dot_dimension_numbers<[1], [0], [0], [1], [0, 0, 1, 1], [], []>} : vector<64x8xbf16>, vector<8x32xbf16>, vector<64x32xf32> -> vector<64x32xf32>
    %133 = arith.addf %107, %132 : vector<64x32xf32>
    %134 = arith.addf %133, %1 : vector<64x32xf32>
    %c0_52 = arith.constant 0 : index
    %c0_53 = arith.constant 0 : index
    %135 = vector.load %arg11[%c0_52, %c0_53] : memref<1x32xf32, #tpu.memory_space<vmem>>, vector<1x32xf32>
    %c0_54 = arith.constant 0 : index
    %c0_55 = arith.constant 0 : index
    %136 = vector.load %arg12[%c0_54, %c0_55] : memref<1x32xf32, #tpu.memory_space<vmem>>, vector<1x32xf32>
    %cst_56 = arith.constant dense<0.000000e+00> : vector<64xf32>
    %137 = vector.multi_reduction <add>, %134, %cst_56 [1] : vector<64x32xf32> to vector<64xf32>
    %138 = vector.shape_cast %137 : vector<64xf32> to vector<64x1xf32>
    %cst_57 = arith.constant 3.200000e+01 : f32
    %139 = vector.broadcast %cst_57 : f32 to vector<64x1xf32>
    %140 = arith.divf %138, %139 : vector<64x1xf32>
    %141 = vector.broadcast %140 : vector<64x1xf32> to vector<64x32xf32>
    %142 = arith.subf %134, %141 : vector<64x32xf32>
    %143 = arith.mulf %142, %142 : vector<64x32xf32>
    %cst_58 = arith.constant dense<0.000000e+00> : vector<64xf32>
    %144 = vector.multi_reduction <add>, %143, %cst_58 [1] : vector<64x32xf32> to vector<64xf32>
    %145 = vector.shape_cast %144 : vector<64xf32> to vector<64x1xf32>
    %cst_59 = arith.constant 3.200000e+01 : f32
    %146 = vector.broadcast %cst_59 : f32 to vector<64x1xf32>
    %147 = arith.divf %145, %146 : vector<64x1xf32>
    %148 = vector.broadcast %140 : vector<64x1xf32> to vector<64x32xf32>
    %149 = arith.subf %134, %148 : vector<64x32xf32>
    %cst_60 = arith.constant 9.99999996E-13 : f32
    %150 = vector.broadcast %cst_60 : f32 to vector<64x1xf32>
    %151 = arith.addf %147, %150 : vector<64x1xf32>
    %152 = math.rsqrt %151 : vector<64x1xf32>
    %153 = vector.broadcast %152 : vector<64x1xf32> to vector<64x32xf32>
    %154 = arith.mulf %149, %153 : vector<64x32xf32>
    %155 = vector.broadcast %135 : vector<1x32xf32> to vector<64x32xf32>
    %156 = arith.mulf %154, %155 : vector<64x32xf32>
    %157 = vector.broadcast %136 : vector<1x32xf32> to vector<64x32xf32>
    %158 = arith.addf %156, %157 : vector<64x32xf32>
    %159 = arith.truncf %158 : vector<64x32xf32> to vector<64x32xbf16>
    %cst_61 = arith.constant 0.000000e+00 : f32
    %160 = vector.broadcast %cst_61 : f32 to vector<64x32xf32>
    %c0_62 = arith.constant 0 : index
    %c0_63 = arith.constant 0 : index
    %161 = vector.load %arg16[%c0_62, %c0_63] : memref<1x32xf32, #tpu.memory_space<vmem>>, vector<1x32xf32>
    %162 = vector.broadcast %161 : vector<1x32xf32> to vector<64x32xf32>
    %163 = arith.addf %160, %162 : vector<64x32xf32>
    %c0_64 = arith.constant 0 : index
    %c0_65 = arith.constant 0 : index
    %164 = vector.load %arg13[%c0_64, %c0_65] : memref<32x64xbf16, #tpu.memory_space<vmem>>, vector<32x64xbf16>
    %cst_66 = arith.constant dense<0.000000e+00> : vector<64x64xf32>
    %165 = tpu.matmul %159, %164, %cst_66 {dimension_numbers = #tpu.dot_dimension_numbers<[1], [0], [0], [1], [0, 0, 1, 1], [], []>} : vector<64x32xbf16>, vector<32x64xbf16>, vector<64x64xf32> -> vector<64x64xf32>
    %c0_67 = arith.constant 0 : index
    %c0_68 = arith.constant 0 : index
    %166 = vector.load %arg14[%c0_67, %c0_68] : memref<1x64xf32, #tpu.memory_space<vmem>>, vector<1x64xf32>
    %167 = vector.broadcast %166 : vector<1x64xf32> to vector<64x64xf32>
    %168 = arith.addf %165, %167 : vector<64x64xf32>
    %cst_69 = arith.constant 5.000000e-01 : f32
    %169 = vector.broadcast %cst_69 : f32 to vector<64x64xf32>
    %170 = arith.mulf %169, %168 : vector<64x64xf32>
    %cst_70 = arith.constant 0.707106769 : f32
    %171 = vector.broadcast %cst_70 : f32 to vector<64x64xf32>
    %172 = arith.mulf %168, %171 : vector<64x64xf32>
    %173 = math.erf %172 : vector<64x64xf32>
    %cst_71 = arith.constant 1.000000e+00 : f32
    %174 = vector.broadcast %cst_71 : f32 to vector<64x64xf32>
    %175 = arith.addf %174, %173 : vector<64x64xf32>
    %176 = arith.mulf %170, %175 : vector<64x64xf32>
    %177 = arith.truncf %176 : vector<64x64xf32> to vector<64x64xbf16>
    %c0_72 = arith.constant 0 : index
    %c0_73 = arith.constant 0 : index
    %178 = vector.load %arg15[%c0_72, %c0_73] : memref<64x32xbf16, #tpu.memory_space<vmem>>, vector<64x32xbf16>
    %cst_74 = arith.constant dense<0.000000e+00> : vector<64x32xf32>
    %179 = tpu.matmul %177, %178, %cst_74 {dimension_numbers = #tpu.dot_dimension_numbers<[1], [0], [0], [1], [0, 0, 1, 1], [], []>} : vector<64x64xbf16>, vector<64x32xbf16>, vector<64x32xf32> -> vector<64x32xf32>
    %180 = arith.addf %163, %179 : vector<64x32xf32>
    %181 = arith.addf %180, %158 : vector<64x32xf32>
    %c0_75 = arith.constant 0 : index
    %c0_76 = arith.constant 0 : index
    %182 = vector.load %arg17[%c0_75, %c0_76] : memref<1x32xf32, #tpu.memory_space<vmem>>, vector<1x32xf32>
    %c0_77 = arith.constant 0 : index
    %c0_78 = arith.constant 0 : index
    %183 = vector.load %arg18[%c0_77, %c0_78] : memref<1x32xf32, #tpu.memory_space<vmem>>, vector<1x32xf32>
    %cst_79 = arith.constant dense<0.000000e+00> : vector<64xf32>
    %184 = vector.multi_reduction <add>, %181, %cst_79 [1] : vector<64x32xf32> to vector<64xf32>
    %185 = vector.shape_cast %184 : vector<64xf32> to vector<64x1xf32>
    %cst_80 = arith.constant 3.200000e+01 : f32
    %186 = vector.broadcast %cst_80 : f32 to vector<64x1xf32>
    %187 = arith.divf %185, %186 : vector<64x1xf32>
    %188 = vector.broadcast %187 : vector<64x1xf32> to vector<64x32xf32>
    %189 = arith.subf %181, %188 : vector<64x32xf32>
    %190 = arith.mulf %189, %189 : vector<64x32xf32>
    %cst_81 = arith.constant dense<0.000000e+00> : vector<64xf32>
    %191 = vector.multi_reduction <add>, %190, %cst_81 [1] : vector<64x32xf32> to vector<64xf32>
    %192 = vector.shape_cast %191 : vector<64xf32> to vector<64x1xf32>
    %cst_82 = arith.constant 3.200000e+01 : f32
    %193 = vector.broadcast %cst_82 : f32 to vector<64x1xf32>
    %194 = arith.divf %192, %193 : vector<64x1xf32>
    %195 = vector.broadcast %187 : vector<64x1xf32> to vector<64x32xf32>
    %196 = arith.subf %181, %195 : vector<64x32xf32>
    %cst_83 = arith.constant 9.99999996E-13 : f32
    %197 = vector.broadcast %cst_83 : f32 to vector<64x1xf32>
    %198 = arith.addf %194, %197 : vector<64x1xf32>
    %199 = math.rsqrt %198 : vector<64x1xf32>
    %200 = vector.broadcast %199 : vector<64x1xf32> to vector<64x32xf32>
    %201 = arith.mulf %196, %200 : vector<64x32xf32>
    %202 = vector.broadcast %182 : vector<1x32xf32> to vector<64x32xf32>
    %203 = arith.mulf %201, %202 : vector<64x32xf32>
    %204 = vector.broadcast %183 : vector<1x32xf32> to vector<64x32xf32>
    %205 = arith.addf %203, %204 : vector<64x32xf32>
    %206 = vector.shape_cast %205 : vector<64x32xf32> to vector<8x8x32xf32>
    %c0_84 = arith.constant 0 : index
    %c0_85 = arith.constant 0 : index
    %c0_86 = arith.constant 0 : index
    %207 = vector.load %arg19[%c0_84, %c0_85, %c0_86] : memref<8x8x32xf32, #tpu.memory_space<vmem>>, vector<8x8x32xf32>
    tpu.vector_store %arg19[%c0_84, %c0_85, %c0_86], %206 {strides = array<i32>} : memref<8x8x32xf32, #tpu.memory_space<vmem>>, vector<8x8x32xf32>,
    return
  }
  func.func @transform_0(%arg0: i32) -> (i32, i32, i32) {
    %c0_i32 = arith.constant 0 : i32
    %c0_i32_0 = arith.constant 0 : i32
    %c0_i32_1 = arith.constant 0 : i32
    return %arg0, %c0_i32, %c0_i32_0 : i32, i32, i32
  }
  func.func @transform_1(%arg0: i32) -> (i32, i32, i32) {
    %c0_i32 = arith.constant 0 : i32
    %c0_i32_0 = arith.constant 0 : i32
    %c0_i32_1 = arith.constant 0 : i32
    return %arg0, %c0_i32, %c0_i32_0 : i32, i32, i32
  }
  func.func @transform_2(%arg0: i32) -> (i32, i32) {
    %c0_i32 = arith.constant 0 : i32
    %c0_i32_0 = arith.constant 0 : i32
    %c0_i32_1 = arith.constant 0 : i32
    return %c0_i32, %c0_i32_0 : i32, i32
  }
  func.func @transform_3(%arg0: i32) -> (i32, i32) {
    %c0_i32 = arith.constant 0 : i32
    %c0_i32_0 = arith.constant 0 : i32
    %c0_i32_1 = arith.constant 0 : i32
    return %c0_i32, %c0_i32_0 : i32, i32
  }
  func.func @transform_4(%arg0: i32) -> (i32, i32) {
    %c0_i32 = arith.constant 0 : i32
    %c0_i32_0 = arith.constant 0 : i32
    %c0_i32_1 = arith.constant 0 : i32
    return %c0_i32, %c0_i32_0 : i32, i32
  }
  func.func @transform_5(%arg0: i32) -> (i32, i32) {
    %c0_i32 = arith.constant 0 : i32
    %c0_i32_0 = arith.constant 0 : i32
    %c0_i32_1 = arith.constant 0 : i32
    return %c0_i32, %c0_i32_0 : i32, i32
  }
  func.func @transform_6(%arg0: i32) -> (i32, i32) {
    %c0_i32 = arith.constant 0 : i32
    %c0_i32_0 = arith.constant 0 : i32
    %c0_i32_1 = arith.constant 0 : i32
    return %c0_i32, %c0_i32_0 : i32, i32
  }
  func.func @transform_7(%arg0: i32) -> (i32, i32) {
    %c0_i32 = arith.constant 0 : i32
    %c0_i32_0 = arith.constant 0 : i32
    %c0_i32_1 = arith.constant 0 : i32
    return %c0_i32, %c0_i32_0 : i32, i32
  }
  func.func @transform_8(%arg0: i32) -> (i32, i32, i32) {
    %c0_i32 = arith.constant 0 : i32
    %c0_i32_0 = arith.constant 0 : i32
    %c0_i32_1 = arith.constant 0 : i32
    %c0_i32_2 = arith.constant 0 : i32
    return %c0_i32, %c0_i32_0, %c0_i32_1 : i32, i32, i32
  }
  func.func @transform_9(%arg0: i32) -> (i32, i32) {
    %c0_i32 = arith.constant 0 : i32
    %c0_i32_0 = arith.constant 0 : i32
    %c0_i32_1 = arith.constant 0 : i32
    return %c0_i32, %c0_i32_0 : i32, i32
  }
  func.func @transform_10(%arg0: i32) -> (i32, i32) {
    %c0_i32 = arith.constant 0 : i32
    %c0_i32_0 = arith.constant 0 : i32
    %c0_i32_1 = arith.constant 0 : i32
    return %c0_i32, %c0_i32_0 : i32, i32
  }
  func.func @transform_11(%arg0: i32) -> (i32, i32) {
    %c0_i32 = arith.constant 0 : i32
    %c0_i32_0 = arith.constant 0 : i32
    %c0_i32_1 = arith.constant 0 : i32
    return %c0_i32, %c0_i32_0 : i32, i32
  }
  func.func @transform_12(%arg0: i32) -> (i32, i32) {
    %c0_i32 = arith.constant 0 : i32
    %c0_i32_0 = arith.constant 0 : i32
    %c0_i32_1 = arith.constant 0 : i32
    return %c0_i32, %c0_i32_0 : i32, i32
  }
  func.func @transform_13(%arg0: i32) -> (i32, i32) {
    %c0_i32 = arith.constant 0 : i32
    %c0_i32_0 = arith.constant 0 : i32
    %c0_i32_1 = arith.constant 0 : i32
    return %c0_i32, %c0_i32_0 : i32, i32
  }
  func.func @transform_14(%arg0: i32) -> (i32, i32) {
    %c0_i32 = arith.constant 0 : i32
    %c0_i32_0 = arith.constant 0 : i32
    %c0_i32_1 = arith.constant 0 : i32
    return %c0_i32, %c0_i32_0 : i32, i32
  }
  func.func @transform_15(%arg0: i32) -> (i32, i32) {
    %c0_i32 = arith.constant 0 : i32
    %c0_i32_0 = arith.constant 0 : i32
    %c0_i32_1 = arith.constant 0 : i32
    return %c0_i32, %c0_i32_0 : i32, i32
  }
  func.func @transform_16(%arg0: i32) -> (i32, i32) {
    %c0_i32 = arith.constant 0 : i32
    %c0_i32_0 = arith.constant 0 : i32
    %c0_i32_1 = arith.constant 0 : i32
    return %c0_i32, %c0_i32_0 : i32, i32
  }
  func.func @transform_17(%arg0: i32) -> (i32, i32) {
    %c0_i32 = arith.constant 0 : i32
    %c0_i32_0 = arith.constant 0 : i32
    %c0_i32_1 = arith.constant 0 : i32
    return %c0_i32, %c0_i32_0 : i32, i32
  }
  func.func @transform_18(%arg0: i32) -> (i32, i32, i32) {
    %c0_i32 = arith.constant 0 : i32
    %c0_i32_0 = arith.constant 0 : i32
    %c0_i32_1 = arith.constant 0 : i32
    return %arg0, %c0_i32, %c0_i32_0 : i32, i32, i32
  }
}

</mosaic_0001>

<llo_original>
// kernel: tpu_custom_call.1
$region0: #{tpu_custom_call.1}
  #allocation0 [shape = 'u32[]', space=smem, size = 0x4, offset = 0x4, fixed_abs, tag = 'smem constant byte address 0x4 - core index']
  #allocation1 [shape = 'u32[72,128]{1,0:T(1,128)}', space=vmem, size = 0x9000, scoped, tag = 'internal scratch']
  %s0 = inlined_call_operand.hbm [shape: f32[8,8,32], index: 0, kind: input, shape index: {}]
  %s1 = inlined_call_operand.hbm [shape: f32[8,1,8], index: 1, kind: input, shape index: {}]
  %s2 = inlined_call_operand.vmem [shape: bf16[32,32], index: 2, kind: input, shape index: {}]
  %s3 = inlined_call_operand.vmem [shape: f32[1,32], index: 3, kind: input, shape index: {}]
  %s4 = inlined_call_operand.vmem [shape: bf16[32,32], index: 4, kind: input, shape index: {}]
  %s5 = inlined_call_operand.vmem [shape: f32[1,32], index: 5, kind: input, shape index: {}]
  %s6 = inlined_call_operand.vmem [shape: bf16[32,32], index: 6, kind: input, shape index: {}]
  %s7 = inlined_call_operand.vmem [shape: f32[1,32], index: 7, kind: input, shape index: {}]
  %s8 = inlined_call_operand.hbm [shape: bf16[4,8,32], index: 8, kind: input, shape index: {}]
  %s9 = inlined_call_operand.vmem [shape: f32[1,32], index: 9, kind: input, shape index: {}]
  %s10 = inlined_call_operand.vmem [shape: f32[1,32], index: 10, kind: input, shape index: {}]
  %s11 = inlined_call_operand.vmem [shape: f32[1,32], index: 11, kind: input, shape index: {}]
  %s12 = inlined_call_operand.hbm [shape: bf16[32,64], index: 12, kind: input, shape index: {}]
  %s13 = inlined_call_operand.vmem [shape: f32[1,64], index: 13, kind: input, shape index: {}]
  %s14 = inlined_call_operand.vmem [shape: bf16[64,32], index: 14, kind: input, shape index: {}]
  %s15 = inlined_call_operand.vmem [shape: f32[1,32], index: 15, kind: input, shape index: {}]
  %s16 = inlined_call_operand.vmem [shape: f32[1,32], index: 16, kind: input, shape index: {}]
  %s17 = inlined_call_operand.vmem [shape: f32[1,32], index: 17, kind: input, shape index: {}]
  %s18 = inlined_call_operand.hbm [shape: f32[8,8,32], index: 18, kind: output, shape index: {}]
  %s19 = sld [smem:[#allocation0]]
  $region98: #{tpu_custom_call.1} parent=0
    _
  %s21 = ssub.s32 1, %s19
  %s22 = scalar_select 0, %s21, %s19
  $region1: #{tpu_custom_call.1} parent=0
    #allocation2 [shape = 'u8[32768]{0}', space=vmem, size = 0x8000, scoped, tag = 'input window, operand 0, single buffered']
    #allocation3 [shape = 's32[1]{0}', space=sflag, size = 0x4, scoped, tag = 'scoped memory for tpu_custom_call.1']
    #allocation4 [shape = 's32[1]{0}', space=sflag, size = 0x4, scoped, tag = 'scoped memory for tpu_custom_call.1']
    #allocation5 [shape = 'u8[4096]{0}', space=vmem, size = 0x1000, scoped, tag = 'input window, operand 1, single buffered']
    #allocation6 [shape = 's32[1]{0}', space=sflag, size = 0x4, scoped, tag = 'scoped memory for tpu_custom_call.1']
    #allocation7 [shape = 'u8[8192]{0}', space=vmem, size = 0x2000, scoped, tag = 'input window, operand 8, single buffered']
    #allocation8 [shape = 'u8[8192]{0}', space=vmem, size = 0x2000, scoped, tag = 'input window, operand 12, single buffered']
    #allocation9 [shape = 's32[1]{0}', space=sflag, size = 0x4, scoped, tag = 'scoped memory for tpu_custom_call.1']
    #allocation10 [shape = 'u8[32768]{0}', space=vmem, size = 0x8000, scoped, tag = 'output window, operand 0, single buffered']
    %23 = vsyncpa [#allocation3], 0
    %24 = vsyncpa [#allocation6], 0
    %25 = vsyncpa [#allocation9], 0
    %26 = vsyncpa [#allocation4], 0
    // Predicated region
    $region2: #{tpu_custom_call.1} parent=1 // pred_check
      _
    $region3: #{tpu_custom_call.1} parent=1 // pred_check_branch
      %28 = sbr.rel (0) target = $region5
    $region4: #{tpu_custom_call.1} parent=1 // pred_region
      %30 = vsyncadd [#allocation3], 0
      %s31 = sshll.u32 %s0, 4
      %s32 = int_to_ptr.hbm [resolvable:$true] %s31
      %s33 = sshll.u32 [#allocation2], 4
      %s34 = int_to_ptr.vmem [resolvable:$true] %s33
      %39 = dma.hbm_to_vmem [thread:$0]  %s32, 1024, %s34, [#allocation3], 128, 128, 8
    $region5: #{tpu_custom_call.1} parent=1 // pred_fallthru
      _
    // Predicated region
    $region6: #{tpu_custom_call.1} parent=1 // pred_check
      _
    $region7: #{tpu_custom_call.1} parent=1 // pred_check_branch
      %41 = sbr.rel (0) target = $region9
    $region8: #{tpu_custom_call.1} parent=1 // pred_region
      %43 = vsyncadd [#allocation6], 0
      %s44 = sshll.u32 %s1, 4
      %s45 = int_to_ptr.hbm [resolvable:$true] %s44
      %s46 = sshll.u32 [#allocation5], 4
      %s47 = int_to_ptr.vmem [resolvable:$true] %s46
      %52 = dma.hbm_to_vmem [thread:$0]  %s45, 128, %s47, [#allocation6], 16, 16, 1
    $region9: #{tpu_custom_call.1} parent=1 // pred_fallthru
      _
    // Predicated region
    $region10: #{tpu_custom_call.1} parent=1 // pred_check
      _
    $region11: #{tpu_custom_call.1} parent=1 // pred_check_branch
      %54 = sbr.rel (0) target = $region13
    $region12: #{tpu_custom_call.1} parent=1 // pred_region
      _
    $region13: #{tpu_custom_call.1} parent=1 // pred_fallthru
      _
    // Predicated region
    $region14: #{tpu_custom_call.1} parent=1 // pred_check
      _
    $region15: #{tpu_custom_call.1} parent=1 // pred_check_branch
      %56 = sbr.rel (0) target = $region17
    $region16: #{tpu_custom_call.1} parent=1 // pred_region
      _
    $region17: #{tpu_custom_call.1} parent=1 // pred_fallthru
      _
    // Predicated region
    $region18: #{tpu_custom_call.1} parent=1 // pred_check
      _
    $region19: #{tpu_custom_call.1} parent=1 // pred_check_branch
      %58 = sbr.rel (0) target = $region21
    $region20: #{tpu_custom_call.1} parent=1 // pred_region
      _
    $region21: #{tpu_custom_call.1} parent=1 // pred_fallthru
      _
    // Predicated region
    $region22: #{tpu_custom_call.1} parent=1 // pred_check
      _
    $region23: #{tpu_custom_call.1} parent=1 // pred_check_branch
      %60 = sbr.rel (0) target = $region25
    $region24: #{tpu_custom_call.1} parent=1 // pred_region
      _
    $region25: #{tpu_custom_call.1} parent=1 // pred_fallthru
      _
    // Predicated region
    $region26: #{tpu_custom_call.1} parent=1 // pred_check
      _
    $region27: #{tpu_custom_call.1} parent=1 // pred_check_branch
      %62 = sbr.rel (0) target = $region29
    $region28: #{tpu_custom_call.1} parent=1 // pred_region
      _
    $region29: #{tpu_custom_call.1} parent=1 // pred_fallthru
      _
    // Predicated region
    $region30: #{tpu_custom_call.1} parent=1 // pred_check
      _
    $region31: #{tpu_custom_call.1} parent=1 // pred_check_branch
      %64 = sbr.rel (0) target = $region33
    $region32: #{tpu_custom_call.1} parent=1 // pred_region
      _
    $region33: #{tpu_custom_call.1} parent=1 // pred_fallthru
      _
    // Predicated region
    $region34: #{tpu_custom_call.1} parent=1 // pred_check
      _
    $region35: #{tpu_custom_call.1} parent=1 // pred_check_branch
      %66 = sbr.rel (0) target = $region37
    $region36: #{tpu_custom_call.1} parent=1 // pred_region
      %68 = vsyncadd [#allocation6], 0
      %s69 = sshll.u32 %s8, 4
      %s70 = int_to_ptr.hbm [resolvable:$true] %s69
      %s71 = sshll.u32 [#allocation7], 4
      %s72 = int_to_ptr.vmem [resolvable:$true] %s71
      %77 = dma.hbm_to_vmem [thread:$0]  %s70, 256, %s72, [#allocation6], 64, 64, 4
    $region37: #{tpu_custom_call.1} parent=1 // pred_fallthru
      _
    // Predicated region
    $region38: #{tpu_custom_call.1} parent=1 // pred_check
      _
    $region39: #{tpu_custom_call.1} parent=1 // pred_check_branch
      %79 = sbr.rel (0) target = $region41
    $region40: #{tpu_custom_call.1} parent=1 // pred_region
      _
    $region41: #{tpu_custom_call.1} parent=1 // pred_fallthru
      _
    // Predicated region
    $region42: #{tpu_custom_call.1} parent=1 // pred_check
      _
    $region43: #{tpu_custom_call.1} parent=1 // pred_check_branch
      %81 = sbr.rel (0) target = $region45
    $region44: #{tpu_custom_call.1} parent=1 // pred_region
      _
    $region45: #{tpu_custom_call.1} parent=1 // pred_fallthru
      _
    // Predicated region
    $region46: #{tpu_custom_call.1} parent=1 // pred_check
      _
    $region47: #{tpu_custom_call.1} parent=1 // pred_check_branch
      %83 = sbr.rel (0) target = $region49
    $region48: #{tpu_custom_call.1} parent=1 // pred_region
      _
    $region49: #{tpu_custom_call.1} parent=1 // pred_fallthru
      _
    // Predicated region
    $region50: #{tpu_custom_call.1} parent=1 // pred_check
      _
    $region51: #{tpu_custom_call.1} parent=1 // pred_check_branch
      %85 = sbr.rel (0) target = $region53
    $region52: #{tpu_custom_call.1} parent=1 // pred_region
      %87 = vsyncadd [#allocation9], 0
      %s88 = sshll.u32 %s12, 4
      %s89 = int_to_ptr.hbm [resolvable:$true] %s88
      %s90 = sshll.u32 [#allocation8], 4
      %s91 = int_to_ptr.vmem [resolvable:$true] %s90
      %96 = dma.hbm_to_vmem [thread:$0]  %s89, 256, %s91, [#allocation9], 64, 64, 4
    $region53: #{tpu_custom_call.1} parent=1 // pred_fallthru
      _
    // Predicated region
    $region54: #{tpu_custom_call.1} parent=1 // pred_check
      _
    $region55: #{tpu_custom_call.1} parent=1 // pred_check_branch
      %98 = sbr.rel (0) target = $region57
    $region56: #{tpu_custom_call.1} parent=1 // pred_region
      _
    $region57: #{tpu_custom_call.1} parent=1 // pred_fallthru
      _
    // Predicated region
    $region58: #{tpu_custom_call.1} parent=1 // pred_check
      _
    $region59: #{tpu_custom_call.1} parent=1 // pred_check_branch
      %100 = sbr.rel (0) target = $region61
    $region60: #{tpu_custom_call.1} parent=1 // pred_region
      _
    $region61: #{tpu_custom_call.1} parent=1 // pred_fallthru
      _
    // Predicated region
    $region62: #{tpu_custom_call.1} parent=1 // pred_check
      _
    $region63: #{tpu_custom_call.1} parent=1 // pred_check_branch
      %102 = sbr.rel (0) target = $region65
    $region64: #{tpu_custom_call.1} parent=1 // pred_region
      _
    $region65: #{tpu_custom_call.1} parent=1 // pred_fallthru
      _
    // Predicated region
    $region66: #{tpu_custom_call.1} parent=1 // pred_check
      _
    $region67: #{tpu_custom_call.1} parent=1 // pred_check_branch
      %104 = sbr.rel (0) target = $region69
    $region68: #{tpu_custom_call.1} parent=1 // pred_region
      _
    $region69: #{tpu_custom_call.1} parent=1 // pred_fallthru
      _
    // Predicated region
    $region70: #{tpu_custom_call.1} parent=1 // pred_check
      _
    $region71: #{tpu_custom_call.1} parent=1 // pred_check_branch
      %106 = sbr.rel (0) target = $region73
    $region72: #{tpu_custom_call.1} parent=1 // pred_region
      _
    $region73: #{tpu_custom_call.1} parent=1 // pred_fallthru
      _
    // Predicated region
    $region74: #{tpu_custom_call.1} parent=1 // pred_check
      _
    $region75: #{tpu_custom_call.1} parent=1 // pred_check_branch
      %108 = sbr.rel (0) target = $region77
    $region76: #{tpu_custom_call.1} parent=1 // pred_region
      %110 = dma.done [#allocation3], 1024
    $region77: #{tpu_custom_call.1} parent=1 // pred_fallthru
      _
    // Predicated region
    $region78: #{tpu_custom_call.1} parent=1 // pred_check
      _
    $region79: #{tpu_custom_call.1} parent=1 // pred_check_branch
      %112 = sbr.rel (0) target = $region81
    $region80: #{tpu_custom_call.1} parent=1 // pred_region
      %114 = dma.done [#allocation6], 128
    $region81: #{tpu_custom_call.1} parent=1 // pred_fallthru
      _
    // Predicated region
    $region82: #{tpu_custom_call.1} parent=1 // pred_check
      _
    $region83: #{tpu_custom_call.1} parent=1 // pred_check_branch
      %116 = sbr.rel (0) target = $region85
    $region84: #{tpu_custom_call.1} parent=1 // pred_region
      %118 = dma.done [#allocation6], 256
    $region85: #{tpu_custom_call.1} parent=1 // pred_fallthru
      _
    // Predicated region
    $region86: #{tpu_custom_call.1} parent=1 // pred_check
      _
    $region87: #{tpu_custom_call.1} parent=1 // pred_check_branch
      %120 = sbr.rel (0) target = $region89
    $region88: #{tpu_custom_call.1} parent=1 // pred_region
      %122 = dma.done [#allocation9], 256
    $region89: #{tpu_custom_call.1} parent=1 // pred_fallthru
      _
    %v124 = vld [vmem:[#allocation2] sm:$0xff]
    %v125 = vld [vmem:[#allocation2 + $0x8] sm:$0xff]
    %v126 = vld [vmem:[#allocation2 + $0x10] sm:$0xff]
    %v127 = vld [vmem:[#allocation2 + $0x18] sm:$0xff]
    %v128 = vld [vmem:[#allocation2 + $0x20] sm:$0xff]
    %v129 = vld [vmem:[#allocation2 + $0x28] sm:$0xff]
    %v130 = vld [vmem:[#allocation2 + $0x30] sm:$0xff]
    %v131 = vld [vmem:[#allocation2 + $0x38] sm:$0xff]
    %v132 = vpack.c.bf16 %v125, %v124
    %v133 = vpack.c.bf16 %v127, %v126
    %v134 = vpack.c.bf16 %v129, %v128
    %v135 = vpack.c.bf16 %v131, %v130
    %v136 = vld [vmem:[%s2] sm:$0xf]
    %v137 = vld [vmem:[%s2 + $0x4] sm:$0xf]
    %v138 = vld [vmem:[%s2 + $0x8] sm:$0xf]
    %v139 = vld [vmem:[%s2 + $0xc] sm:$0xf]
    %v140 = vld [vmem:[%s3] sm:$0x1]
    %v142 = vperm.slane %v140, 0
    %v148 = vunpack.c.l.b16 %v136
    %v149 = vunpack.c.l.b16 %v137
    %v150 = vunpack.c.l.b16 %v138
    %v151 = vunpack.c.l.b16 %v139
    %v152 = vpack.c.b16 %v149, %v148
    %v153 = vpack.c.b16 %v151, %v150
    %vm156 = vcmask 261120
    %v158 = vsel %vm156, %v132, 0
    %v161 = vsel %vm156, %v133, 0
    %v164 = vsel %vm156, %v134, 0
    %v167 = vsel %vm156, %v135, 0
    %169 = vmatpush.bf16.msra.mxu0 0
    %170 = vmatpush.bf16.msra.mxu0 0
    %171 = vmatpush.bf16.msra.mxu0 0
    %172 = vmatpush.bf16.msra.mxu0 0
    %173 = vmatpush.bf16.msra.mxu0 0
    %174 = vmatpush.bf16.msra.mxu0 0
    %175 = vmatpush.bf16.msra.mxu0 %v153
    %176 = vmatpush.bf16.msra.mxu0 %v152
    %177 = vmatmul.bf16.gmra.mxu0 %v158
    %v178 = vpop.f32.mrf.mxu0
    %v179 = vadd.f32 %v142, %v178
    %v180 = vpop.f32.mrf.mxu0
    %v181 = vadd.f32 %v142, %v180
    %182 = vmatmul.bf16.gmra.mxu0 %v161
    %v183 = vpop.f32.mrf.mxu0
    %v184 = vadd.f32 %v142, %v183
    %v185 = vpop.f32.mrf.mxu0
    %v186 = vadd.f32 %v142, %v185
    %187 = vmatmul.bf16.gmra.mxu0 %v164
    %v188 = vpop.f32.mrf.mxu0
    %v189 = vadd.f32 %v142, %v188
    %v190 = vpop.f32.mrf.mxu0
    %v191 = vadd.f32 %v142, %v190
    %192 = vmatmul.bf16.gmra.mxu0 %v167
    %v193 = vpop.f32.mrf.mxu0
    %v194 = vadd.f32 %v142, %v193
    %v195 = vpop.f32.mrf.mxu0
    %v196 = vadd.f32 %v142, %v195
    %197 = vdwg.mxu0
    %v198 = vld [vmem:[%s4] sm:$0xf]
    %v199 = vld [vmem:[%s4 + $0x4] sm:$0xf]
    %v200 = vld [vmem:[%s4 + $0x8] sm:$0xf]
    %v201 = vld [vmem:[%s4 + $0xc] sm:$0xf]
    %v202 = vld [vmem:[%s5] sm:$0x1]
    %v204 = vperm.slane %v202, 0
    %v210 = vunpack.c.l.b16 %v198
    %v211 = vunpack.c.l.b16 %v199
    %v212 = vunpack.c.l.b16 %v200
    %v213 = vunpack.c.l.b16 %v201
    %v214 = vpack.c.b16 %v211, %v210
    %v215 = vpack.c.b16 %v213, %v212
    %218 = vmatpush.bf16.msra.mxu0 0
    %219 = vmatpush.bf16.msra.mxu0 0
    %220 = vmatpush.bf16.msra.mxu0 0
    %221 = vmatpush.bf16.msra.mxu0 0
    %222 = vmatpush.bf16.msra.mxu0 0
    %223 = vmatpush.bf16.msra.mxu0 0
    %224 = vmatpush.bf16.msra.mxu0 %v215
    %225 = vmatpush.bf16.msra.mxu0 %v214
    %226 = vmatmul.bf16.gmra.mxu0 %v158
    %v227 = vpop.f32.mrf.mxu0
    %v228 = vadd.f32 %v204, %v227
    %v229 = vpop.f32.mrf.mxu0
    %v230 = vadd.f32 %v204, %v229
    %231 = vmatmul.bf16.gmra.mxu0 %v161
    %v232 = vpop.f32.mrf.mxu0
    %v233 = vadd.f32 %v204, %v232
    %v234 = vpop.f32.mrf.mxu0
    %v235 = vadd.f32 %v204, %v234
    %236 = vmatmul.bf16.gmra.mxu0 %v164
    %v237 = vpop.f32.mrf.mxu0
    %v238 = vadd.f32 %v204, %v237
    %v239 = vpop.f32.mrf.mxu0
    %v240 = vadd.f32 %v204, %v239
    %241 = vmatmul.bf16.gmra.mxu0 %v167
    %v242 = vpop.f32.mrf.mxu0
    %v243 = vadd.f32 %v204, %v242
    %v244 = vpop.f32.mrf.mxu0
    %v245 = vadd.f32 %v204, %v244
    %246 = vdwg.mxu0
    %v247 = vld [vmem:[%s6] sm:$0xf]
    %v248 = vld [vmem:[%s6 + $0x4] sm:$0xf]
    %v249 = vld [vmem:[%s6 + $0x8] sm:$0xf]
    %v250 = vld [vmem:[%s6 + $0xc] sm:$0xf]
    %v251 = vld [vmem:[%s7] sm:$0x1]
    %v253 = vperm.slane %v251, 0
    %v259 = vunpack.c.l.b16 %v247
    %v260 = vunpack.c.l.b16 %v248
    %v261 = vunpack.c.l.b16 %v249
    %v262 = vunpack.c.l.b16 %v250
    %v263 = vpack.c.b16 %v260, %v259
    %v264 = vpack.c.b16 %v262, %v261
    %267 = vmatpush.bf16.msra.mxu0 0
    %268 = vmatpush.bf16.msra.mxu0 0
    %269 = vmatpush.bf16.msra.mxu0 0
    %270 = vmatpush.bf16.msra.mxu0 0
    %271 = vmatpush.bf16.msra.mxu0 0
    %272 = vmatpush.bf16.msra.mxu0 0
    %273 = vmatpush.bf16.msra.mxu0 %v264
    %274 = vmatpush.bf16.msra.mxu0 %v263
    %275 = vmatmul.bf16.gmra.mxu0 %v158
    %v276 = vpop.f32.mrf.mxu0
    %v277 = vadd.f32 %v253, %v276
    %v278 = vpop.f32.mrf.mxu0
    %v279 = vadd.f32 %v253, %v278
    %280 = vmatmul.bf16.gmra.mxu0 %v161
    %v281 = vpop.f32.mrf.mxu0
    %v282 = vadd.f32 %v253, %v281
    %v283 = vpop.f32.mrf.mxu0
    %v284 = vadd.f32 %v253, %v283
    %285 = vmatmul.bf16.gmra.mxu0 %v164
    %v286 = vpop.f32.mrf.mxu0
    %v287 = vadd.f32 %v253, %v286
    %v288 = vpop.f32.mrf.mxu0
    %v289 = vadd.f32 %v253, %v288
    %290 = vmatmul.bf16.gmra.mxu0 %v167
    %v291 = vpop.f32.mrf.mxu0
    %v292 = vadd.f32 %v253, %v291
    %v293 = vpop.f32.mrf.mxu0
    %v294 = vadd.f32 %v253, %v293
    %295 = vdwg.mxu0
    %v296 = vmul.f32 %v179, 0.35355338
    %v297 = vmul.f32 %v181, 0.35355338
    %v298 = vmul.f32 %v184, 0.35355338
    %v299 = vmul.f32 %v186, 0.35355338
    %v300 = vmul.f32 %v189, 0.35355338
    %v301 = vmul.f32 %v191, 0.35355338
    %v302 = vmul.f32 %v194, 0.35355338
    %v303 = vmul.f32 %v196, 0.35355338
    %v304 = vpack.c.bf16 %v296, %v296
    %v305 = vpack.c.bf16 %v297, %v297
    %v306 = vpack.c.bf16 %v298, %v298
    %v307 = vpack.c.bf16 %v299, %v299
    %v308 = vpack.c.bf16 %v300, %v300
    %v309 = vpack.c.bf16 %v301, %v301
    %v310 = vpack.c.bf16 %v302, %v302
    %v311 = vpack.c.bf16 %v303, %v303
    %v312 = vpack.c.bf16 %v228, %v228
    %v313 = vpack.c.bf16 %v230, %v230
    %v314 = vpack.c.bf16 %v233, %v233
    %v315 = vpack.c.bf16 %v235, %v235
    %v316 = vpack.c.bf16 %v238, %v238
    %v317 = vpack.c.bf16 %v240, %v240
    %v318 = vpack.c.bf16 %v243, %v243
    %v319 = vpack.c.bf16 %v245, %v245
    %v320 = vpack.c.bf16 %v277, %v277
    %v321 = vpack.c.bf16 %v279, %v279
    %v322 = vpack.c.bf16 %v282, %v282
    %v323 = vpack.c.bf16 %v284, %v284
    %v324 = vpack.c.bf16 %v287, %v287
    %v325 = vpack.c.bf16 %v289, %v289
    %v326 = vpack.c.bf16 %v292, %v292
    %v327 = vpack.c.bf16 %v294, %v294
    %v328 = vld [vmem:[#allocation5] sm:$0x1]
    %v329 = vld [vmem:[#allocation5 + $0x1] sm:$0x1]
    %v330 = vld [vmem:[#allocation5 + $0x2] sm:$0x1]
    %v331 = vld [vmem:[#allocation5 + $0x3] sm:$0x1]
    %v332 = vld [vmem:[#allocation5 + $0x4] sm:$0x1]
    %v333 = vld [vmem:[#allocation5 + $0x5] sm:$0x1]
    %v334 = vld [vmem:[#allocation5 + $0x6] sm:$0x1]
    %v335 = vld [vmem:[#allocation5 + $0x7] sm:$0x1]
    %v344 = vperm.slane %v328, 0
    %v345 = vperm.slane %v329, 0
    %v346 = vperm.slane %v330, 0
    %v347 = vperm.slane %v331, 0
    %v348 = vperm.slane %v332, 0
    %v349 = vperm.slane %v333, 0
    %v350 = vperm.slane %v334, 0
    %v351 = vperm.slane %v335, 0
    %v360 = vld [vmem:[%s9] sm:$0x1]
    %v362 = vperm.slane %v360, 0
    %v364 = vadd.f32 %v362, 0.0
    %vm365 = vcmask 64512
    %v367 = vsel %vm365, %v304, 0
    %v370 = vsel %vm365, %v312, 0
    %372 = vmatpush.bf16.xpose.msra.mxu0 0
    %373 = vmatpush.bf16.xpose.msra.mxu0 0
    %374 = vmatpush.bf16.xpose.msra.mxu0 0
    %375 = vmatpush.bf16.xpose.msra.mxu0 0
    %376 = vmatpush.bf16.xpose.msra.mxu0 0
    %377 = vmatpush.bf16.xpose.msra.mxu0 0
    %378 = vmatpush.bf16.xpose.msra.mxu0 0
    %379 = vmatpush.bf16.xpose.msra.mxu0 %v370
    %380 = vmatmul.bf16.gmra.mxu0 %v367
    %v381 = vpop.f32.mrf.mxu0
    %v382 = vadd.f32 %v344, %v381
    %v383 = vpop.f32.mrf.mxu0
    %384 = vdwg.mxu0
    %v386 = vsel %vm365, %v305, 0
    %v389 = vsel %vm365, %v313, 0
    %391 = vmatpush.bf16.xpose.msra.mxu0 0
    %392 = vmatpush.bf16.xpose.msra.mxu0 0
    %393 = vmatpush.bf16.xpose.msra.mxu0 0
    %394 = vmatpush.bf16.xpose.msra.mxu0 0
    %395 = vmatpush.bf16.xpose.msra.mxu0 0
    %396 = vmatpush.bf16.xpose.msra.mxu0 0
    %397 = vmatpush.bf16.xpose.msra.mxu0 0
    %398 = vmatpush.bf16.xpose.msra.mxu0 %v389
    %399 = vmatmul.bf16.gmra.mxu0 %v386
    %v400 = vpop.f32.mrf.mxu0
    %v401 = vadd.f32 %v345, %v400
    %v402 = vpop.f32.mrf.mxu0
    %403 = vdwg.mxu0
    %v405 = vsel %vm365, %v306, 0
    %v408 = vsel %vm365, %v314, 0
    %410 = vmatpush.bf16.xpose.msra.mxu0 0
    %411 = vmatpush.bf16.xpose.msra.mxu0 0
    %412 = vmatpush.bf16.xpose.msra.mxu0 0
    %413 = vmatpush.bf16.xpose.msra.mxu0 0
    %414 = vmatpush.bf16.xpose.msra.mxu0 0
    %415 = vmatpush.bf16.xpose.msra.mxu0 0
    %416 = vmatpush.bf16.xpose.msra.mxu0 0
    %417 = vmatpush.bf16.xpose.msra.mxu0 %v408
    %418 = vmatmul.bf16.gmra.mxu0 %v405
    %v419 = vpop.f32.mrf.mxu0
    %v420 = vadd.f32 %v346, %v419
    %v421 = vpop.f32.mrf.mxu0
    %422 = vdwg.mxu0
    %v424 = vsel %vm365, %v307, 0
    %v427 = vsel %vm365, %v315, 0
    %429 = vmatpush.bf16.xpose.msra.mxu0 0
    %430 = vmatpush.bf16.xpose.msra.mxu0 0
    %431 = vmatpush.bf16.xpose.msra.mxu0 0
    %432 = vmatpush.bf16.xpose.msra.mxu0 0
    %433 = vmatpush.bf16.xpose.msra.mxu0 0
    %434 = vmatpush.bf16.xpose.msra.mxu0 0
    %435 = vmatpush.bf16.xpose.msra.mxu0 0
    %436 = vmatpush.bf16.xpose.msra.mxu0 %v427
    %437 = vmatmul.bf16.gmra.mxu0 %v424
    %v438 = vpop.f32.mrf.mxu0
    %v439 = vadd.f32 %v347, %v438
    %v440 = vpop.f32.mrf.mxu0
    %441 = vdwg.mxu0
    %v443 = vsel %vm365, %v308, 0
    %v446 = vsel %vm365, %v316, 0
    %448 = vmatpush.bf16.xpose.msra.mxu0 0
    %449 = vmatpush.bf16.xpose.msra.mxu0 0
    %450 = vmatpush.bf16.xpose.msra.mxu0 0
    %451 = vmatpush.bf16.xpose.msra.mxu0 0
    %452 = vmatpush.bf16.xpose.msra.mxu0 0
    %453 = vmatpush.bf16.xpose.msra.mxu0 0
    %454 = vmatpush.bf16.xpose.msra.mxu0 0
    %455 = vmatpush.bf16.xpose.msra.mxu0 %v446
    %456 = vmatmul.bf16.gmra.mxu0 %v443
    %v457 = vpop.f32.mrf.mxu0
    %v458 = vadd.f32 %v348, %v457
    %v459 = vpop.f32.mrf.mxu0
    %460 = vdwg.mxu0
    %v462 = vsel %vm365, %v309, 0
    %v465 = vsel %vm365, %v317, 0
    %467 = vmatpush.bf16.xpose.msra.mxu0 0
    %468 = vmatpush.bf16.xpose.msra.mxu0 0
    %469 = vmatpush.bf16.xpose.msra.mxu0 0
    %470 = vmatpush.bf16.xpose.msra.mxu0 0
    %471 = vmatpush.bf16.xpose.msra.mxu0 0
    %472 = vmatpush.bf16.xpose.msra.mxu0 0
    %473 = vmatpush.bf16.xpose.msra.mxu0 0
    %474 = vmatpush.bf16.xpose.msra.mxu0 %v465
    %475 = vmatmul.bf16.gmra.mxu0 %v462
    %v476 = vpop.f32.mrf.mxu0
    %v477 = vadd.f32 %v349, %v476
    %v478 = vpop.f32.mrf.mxu0
    %479 = vdwg.mxu0
    %v481 = vsel %vm365, %v310, 0
    %v484 = vsel %vm365, %v318, 0
    %486 = vmatpush.bf16.xpose.msra.mxu0 0
    %487 = vmatpush.bf16.xpose.msra.mxu0 0
    %488 = vmatpush.bf16.xpose.msra.mxu0 0
    %489 = vmatpush.bf16.xpose.msra.mxu0 0
    %490 = vmatpush.bf16.xpose.msra.mxu0 0
    %491 = vmatpush.bf16.xpose.msra.mxu0 0
    %492 = vmatpush.bf16.xpose.msra.mxu0 0
    %493 = vmatpush.bf16.xpose.msra.mxu0 %v484
    %494 = vmatmul.bf16.gmra.mxu0 %v481
    %v495 = vpop.f32.mrf.mxu0
    %v496 = vadd.f32 %v350, %v495
    %v497 = vpop.f32.mrf.mxu0
    %498 = vdwg.mxu0
    %v500 = vsel %vm365, %v311, 0
    %v503 = vsel %vm365, %v319, 0
    %505 = vmatpush.bf16.xpose.msra.mxu0 0
    %506 = vmatpush.bf16.xpose.msra.mxu0 0
    %507 = vmatpush.bf16.xpose.msra.mxu0 0
    %508 = vmatpush.bf16.xpose.msra.mxu0 0
    %509 = vmatpush.bf16.xpose.msra.mxu0 0
    %510 = vmatpush.bf16.xpose.msra.mxu0 0
    %511 = vmatpush.bf16.xpose.msra.mxu0 0
    %512 = vmatpush.bf16.xpose.msra.mxu0 %v503
    %513 = vmatmul.bf16.gmra.mxu0 %v500
    %v514 = vpop.f32.mrf.mxu0
    %v515 = vadd.f32 %v351, %v514
    %v516 = vpop.f32.mrf.mxu0
    %517 = vdwg.mxu0
    %v518 = vsel %vm365, %v382, -inf
    %519 = vmax.xlane.f32.xlu0 %v518
    %v520 = vpop.xlane.xlu0 %519
    %v521 = vsel %vm365, %v401, -inf
    %522 = vmax.xlane.f32.xlu0 %v521
    %v523 = vpop.xlane.xlu0 %522
    %v524 = vsel %vm365, %v420, -inf
    %525 = vmax.xlane.f32.xlu0 %v524
    %v526 = vpop.xlane.xlu0 %525
    %v527 = vsel %vm365, %v439, -inf
    %528 = vmax.xlane.f32.xlu0 %v527
    %v529 = vpop.xlane.xlu0 %528
    %v530 = vsel %vm365, %v458, -inf
    %531 = vmax.xlane.f32.xlu0 %v530
    %v532 = vpop.xlane.xlu0 %531
    %v533 = vsel %vm365, %v477, -inf
    %534 = vmax.xlane.f32.xlu0 %v533
    %v535 = vpop.xlane.xlu0 %534
    %v536 = vsel %vm365, %v496, -inf
    %537 = vmax.xlane.f32.xlu0 %v536
    %v538 = vpop.xlane.xlu0 %537
    %v539 = vsel %vm365, %v515, -inf
    %540 = vmax.xlane.f32.xlu0 %v539
    %v541 = vpop.xlane.xlu0 %540
    %v542 = vsub.f32 %v382, %v520
    %v543 = vsub.f32 %v401, %v523
    %v544 = vsub.f32 %v420, %v526
    %v545 = vsub.f32 %v439, %v529
    %v546 = vsub.f32 %v458, %v532
    %v547 = vsub.f32 %v477, %v535
    %v548 = vsub.f32 %v496, %v538
    %v549 = vsub.f32 %v515, %v541
    %v550 = vmul.f32 %v542, 1.442695
    %v551 = vpow.pop %v550
    %v552 = vmul.f32 %v543, 1.442695
    %v553 = vpow.pop %v552
    %v554 = vmul.f32 %v544, 1.442695
    %v555 = vpow.pop %v554
    %v556 = vmul.f32 %v545, 1.442695
    %v557 = vpow.pop %v556
    %v558 = vmul.f32 %v546, 1.442695
    %v559 = vpow.pop %v558
    %v560 = vmul.f32 %v547, 1.442695
    %v561 = vpow.pop %v560
    %v562 = vmul.f32 %v548, 1.442695
    %v563 = vpow.pop %v562
    %v564 = vmul.f32 %v549, 1.442695
    %v565 = vpow.pop %v564
    %v566 = vsel %vm365, %v551, 0.0
    %567 = vadd.xlane.f32.xlu0 %v566
    %v568 = vpop.xlane.xlu0 %567
    %v569 = vsel %vm365, %v553, 0.0
    %570 = vadd.xlane.f32.xlu0 %v569
    %v571 = vpop.xlane.xlu0 %570
    %v572 = vsel %vm365, %v555, 0.0
    %573 = vadd.xlane.f32.xlu0 %v572
    %v574 = vpop.xlane.xlu0 %573
    %v575 = vsel %vm365, %v557, 0.0
    %576 = vadd.xlane.f32.xlu0 %v575
    %v577 = vpop.xlane.xlu0 %576
    %v578 = vsel %vm365, %v559, 0.0
    %579 = vadd.xlane.f32.xlu0 %v578
    %v580 = vpop.xlane.xlu0 %579
    %v581 = vsel %vm365, %v561, 0.0
    %582 = vadd.xlane.f32.xlu0 %v581
    %v583 = vpop.xlane.xlu0 %582
    %v584 = vsel %vm365, %v563, 0.0
    %585 = vadd.xlane.f32.xlu0 %v584
    %v586 = vpop.xlane.xlu0 %585
    %v587 = vsel %vm365, %v565, 0.0
    %588 = vadd.xlane.f32.xlu0 %v587
    %v589 = vpop.xlane.xlu0 %588
    %v590 = vrcp.pop %v568
    %v591 = vrcp.pop %v571
    %v592 = vrcp.pop %v574
    %v593 = vrcp.pop %v577
    %v594 = vrcp.pop %v580
    %v595 = vrcp.pop %v583
    %v596 = vrcp.pop %v586
    %v597 = vrcp.pop %v589
    %v598 = vmul.f32 %v551, %v590
    %v599 = vmul.f32 %v553, %v591
    %v600 = vmul.f32 %v555, %v592
    %v601 = vmul.f32 %v557, %v593
    %v602 = vmul.f32 %v559, %v594
    %v603 = vmul.f32 %v561, %v595
    %v604 = vmul.f32 %v563, %v596
    %v605 = vmul.f32 %v565, %v597
    %v606 = vpack.c.bf16 %v598, %v598
    %v607 = vpack.c.bf16 %v599, %v599
    %v608 = vpack.c.bf16 %v600, %v600
    %v609 = vpack.c.bf16 %v601, %v601
    %v610 = vpack.c.bf16 %v602, %v602
    %v611 = vpack.c.bf16 %v603, %v603
    %v612 = vpack.c.bf16 %v604, %v604
    %v613 = vpack.c.bf16 %v605, %v605
    %v615 = vsel %vm365, %v606, 0
    %vm617 = vcmask 1043456
    %v619 = vsel %vm617, %v320, 0
    %621 = vmatpush.bf16.msra.mxu0 0
    %622 = vmatpush.bf16.msra.mxu0 0
    %623 = vmatpush.bf16.msra.mxu0 0
    %624 = vmatpush.bf16.msra.mxu0 0
    %625 = vmatpush.bf16.msra.mxu0 0
    %626 = vmatpush.bf16.msra.mxu0 0
    %627 = vmatpush.bf16.msra.mxu0 0
    %628 = vmatpush.bf16.msra.mxu0 %v619
    %629 = vmatmul.bf16.gmra.mxu0 %v615
    %v630 = vpop.f32.mrf.mxu0
    %v631 = vadd.f32 0.0, %v630
    %v632 = vpop.f32.mrf.mxu0
    %633 = vdwg.mxu0
    %v635 = vsel %vm365, %v607, 0
    %v638 = vsel %vm617, %v321, 0
    %640 = vmatpush.bf16.msra.mxu0 0
    %641 = vmatpush.bf16.msra.mxu0 0
    %642 = vmatpush.bf16.msra.mxu0 0
    %643 = vmatpush.bf16.msra.mxu0 0
    %644 = vmatpush.bf16.msra.mxu0 0
    %645 = vmatpush.bf16.msra.mxu0 0
    %646 = vmatpush.bf16.msra.mxu0 0
    %647 = vmatpush.bf16.msra.mxu0 %v638
    %648 = vmatmul.bf16.gmra.mxu0 %v635
    %v649 = vpop.f32.mrf.mxu0
    %v650 = vadd.f32 0.0, %v649
    %v651 = vpop.f32.mrf.mxu0
    %652 = vdwg.mxu0
    %v654 = vsel %vm365, %v608, 0
    %v657 = vsel %vm617, %v322, 0
    %659 = vmatpush.bf16.msra.mxu0 0
    %660 = vmatpush.bf16.msra.mxu0 0
    %661 = vmatpush.bf16.msra.mxu0 0
    %662 = vmatpush.bf16.msra.mxu0 0
    %663 = vmatpush.bf16.msra.mxu0 0
    %664 = vmatpush.bf16.msra.mxu0 0
    %665 = vmatpush.bf16.msra.mxu0 0
    %666 = vmatpush.bf16.msra.mxu0 %v657
    %667 = vmatmul.bf16.gmra.mxu0 %v654
    %v668 = vpop.f32.mrf.mxu0
    %v669 = vadd.f32 0.0, %v668
    %v670 = vpop.f32.mrf.mxu0
    %671 = vdwg.mxu0
    %v673 = vsel %vm365, %v609, 0
    %v676 = vsel %vm617, %v323, 0
    %678 = vmatpush.bf16.msra.mxu0 0
    %679 = vmatpush.bf16.msra.mxu0 0
    %680 = vmatpush.bf16.msra.mxu0 0
    %681 = vmatpush.bf16.msra.mxu0 0
    %682 = vmatpush.bf16.msra.mxu0 0
    %683 = vmatpush.bf16.msra.mxu0 0
    %684 = vmatpush.bf16.msra.mxu0 0
    %685 = vmatpush.bf16.msra.mxu0 %v676
    %686 = vmatmul.bf16.gmra.mxu0 %v673
    %v687 = vpop.f32.mrf.mxu0
    %v688 = vadd.f32 0.0, %v687
    %v689 = vpop.f32.mrf.mxu0
    %690 = vdwg.mxu0
    %v692 = vsel %vm365, %v610, 0
    %v695 = vsel %vm617, %v324, 0
    %697 = vmatpush.bf16.msra.mxu0 0
    %698 = vmatpush.bf16.msra.mxu0 0
    %699 = vmatpush.bf16.msra.mxu0 0
    %700 = vmatpush.bf16.msra.mxu0 0
    %701 = vmatpush.bf16.msra.mxu0 0
    %702 = vmatpush.bf16.msra.mxu0 0
    %703 = vmatpush.bf16.msra.mxu0 0
    %704 = vmatpush.bf16.msra.mxu0 %v695
    %705 = vmatmul.bf16.gmra.mxu0 %v692
    %v706 = vpop.f32.mrf.mxu0
    %v707 = vadd.f32 0.0, %v706
    %v708 = vpop.f32.mrf.mxu0
    %709 = vdwg.mxu0
    %v711 = vsel %vm365, %v611, 0
    %v714 = vsel %vm617, %v325, 0
    %716 = vmatpush.bf16.msra.mxu0 0
    %717 = vmatpush.bf16.msra.mxu0 0
    %718 = vmatpush.bf16.msra.mxu0 0
    %719 = vmatpush.bf16.msra.mxu0 0
    %720 = vmatpush.bf16.msra.mxu0 0
    %721 = vmatpush.bf16.msra.mxu0 0
    %722 = vmatpush.bf16.msra.mxu0 0
    %723 = vmatpush.bf16.msra.mxu0 %v714
    %724 = vmatmul.bf16.gmra.mxu0 %v711
    %v725 = vpop.f32.mrf.mxu0
    %v726 = vadd.f32 0.0, %v725
    %v727 = vpop.f32.mrf.mxu0
    %728 = vdwg.mxu0
    %v730 = vsel %vm365, %v612, 0
    %v733 = vsel %vm617, %v326, 0
    %735 = vmatpush.bf16.msra.mxu0 0
    %736 = vmatpush.bf16.msra.mxu0 0
    %737 = vmatpush.bf16.msra.mxu0 0
    %738 = vmatpush.bf16.msra.mxu0 0
    %739 = vmatpush.bf16.msra.mxu0 0
    %740 = vmatpush.bf16.msra.mxu0 0
    %741 = vmatpush.bf16.msra.mxu0 0
    %742 = vmatpush.bf16.msra.mxu0 %v733
    %743 = vmatmul.bf16.gmra.mxu0 %v730
    %v744 = vpop.f32.mrf.mxu0
    %v745 = vadd.f32 0.0, %v744
    %v746 = vpop.f32.mrf.mxu0
    %747 = vdwg.mxu0
    %v749 = vsel %vm365, %v613, 0
    %v752 = vsel %vm617, %v327, 0
    %754 = vmatpush.bf16.msra.mxu0 0
    %755 = vmatpush.bf16.msra.mxu0 0
    %756 = vmatpush.bf16.msra.mxu0 0
    %757 = vmatpush.bf16.msra.mxu0 0
    %758 = vmatpush.bf16.msra.mxu0 0
    %759 = vmatpush.bf16.msra.mxu0 0
    %760 = vmatpush.bf16.msra.mxu0 0
    %761 = vmatpush.bf16.msra.mxu0 %v752
    %762 = vmatmul.bf16.gmra.mxu0 %v749
    %v763 = vpop.f32.mrf.mxu0
    %v764 = vadd.f32 0.0, %v763
    %v765 = vpop.f32.mrf.mxu0
    %766 = vdwg.mxu0
    %v767 = vpack.c.bf16 %v650, %v631
    %v768 = vpack.c.bf16 %v688, %v669
    %v769 = vpack.c.bf16 %v726, %v707
    %v770 = vpack.c.bf16 %v764, %v745
    %v771 = vld [vmem:[#allocation7] sm:$0xf]
    %v773 = vsel %vm365, %v767, 0
    %v776 = vsel %vm365, %v768, 0
    %v779 = vsel %vm365, %v769, 0
    %v782 = vsel %vm365, %v770, 0
    %v785 = vsel %vm617, %v771, 0
    %787 = vmatpush.bf16.msra.mxu0 0
    %788 = vmatpush.bf16.msra.mxu0 0
    %789 = vmatpush.bf16.msra.mxu0 0
    %790 = vmatpush.bf16.msra.mxu0 0
    %791 = vmatpush.bf16.msra.mxu0 0
    %792 = vmatpush.bf16.msra.mxu0 0
    %793 = vmatpush.bf16.msra.mxu0 0
    %794 = vmatpush.bf16.msra.mxu0 %v785
    %795 = vmatmul.bf16.gmra.mxu0 %v773
    %v796 = vpop.f32.mrf.mxu0
    %v797 = vadd.f32 0.0, %v796
    %v798 = vpop.f32.mrf.mxu0
    %v799 = vadd.f32 0.0, %v798
    %800 = vmatmul.bf16.gmra.mxu0 %v776
    %v801 = vpop.f32.mrf.mxu0
    %v802 = vadd.f32 0.0, %v801
    %v803 = vpop.f32.mrf.mxu0
    %v804 = vadd.f32 0.0, %v803
    %805 = vmatmul.bf16.gmra.mxu0 %v779
    %v806 = vpop.f32.mrf.mxu0
    %v807 = vadd.f32 0.0, %v806
    %v808 = vpop.f32.mrf.mxu0
    %v809 = vadd.f32 0.0, %v808
    %810 = vmatmul.bf16.gmra.mxu0 %v782
    %v811 = vpop.f32.mrf.mxu0
    %v812 = vadd.f32 0.0, %v811
    %v813 = vpop.f32.mrf.mxu0
    %v814 = vadd.f32 0.0, %v813
    %815 = vdwg.mxu0
    %v816 = vadd.f32 %v364, %v797
    %v817 = vadd.f32 %v364, %v799
    %v818 = vadd.f32 %v364, %v802
    %v819 = vadd.f32 %v364, %v804
    %v820 = vadd.f32 %v364, %v807
    %v821 = vadd.f32 %v364, %v809
    %v822 = vadd.f32 %v364, %v812
    %v823 = vadd.f32 %v364, %v814
    %v825 = vunpack.c.l.b16 %v304
    %v826 = vpack.c.b16 %v825, %v825
    %827 = vrot.lane.b32.xlu0 %v826, 120
    %v828 = vpop.permute.xlu0 %827
    %v830 = vunpack.c.l.b16 %v312
    %v831 = vpack.c.b16 %v830, %v830
    %832 = vrot.lane.b32.xlu0 %v831, 120
    %v833 = vpop.permute.xlu0 %832
    %v835 = vsel %vm365, %v828, 0
    %v838 = vsel %vm365, %v833, 0
    %840 = vmatpush.bf16.xpose.msra.mxu0 0
    %841 = vmatpush.bf16.xpose.msra.mxu0 0
    %842 = vmatpush.bf16.xpose.msra.mxu0 0
    %843 = vmatpush.bf16.xpose.msra.mxu0 0
    %844 = vmatpush.bf16.xpose.msra.mxu0 0
    %845 = vmatpush.bf16.xpose.msra.mxu0 0
    %846 = vmatpush.bf16.xpose.msra.mxu0 0
    %847 = vmatpush.bf16.xpose.msra.mxu0 %v838
    %848 = vmatmul.bf16.gmra.mxu0 %v835
    %v849 = vpop.f32.mrf.mxu0
    %v850 = vadd.f32 %v344, %v849
    %v851 = vpop.f32.mrf.mxu0
    %852 = vdwg.mxu0
    %v854 = vunpack.c.l.b16 %v305
    %v855 = vpack.c.b16 %v854, %v854
    %856 = vrot.lane.b32.xlu0 %v855, 120
    %v857 = vpop.permute.xlu0 %856
    %v859 = vunpack.c.l.b16 %v313
    %v860 = vpack.c.b16 %v859, %v859
    %861 = vrot.lane.b32.xlu0 %v860, 120
    %v862 = vpop.permute.xlu0 %861
    %v864 = vsel %vm365, %v857, 0
    %v867 = vsel %vm365, %v862, 0
    %869 = vmatpush.bf16.xpose.msra.mxu0 0
    %870 = vmatpush.bf16.xpose.msra.mxu0 0
    %871 = vmatpush.bf16.xpose.msra.mxu0 0
    %872 = vmatpush.bf16.xpose.msra.mxu0 0
    %873 = vmatpush.bf16.xpose.msra.mxu0 0
    %874 = vmatpush.bf16.xpose.msra.mxu0 0
    %875 = vmatpush.bf16.xpose.msra.mxu0 0
    %876 = vmatpush.bf16.xpose.msra.mxu0 %v867
    %877 = vmatmul.bf16.gmra.mxu0 %v864
    %v878 = vpop.f32.mrf.mxu0
    %v879 = vadd.f32 %v345, %v878
    %v880 = vpop.f32.mrf.mxu0
    %881 = vdwg.mxu0
    %v883 = vunpack.c.l.b16 %v306
    %v884 = vpack.c.b16 %v883, %v883
    %885 = vrot.lane.b32.xlu0 %v884, 120
    %v886 = vpop.permute.xlu0 %885
    %v888 = vunpack.c.l.b16 %v314
    %v889 = vpack.c.b16 %v888, %v888
    %890 = vrot.lane.b32.xlu0 %v889, 120
    %v891 = vpop.permute.xlu0 %890
    %v893 = vsel %vm365, %v886, 0
    %v896 = vsel %vm365, %v891, 0
    %898 = vmatpush.bf16.xpose.msra.mxu0 0
    %899 = vmatpush.bf16.xpose.msra.mxu0 0
    %900 = vmatpush.bf16.xpose.msra.mxu0 0
    %901 = vmatpush.bf16.xpose.msra.mxu0 0
    %902 = vmatpush.bf16.xpose.msra.mxu0 0
    %903 = vmatpush.bf16.xpose.msra.mxu0 0
    %904 = vmatpush.bf16.xpose.msra.mxu0 0
    %905 = vmatpush.bf16.xpose.msra.mxu0 %v896
    %906 = vmatmul.bf16.gmra.mxu0 %v893
    %v907 = vpop.f32.mrf.mxu0
    %v908 = vadd.f32 %v346, %v907
    %v909 = vpop.f32.mrf.mxu0
    %910 = vdwg.mxu0
    %v912 = vunpack.c.l.b16 %v307
    %v913 = vpack.c.b16 %v912, %v912
    %914 = vrot.lane.b32.xlu0 %v913, 120
    %v915 = vpop.permute.xlu0 %914
    %v917 = vunpack.c.l.b16 %v315
    %v918 = vpack.c.b16 %v917, %v917
    %919 = vrot.lane.b32.xlu0 %v918, 120
    %v920 = vpop.permute.xlu0 %919
    %v922 = vsel %vm365, %v915, 0
    %v925 = vsel %vm365, %v920, 0
    %927 = vmatpush.bf16.xpose.msra.mxu0 0
    %928 = vmatpush.bf16.xpose.msra.mxu0 0
    %929 = vmatpush.bf16.xpose.msra.mxu0 0
    %930 = vmatpush.bf16.xpose.msra.mxu0 0
    %931 = vmatpush.bf16.xpose.msra.mxu0 0
    %932 = vmatpush.bf16.xpose.msra.mxu0 0
    %933 = vmatpush.bf16.xpose.msra.mxu0 0
    %934 = vmatpush.bf16.xpose.msra.mxu0 %v925
    %935 = vmatmul.bf16.gmra.mxu0 %v922
    %v936 = vpop.f32.mrf.mxu0
    %v937 = vadd.f32 %v347, %v936
    %v938 = vpop.f32.mrf.mxu0
    %939 = vdwg.mxu0
    %v941 = vunpack.c.l.b16 %v308
    %v942 = vpack.c.b16 %v941, %v941
    %943 = vrot.lane.b32.xlu0 %v942, 120
    %v944 = vpop.permute.xlu0 %943
    %v946 = vunpack.c.l.b16 %v316
    %v947 = vpack.c.b16 %v946, %v946
    %948 = vrot.lane.b32.xlu0 %v947, 120
    %v949 = vpop.permute.xlu0 %948
    %v951 = vsel %vm365, %v944, 0
    %v954 = vsel %vm365, %v949, 0
    %956 = vmatpush.bf16.xpose.msra.mxu0 0
    %957 = vmatpush.bf16.xpose.msra.mxu0 0
    %958 = vmatpush.bf16.xpose.msra.mxu0 0
    %959 = vmatpush.bf16.xpose.msra.mxu0 0
    %960 = vmatpush.bf16.xpose.msra.mxu0 0
    %961 = vmatpush.bf16.xpose.msra.mxu0 0
    %962 = vmatpush.bf16.xpose.msra.mxu0 0
    %963 = vmatpush.bf16.xpose.msra.mxu0 %v954
    %964 = vmatmul.bf16.gmra.mxu0 %v951
    %v965 = vpop.f32.mrf.mxu0
    %v966 = vadd.f32 %v348, %v965
    %v967 = vpop.f32.mrf.mxu0
    %968 = vdwg.mxu0
    %v970 = vunpack.c.l.b16 %v309
    %v971 = vpack.c.b16 %v970, %v970
    %972 = vrot.lane.b32.xlu0 %v971, 120
    %v973 = vpop.permute.xlu0 %972
    %v975 = vunpack.c.l.b16 %v317
    %v976 = vpack.c.b16 %v975, %v975
    %977 = vrot.lane.b32.xlu0 %v976, 120
    %v978 = vpop.permute.xlu0 %977
    %v980 = vsel %vm365, %v973, 0
    %v983 = vsel %vm365, %v978, 0
    %985 = vmatpush.bf16.xpose.msra.mxu0 0
    %986 = vmatpush.bf16.xpose.msra.mxu0 0
    %987 = vmatpush.bf16.xpose.msra.mxu0 0
    %988 = vmatpush.bf16.xpose.msra.mxu0 0
    %989 = vmatpush.bf16.xpose.msra.mxu0 0
    %990 = vmatpush.bf16.xpose.msra.mxu0 0
    %991 = vmatpush.bf16.xpose.msra.mxu0 0
    %992 = vmatpush.bf16.xpose.msra.mxu0 %v983
    %993 = vmatmul.bf16.gmra.mxu0 %v980
    %v994 = vpop.f32.mrf.mxu0
    %v995 = vadd.f32 %v349, %v994
    %v996 = vpop.f32.mrf.mxu0
    %997 = vdwg.mxu0
    %v999 = vunpack.c.l.b16 %v310
    %v1000 = vpack.c.b16 %v999, %v999
    %1001 = vrot.lane.b32.xlu0 %v1000, 120
    %v1002 = vpop.permute.xlu0 %1001
    %v1004 = vunpack.c.l.b16 %v318
    %v1005 = vpack.c.b16 %v1004, %v1004
    %1006 = vrot.lane.b32.xlu0 %v1005, 120
    %v1007 = vpop.permute.xlu0 %1006
    %v1009 = vsel %vm365, %v1002, 0
    %v1012 = vsel %vm365, %v1007, 0
    %1014 = vmatpush.bf16.xpose.msra.mxu0 0
    %1015 = vmatpush.bf16.xpose.msra.mxu0 0
    %1016 = vmatpush.bf16.xpose.msra.mxu0 0
    %1017 = vmatpush.bf16.xpose.msra.mxu0 0
    %1018 = vmatpush.bf16.xpose.msra.mxu0 0
    %1019 = vmatpush.bf16.xpose.msra.mxu0 0
    %1020 = vmatpush.bf16.xpose.msra.mxu0 0
    %1021 = vmatpush.bf16.xpose.msra.mxu0 %v1012
    %1022 = vmatmul.bf16.gmra.mxu0 %v1009
    %v1023 = vpop.f32.mrf.mxu0
    %v1024 = vadd.f32 %v350, %v1023
    %v1025 = vpop.f32.mrf.mxu0
    %1026 = vdwg.mxu0
    %v1028 = vunpack.c.l.b16 %v311
    %v1029 = vpack.c.b16 %v1028, %v1028
    %1030 = vrot.lane.b32.xlu0 %v1029, 120
    %v1031 = vpop.permute.xlu0 %1030
    %v1033 = vunpack.c.l.b16 %v319
    %v1034 = vpack.c.b16 %v1033, %v1033
    %1035 = vrot.lane.b32.xlu0 %v1034, 120
    %v1036 = vpop.permute.xlu0 %1035
    %v1038 = vsel %vm365, %v1031, 0
    %v1041 = vsel %vm365, %v1036, 0
    %1043 = vmatpush.bf16.xpose.msra.mxu0 0
    %1044 = vmatpush.bf16.xpose.msra.mxu0 0
    %1045 = vmatpush.bf16.xpose.msra.mxu0 0
    %1046 = vmatpush.bf16.xpose.msra.mxu0 0
    %1047 = vmatpush.bf16.xpose.msra.mxu0 0
    %1048 = vmatpush.bf16.xpose.msra.mxu0 0
    %1049 = vmatpush.bf16.xpose.msra.mxu0 0
    %1050 = vmatpush.bf16.xpose.msra.mxu0 %v1041
    %1051 = vmatmul.bf16.gmra.mxu0 %v1038
    %v1052 = vpop.f32.mrf.mxu0
    %v1053 = vadd.f32 %v351, %v1052
    %v1054 = vpop.f32.mrf.mxu0
    %1055 = vdwg.mxu0
    %v1056 = vsel %vm365, %v850, -inf
    %1057 = vmax.xlane.f32.xlu0 %v1056
    %v1058 = vpop.xlane.xlu0 %1057
    %v1059 = vsel %vm365, %v879, -inf
    %1060 = vmax.xlane.f32.xlu0 %v1059
    %v1061 = vpop.xlane.xlu0 %1060
    %v1062 = vsel %vm365, %v908, -inf
    %1063 = vmax.xlane.f32.xlu0 %v1062
    %v1064 = vpop.xlane.xlu0 %1063
    %v1065 = vsel %vm365, %v937, -inf
    %1066 = vmax.xlane.f32.xlu0 %v1065
    %v1067 = vpop.xlane.xlu0 %1066
    %v1068 = vsel %vm365, %v966, -inf
    %1069 = vmax.xlane.f32.xlu0 %v1068
    %v1070 = vpop.xlane.xlu0 %1069
    %v1071 = vsel %vm365, %v995, -inf
    %1072 = vmax.xlane.f32.xlu0 %v1071
    %v1073 = vpop.xlane.xlu0 %1072
    %v1074 = vsel %vm365, %v1024, -inf
    %1075 = vmax.xlane.f32.xlu0 %v1074
    %v1076 = vpop.xlane.xlu0 %1075
    %v1077 = vsel %vm365, %v1053, -inf
    %1078 = vmax.xlane.f32.xlu0 %v1077
    %v1079 = vpop.xlane.xlu0 %1078
    %v1080 = vsub.f32 %v850, %v1058
    %v1081 = vsub.f32 %v879, %v1061
    %v1082 = vsub.f32 %v908, %v1064
    %v1083 = vsub.f32 %v937, %v1067
    %v1084 = vsub.f32 %v966, %v1070
    %v1085 = vsub.f32 %v995, %v1073
    %v1086 = vsub.f32 %v1024, %v1076
    %v1087 = vsub.f32 %v1053, %v1079
    %v1088 = vmul.f32 %v1080, 1.442695
    %v1089 = vpow.pop %v1088
    %v1090 = vmul.f32 %v1081, 1.442695
    %v1091 = vpow.pop %v1090
    %v1092 = vmul.f32 %v1082, 1.442695
    %v1093 = vpow.pop %v1092
    %v1094 = vmul.f32 %v1083, 1.442695
    %v1095 = vpow.pop %v1094
    %v1096 = vmul.f32 %v1084, 1.442695
    %v1097 = vpow.pop %v1096
    %v1098 = vmul.f32 %v1085, 1.442695
    %v1099 = vpow.pop %v1098
    %v1100 = vmul.f32 %v1086, 1.442695
    %v1101 = vpow.pop %v1100
    %v1102 = vmul.f32 %v1087, 1.442695
    %v1103 = vpow.pop %v1102
    %v1104 = vsel %vm365, %v1089, 0.0
    %1105 = vadd.xlane.f32.xlu0 %v1104
    %v1106 = vpop.xlane.xlu0 %1105
    %v1107 = vsel %vm365, %v1091, 0.0
    %1108 = vadd.xlane.f32.xlu0 %v1107
    %v1109 = vpop.xlane.xlu0 %1108
    %v1110 = vsel %vm365, %v1093, 0.0
    %1111 = vadd.xlane.f32.xlu0 %v1110
    %v1112 = vpop.xlane.xlu0 %1111
    %v1113 = vsel %vm365, %v1095, 0.0
    %1114 = vadd.xlane.f32.xlu0 %v1113
    %v1115 = vpop.xlane.xlu0 %1114
    %v1116 = vsel %vm365, %v1097, 0.0
    %1117 = vadd.xlane.f32.xlu0 %v1116
    %v1118 = vpop.xlane.xlu0 %1117
    %v1119 = vsel %vm365, %v1099, 0.0
    %1120 = vadd.xlane.f32.xlu0 %v1119
    %v1121 = vpop.xlane.xlu0 %1120
    %v1122 = vsel %vm365, %v1101, 0.0
    %1123 = vadd.xlane.f32.xlu0 %v1122
    %v1124 = vpop.xlane.xlu0 %1123
    %v1125 = vsel %vm365, %v1103, 0.0
    %1126 = vadd.xlane.f32.xlu0 %v1125
    %v1127 = vpop.xlane.xlu0 %1126
    %v1128 = vrcp.pop %v1106
    %v1129 = vrcp.pop %v1109
    %v1130 = vrcp.pop %v1112
    %v1131 = vrcp.pop %v1115
    %v1132 = vrcp.pop %v1118
    %v1133 = vrcp.pop %v1121
    %v1134 = vrcp.pop %v1124
    %v1135 = vrcp.pop %v1127
    %v1136 = vmul.f32 %v1089, %v1128
    %v1137 = vmul.f32 %v1091, %v1129
    %v1138 = vmul.f32 %v1093, %v1130
    %v1139 = vmul.f32 %v1095, %v1131
    %v1140 = vmul.f32 %v1097, %v1132
    %v1141 = vmul.f32 %v1099, %v1133
    %v1142 = vmul.f32 %v1101, %v1134
    %v1143 = vmul.f32 %v1103, %v1135
    %v1144 = vpack.c.bf16 %v1136, %v1136
    %v1145 = vpack.c.bf16 %v1137, %v1137
    %v1146 = vpack.c.bf16 %v1138, %v1138
    %v1147 = vpack.c.bf16 %v1139, %v1139
    %v1148 = vpack.c.bf16 %v1140, %v1140
    %v1149 = vpack.c.bf16 %v1141, %v1141
    %v1150 = vpack.c.bf16 %v1142, %v1142
    %v1151 = vpack.c.bf16 %v1143, %v1143
    %v1153 = vunpack.c.l.b16 %v320
    %v1154 = vpack.c.b16 %v1153, %v1153
    %1155 = vrot.lane.b32.xlu0 %v1154, 120
    %v1156 = vpop.permute.xlu0 %1155
    %v1158 = vsel %vm365, %v1144, 0
    %v1161 = vsel %vm617, %v1156, 0
    %1163 = vmatpush.bf16.msra.mxu0 0
    %1164 = vmatpush.bf16.msra.mxu0 0
    %1165 = vmatpush.bf16.msra.mxu0 0
    %1166 = vmatpush.bf16.msra.mxu0 0
    %1167 = vmatpush.bf16.msra.mxu0 0
    %1168 = vmatpush.bf16.msra.mxu0 0
    %1169 = vmatpush.bf16.msra.mxu0 0
    %1170 = vmatpush.bf16.msra.mxu0 %v1161
    %1171 = vmatmul.bf16.gmra.mxu0 %v1158
    %v1172 = vpop.f32.mrf.mxu0
    %v1173 = vadd.f32 0.0, %v1172
    %v1174 = vpop.f32.mrf.mxu0
    %1175 = vdwg.mxu0
    %v1177 = vunpack.c.l.b16 %v321
    %v1178 = vpack.c.b16 %v1177, %v1177
    %1179 = vrot.lane.b32.xlu0 %v1178, 120
    %v1180 = vpop.permute.xlu0 %1179
    %v1182 = vsel %vm365, %v1145, 0
    %v1185 = vsel %vm617, %v1180, 0
    %1187 = vmatpush.bf16.msra.mxu0 0
    %1188 = vmatpush.bf16.msra.mxu0 0
    %1189 = vmatpush.bf16.msra.mxu0 0
    %1190 = vmatpush.bf16.msra.mxu0 0
    %1191 = vmatpush.bf16.msra.mxu0 0
    %1192 = vmatpush.bf16.msra.mxu0 0
    %1193 = vmatpush.bf16.msra.mxu0 0
    %1194 = vmatpush.bf16.msra.mxu0 %v1185
    %1195 = vmatmul.bf16.gmra.mxu0 %v1182
    %v1196 = vpop.f32.mrf.mxu0
    %v1197 = vadd.f32 0.0, %v1196
    %v1198 = vpop.f32.mrf.mxu0
    %1199 = vdwg.mxu0
    %v1201 = vunpack.c.l.b16 %v322
    %v1202 = vpack.c.b16 %v1201, %v1201
    %1203 = vrot.lane.b32.xlu0 %v1202, 120
    %v1204 = vpop.permute.xlu0 %1203
    %v1206 = vsel %vm365, %v1146, 0
    %v1209 = vsel %vm617, %v1204, 0
    %1211 = vmatpush.bf16.msra.mxu0 0
    %1212 = vmatpush.bf16.msra.mxu0 0
    %1213 = vmatpush.bf16.msra.mxu0 0
    %1214 = vmatpush.bf16.msra.mxu0 0
    %1215 = vmatpush.bf16.msra.mxu0 0
    %1216 = vmatpush.bf16.msra.mxu0 0
    %1217 = vmatpush.bf16.msra.mxu0 0
    %1218 = vmatpush.bf16.msra.mxu0 %v1209
    %1219 = vmatmul.bf16.gmra.mxu0 %v1206
    %v1220 = vpop.f32.mrf.mxu0
    %v1221 = vadd.f32 0.0, %v1220
    %v1222 = vpop.f32.mrf.mxu0
    %1223 = vdwg.mxu0
    %v1225 = vunpack.c.l.b16 %v323
    %v1226 = vpack.c.b16 %v1225, %v1225
    %1227 = vrot.lane.b32.xlu0 %v1226, 120
    %v1228 = vpop.permute.xlu0 %1227
    %v1230 = vsel %vm365, %v1147, 0
    %v1233 = vsel %vm617, %v1228, 0
    %1235 = vmatpush.bf16.msra.mxu0 0
    %1236 = vmatpush.bf16.msra.mxu0 0
    %1237 = vmatpush.bf16.msra.mxu0 0
    %1238 = vmatpush.bf16.msra.mxu0 0
    %1239 = vmatpush.bf16.msra.mxu0 0
    %1240 = vmatpush.bf16.msra.mxu0 0
    %1241 = vmatpush.bf16.msra.mxu0 0
    %1242 = vmatpush.bf16.msra.mxu0 %v1233
    %1243 = vmatmul.bf16.gmra.mxu0 %v1230
    %v1244 = vpop.f32.mrf.mxu0
    %v1245 = vadd.f32 0.0, %v1244
    %v1246 = vpop.f32.mrf.mxu0
    %1247 = vdwg.mxu0
    %v1249 = vunpack.c.l.b16 %v324
    %v1250 = vpack.c.b16 %v1249, %v1249
    %1251 = vrot.lane.b32.xlu0 %v1250, 120
    %v1252 = vpop.permute.xlu0 %1251
    %v1254 = vsel %vm365, %v1148, 0
    %v1257 = vsel %vm617, %v1252, 0
    %1259 = vmatpush.bf16.msra.mxu0 0
    %1260 = vmatpush.bf16.msra.mxu0 0
    %1261 = vmatpush.bf16.msra.mxu0 0
    %1262 = vmatpush.bf16.msra.mxu0 0
    %1263 = vmatpush.bf16.msra.mxu0 0
    %1264 = vmatpush.bf16.msra.mxu0 0
    %1265 = vmatpush.bf16.msra.mxu0 0
    %1266 = vmatpush.bf16.msra.mxu0 %v1257
    %1267 = vmatmul.bf16.gmra.mxu0 %v1254
    %v1268 = vpop.f32.mrf.mxu0
    %v1269 = vadd.f32 0.0, %v1268
    %v1270 = vpop.f32.mrf.mxu0
    %1271 = vdwg.mxu0
    %v1273 = vunpack.c.l.b16 %v325
    %v1274 = vpack.c.b16 %v1273, %v1273
    %1275 = vrot.lane.b32.xlu0 %v1274, 120
    %v1276 = vpop.permute.xlu0 %1275
    %v1278 = vsel %vm365, %v1149, 0
    %v1281 = vsel %vm617, %v1276, 0
    %1283 = vmatpush.bf16.msra.mxu0 0
    %1284 = vmatpush.bf16.msra.mxu0 0
    %1285 = vmatpush.bf16.msra.mxu0 0
    %1286 = vmatpush.bf16.msra.mxu0 0
    %1287 = vmatpush.bf16.msra.mxu0 0
    %1288 = vmatpush.bf16.msra.mxu0 0
    %1289 = vmatpush.bf16.msra.mxu0 0
    %1290 = vmatpush.bf16.msra.mxu0 %v1281
    %1291 = vmatmul.bf16.gmra.mxu0 %v1278
    %v1292 = vpop.f32.mrf.mxu0
    %v1293 = vadd.f32 0.0, %v1292
    %v1294 = vpop.f32.mrf.mxu0
    %1295 = vdwg.mxu0
    %v1297 = vunpack.c.l.b16 %v326
    %v1298 = vpack.c.b16 %v1297, %v1297
    %1299 = vrot.lane.b32.xlu0 %v1298, 120
    %v1300 = vpop.permute.xlu0 %1299
    %v1302 = vsel %vm365, %v1150, 0
    %v1305 = vsel %vm617, %v1300, 0
    %1307 = vmatpush.bf16.msra.mxu0 0
    %1308 = vmatpush.bf16.msra.mxu0 0
    %1309 = vmatpush.bf16.msra.mxu0 0
    %1310 = vmatpush.bf16.msra.mxu0 0
    %1311 = vmatpush.bf16.msra.mxu0 0
    %1312 = vmatpush.bf16.msra.mxu0 0
    %1313 = vmatpush.bf16.msra.mxu0 0
    %1314 = vmatpush.bf16.msra.mxu0 %v1305
    %1315 = vmatmul.bf16.gmra.mxu0 %v1302
    %v1316 = vpop.f32.mrf.mxu0
    %v1317 = vadd.f32 0.0, %v1316
    %v1318 = vpop.f32.mrf.mxu0
    %1319 = vdwg.mxu0
    %v1321 = vunpack.c.l.b16 %v327
    %v1322 = vpack.c.b16 %v1321, %v1321
    %1323 = vrot.lane.b32.xlu0 %v1322, 120
    %v1324 = vpop.permute.xlu0 %1323
    %v1326 = vsel %vm365, %v1151, 0
    %v1329 = vsel %vm617, %v1324, 0
    %1331 = vmatpush.bf16.msra.mxu0 0
    %1332 = vmatpush.bf16.msra.mxu0 0
    %1333 = vmatpush.bf16.msra.mxu0 0
    %1334 = vmatpush.bf16.msra.mxu0 0
    %1335 = vmatpush.bf16.msra.mxu0 0
    %1336 = vmatpush.bf16.msra.mxu0 0
    %1337 = vmatpush.bf16.msra.mxu0 0
    %1338 = vmatpush.bf16.msra.mxu0 %v1329
    %1339 = vmatmul.bf16.gmra.mxu0 %v1326
    %v1340 = vpop.f32.mrf.mxu0
    %v1341 = vadd.f32 0.0, %v1340
    %v1342 = vpop.f32.mrf.mxu0
    %1343 = vdwg.mxu0
    %v1344 = vpack.c.bf16 %v1197, %v1173
    %v1345 = vpack.c.bf16 %v1245, %v1221
    %v1346 = vpack.c.bf16 %v1293, %v1269
    %v1347 = vpack.c.bf16 %v1341, %v1317
    %s1348 = scalar_lea.vmem [#allocation7], 4
    %v1349 = vld [vmem:[%s1348] sm:$0xf]
    %v1351 = vsel %vm365, %v1344, 0
    %v1354 = vsel %vm365, %v1345, 0
    %v1357 = vsel %vm365, %v1346, 0
    %v1360 = vsel %vm365, %v1347, 0
    %v1363 = vsel %vm617, %v1349, 0
    %1365 = vmatpush.bf16.msra.mxu0 0
    %1366 = vmatpush.bf16.msra.mxu0 0
    %1367 = vmatpush.bf16.msra.mxu0 0
    %1368 = vmatpush.bf16.msra.mxu0 0
    %1369 = vmatpush.bf16.msra.mxu0 0
    %1370 = vmatpush.bf16.msra.mxu0 0
    %1371 = vmatpush.bf16.msra.mxu0 0
    %1372 = vmatpush.bf16.msra.mxu0 %v1363
    %1373 = vmatmul.bf16.gmra.mxu0 %v1351
    %v1374 = vpop.f32.mrf.mxu0
    %v1375 = vadd.f32 0.0, %v1374
    %v1376 = vpop.f32.mrf.mxu0
    %v1377 = vadd.f32 0.0, %v1376
    %1378 = vmatmul.bf16.gmra.mxu0 %v1354
    %v1379 = vpop.f32.mrf.mxu0
    %v1380 = vadd.f32 0.0, %v1379
    %v1381 = vpop.f32.mrf.mxu0
    %v1382 = vadd.f32 0.0, %v1381
    %1383 = vmatmul.bf16.gmra.mxu0 %v1357
    %v1384 = vpop.f32.mrf.mxu0
    %v1385 = vadd.f32 0.0, %v1384
    %v1386 = vpop.f32.mrf.mxu0
    %v1387 = vadd.f32 0.0, %v1386
    %1388 = vmatmul.bf16.gmra.mxu0 %v1360
    %v1389 = vpop.f32.mrf.mxu0
    %v1390 = vadd.f32 0.0, %v1389
    %v1391 = vpop.f32.mrf.mxu0
    %v1392 = vadd.f32 0.0, %v1391
    %1393 = vdwg.mxu0
    %v1394 = vadd.f32 %v816, %v1375
    %v1395 = vadd.f32 %v817, %v1377
    %v1396 = vadd.f32 %v818, %v1380
    %v1397 = vadd.f32 %v819, %v1382
    %v1398 = vadd.f32 %v820, %v1385
    %v1399 = vadd.f32 %v821, %v1387
    %v1400 = vadd.f32 %v822, %v1390
    %v1401 = vadd.f32 %v823, %v1392
    %1402 = vrot.lane.b32.xlu0 %v826, 112
    %v1403 = vpop.permute.xlu0 %1402
    %1404 = vrot.lane.b32.xlu0 %v831, 112
    %v1405 = vpop.permute.xlu0 %1404
    %v1407 = vsel %vm365, %v1403, 0
    %v1410 = vsel %vm365, %v1405, 0
    %1412 = vmatpush.bf16.xpose.msra.mxu0 0
    %1413 = vmatpush.bf16.xpose.msra.mxu0 0
    %1414 = vmatpush.bf16.xpose.msra.mxu0 0
    %1415 = vmatpush.bf16.xpose.msra.mxu0 0
    %1416 = vmatpush.bf16.xpose.msra.mxu0 0
    %1417 = vmatpush.bf16.xpose.msra.mxu0 0
    %1418 = vmatpush.bf16.xpose.msra.mxu0 0
    %1419 = vmatpush.bf16.xpose.msra.mxu0 %v1410
    %1420 = vmatmul.bf16.gmra.mxu0 %v1407
    %v1421 = vpop.f32.mrf.mxu0
    %v1422 = vadd.f32 %v344, %v1421
    %v1423 = vpop.f32.mrf.mxu0
    %1424 = vdwg.mxu0
    %1425 = vrot.lane.b32.xlu0 %v855, 112
    %v1426 = vpop.permute.xlu0 %1425
    %1427 = vrot.lane.b32.xlu0 %v860, 112
    %v1428 = vpop.permute.xlu0 %1427
    %v1430 = vsel %vm365, %v1426, 0
    %v1433 = vsel %vm365, %v1428, 0
    %1435 = vmatpush.bf16.xpose.msra.mxu0 0
    %1436 = vmatpush.bf16.xpose.msra.mxu0 0
    %1437 = vmatpush.bf16.xpose.msra.mxu0 0
    %1438 = vmatpush.bf16.xpose.msra.mxu0 0
    %1439 = vmatpush.bf16.xpose.msra.mxu0 0
    %1440 = vmatpush.bf16.xpose.msra.mxu0 0
    %1441 = vmatpush.bf16.xpose.msra.mxu0 0
    %1442 = vmatpush.bf16.xpose.msra.mxu0 %v1433
    %1443 = vmatmul.bf16.gmra.mxu0 %v1430
    %v1444 = vpop.f32.mrf.mxu0
    %v1445 = vadd.f32 %v345, %v1444
    %v1446 = vpop.f32.mrf.mxu0
    %1447 = vdwg.mxu0
    %1448 = vrot.lane.b32.xlu0 %v884, 112
    %v1449 = vpop.permute.xlu0 %1448
    %1450 = vrot.lane.b32.xlu0 %v889, 112
    %v1451 = vpop.permute.xlu0 %1450
    %v1453 = vsel %vm365, %v1449, 0
    %v1456 = vsel %vm365, %v1451, 0
    %1458 = vmatpush.bf16.xpose.msra.mxu0 0
    %1459 = vmatpush.bf16.xpose.msra.mxu0 0
    %1460 = vmatpush.bf16.xpose.msra.mxu0 0
    %1461 = vmatpush.bf16.xpose.msra.mxu0 0
    %1462 = vmatpush.bf16.xpose.msra.mxu0 0
    %1463 = vmatpush.bf16.xpose.msra.mxu0 0
    %1464 = vmatpush.bf16.xpose.msra.mxu0 0
    %1465 = vmatpush.bf16.xpose.msra.mxu0 %v1456
    %1466 = vmatmul.bf16.gmra.mxu0 %v1453
    %v1467 = vpop.f32.mrf.mxu0
    %v1468 = vadd.f32 %v346, %v1467
    %v1469 = vpop.f32.mrf.mxu0
    %1470 = vdwg.mxu0
    %1471 = vrot.lane.b32.xlu0 %v913, 112
    %v1472 = vpop.permute.xlu0 %1471
    %1473 = vrot.lane.b32.xlu0 %v918, 112
    %v1474 = vpop.permute.xlu0 %1473
    %v1476 = vsel %vm365, %v1472, 0
    %v1479 = vsel %vm365, %v1474, 0
    %1481 = vmatpush.bf16.xpose.msra.mxu0 0
    %1482 = vmatpush.bf16.xpose.msra.mxu0 0
    %1483 = vmatpush.bf16.xpose.msra.mxu0 0
    %1484 = vmatpush.bf16.xpose.msra.mxu0 0
    %1485 = vmatpush.bf16.xpose.msra.mxu0 0
    %1486 = vmatpush.bf16.xpose.msra.mxu0 0
    %1487 = vmatpush.bf16.xpose.msra.mxu0 0
    %1488 = vmatpush.bf16.xpose.msra.mxu0 %v1479
    %1489 = vmatmul.bf16.gmra.mxu0 %v1476
    %v1490 = vpop.f32.mrf.mxu0
    %v1491 = vadd.f32 %v347, %v1490
    %v1492 = vpop.f32.mrf.mxu0
    %1493 = vdwg.mxu0
    %1494 = vrot.lane.b32.xlu0 %v942, 112
    %v1495 = vpop.permute.xlu0 %1494
    %1496 = vrot.lane.b32.xlu0 %v947, 112
    %v1497 = vpop.permute.xlu0 %1496
    %v1499 = vsel %vm365, %v1495, 0
    %v1502 = vsel %vm365, %v1497, 0
    %1504 = vmatpush.bf16.xpose.msra.mxu0 0
    %1505 = vmatpush.bf16.xpose.msra.mxu0 0
    %1506 = vmatpush.bf16.xpose.msra.mxu0 0
    %1507 = vmatpush.bf16.xpose.msra.mxu0 0
    %1508 = vmatpush.bf16.xpose.msra.mxu0 0
    %1509 = vmatpush.bf16.xpose.msra.mxu0 0
    %1510 = vmatpush.bf16.xpose.msra.mxu0 0
    %1511 = vmatpush.bf16.xpose.msra.mxu0 %v1502
    %1512 = vmatmul.bf16.gmra.mxu0 %v1499
    %v1513 = vpop.f32.mrf.mxu0
    %v1514 = vadd.f32 %v348, %v1513
    %v1515 = vpop.f32.mrf.mxu0
    %1516 = vdwg.mxu0
    %1517 = vrot.lane.b32.xlu0 %v971, 112
    %v1518 = vpop.permute.xlu0 %1517
    %1519 = vrot.lane.b32.xlu0 %v976, 112
    %v1520 = vpop.permute.xlu0 %1519
    %v1522 = vsel %vm365, %v1518, 0
    %v1525 = vsel %vm365, %v1520, 0
    %1527 = vmatpush.bf16.xpose.msra.mxu0 0
    %1528 = vmatpush.bf16.xpose.msra.mxu0 0
    %1529 = vmatpush.bf16.xpose.msra.mxu0 0
    %1530 = vmatpush.bf16.xpose.msra.mxu0 0
    %1531 = vmatpush.bf16.xpose.msra.mxu0 0
    %1532 = vmatpush.bf16.xpose.msra.mxu0 0
    %1533 = vmatpush.bf16.xpose.msra.mxu0 0
    %1534 = vmatpush.bf16.xpose.msra.mxu0 %v1525
    %1535 = vmatmul.bf16.gmra.mxu0 %v1522
    %v1536 = vpop.f32.mrf.mxu0
    %v1537 = vadd.f32 %v349, %v1536
    %v1538 = vpop.f32.mrf.mxu0
    %1539 = vdwg.mxu0
    %1540 = vrot.lane.b32.xlu0 %v1000, 112
    %v1541 = vpop.permute.xlu0 %1540
    %1542 = vrot.lane.b32.xlu0 %v1005, 112
    %v1543 = vpop.permute.xlu0 %1542
    %v1545 = vsel %vm365, %v1541, 0
    %v1548 = vsel %vm365, %v1543, 0
    %1550 = vmatpush.bf16.xpose.msra.mxu0 0
    %1551 = vmatpush.bf16.xpose.msra.mxu0 0
    %1552 = vmatpush.bf16.xpose.msra.mxu0 0
    %1553 = vmatpush.bf16.xpose.msra.mxu0 0
    %1554 = vmatpush.bf16.xpose.msra.mxu0 0
    %1555 = vmatpush.bf16.xpose.msra.mxu0 0
    %1556 = vmatpush.bf16.xpose.msra.mxu0 0
    %1557 = vmatpush.bf16.xpose.msra.mxu0 %v1548
    %1558 = vmatmul.bf16.gmra.mxu0 %v1545
    %v1559 = vpop.f32.mrf.mxu0
    %v1560 = vadd.f32 %v350, %v1559
    %v1561 = vpop.f32.mrf.mxu0
    %1562 = vdwg.mxu0
    %1563 = vrot.lane.b32.xlu0 %v1029, 112
    %v1564 = vpop.permute.xlu0 %1563
    %1565 = vrot.lane.b32.xlu0 %v1034, 112
    %v1566 = vpop.permute.xlu0 %1565
    %v1568 = vsel %vm365, %v1564, 0
    %v1571 = vsel %vm365, %v1566, 0
    %1573 = vmatpush.bf16.xpose.msra.mxu0 0
    %1574 = vmatpush.bf16.xpose.msra.mxu0 0
    %1575 = vmatpush.bf16.xpose.msra.mxu0 0
    %1576 = vmatpush.bf16.xpose.msra.mxu0 0
    %1577 = vmatpush.bf16.xpose.msra.mxu0 0
    %1578 = vmatpush.bf16.xpose.msra.mxu0 0
    %1579 = vmatpush.bf16.xpose.msra.mxu0 0
    %1580 = vmatpush.bf16.xpose.msra.mxu0 %v1571
    %1581 = vmatmul.bf16.gmra.mxu0 %v1568
    %v1582 = vpop.f32.mrf.mxu0
    %v1583 = vadd.f32 %v351, %v1582
    %v1584 = vpop.f32.mrf.mxu0
    %1585 = vdwg.mxu0
    %v1586 = vsel %vm365, %v1422, -inf
    %1587 = vmax.xlane.f32.xlu0 %v1586
    %v1588 = vpop.xlane.xlu0 %1587
    %v1589 = vsel %vm365, %v1445, -inf
    %1590 = vmax.xlane.f32.xlu0 %v1589
    %v1591 = vpop.xlane.xlu0 %1590
    %v1592 = vsel %vm365, %v1468, -inf
    %1593 = vmax.xlane.f32.xlu0 %v1592
    %v1594 = vpop.xlane.xlu0 %1593
    %v1595 = vsel %vm365, %v1491, -inf
    %1596 = vmax.xlane.f32.xlu0 %v1595
    %v1597 = vpop.xlane.xlu0 %1596
    %v1598 = vsel %vm365, %v1514, -inf
    %1599 = vmax.xlane.f32.xlu0 %v1598
    %v1600 = vpop.xlane.xlu0 %1599
    %v1601 = vsel %vm365, %v1537, -inf
    %1602 = vmax.xlane.f32.xlu0 %v1601
    %v1603 = vpop.xlane.xlu0 %1602
    %v1604 = vsel %vm365, %v1560, -inf
    %1605 = vmax.xlane.f32.xlu0 %v1604
    %v1606 = vpop.xlane.xlu0 %1605
    %v1607 = vsel %vm365, %v1583, -inf
    %1608 = vmax.xlane.f32.xlu0 %v1607
    %v1609 = vpop.xlane.xlu0 %1608
    %v1610 = vsub.f32 %v1422, %v1588
    %v1611 = vsub.f32 %v1445, %v1591
    %v1612 = vsub.f32 %v1468, %v1594
    %v1613 = vsub.f32 %v1491, %v1597
    %v1614 = vsub.f32 %v1514, %v1600
    %v1615 = vsub.f32 %v1537, %v1603
    %v1616 = vsub.f32 %v1560, %v1606
    %v1617 = vsub.f32 %v1583, %v1609
    %v1618 = vmul.f32 %v1610, 1.442695
    %v1619 = vpow.pop %v1618
    %v1620 = vmul.f32 %v1611, 1.442695
    %v1621 = vpow.pop %v1620
    %v1622 = vmul.f32 %v1612, 1.442695
    %v1623 = vpow.pop %v1622
    %v1624 = vmul.f32 %v1613, 1.442695
    %v1625 = vpow.pop %v1624
    %v1626 = vmul.f32 %v1614, 1.442695
    %v1627 = vpow.pop %v1626
    %v1628 = vmul.f32 %v1615, 1.442695
    %v1629 = vpow.pop %v1628
    %v1630 = vmul.f32 %v1616, 1.442695
    %v1631 = vpow.pop %v1630
    %v1632 = vmul.f32 %v1617, 1.442695
    %v1633 = vpow.pop %v1632
    %v1634 = vsel %vm365, %v1619, 0.0
    %1635 = vadd.xlane.f32.xlu0 %v1634
    %v1636 = vpop.xlane.xlu0 %1635
    %v1637 = vsel %vm365, %v1621, 0.0
    %1638 = vadd.xlane.f32.xlu0 %v1637
    %v1639 = vpop.xlane.xlu0 %1638
    %v1640 = vsel %vm365, %v1623, 0.0
    %1641 = vadd.xlane.f32.xlu0 %v1640
    %v1642 = vpop.xlane.xlu0 %1641
    %v1643 = vsel %vm365, %v1625, 0.0
    %1644 = vadd.xlane.f32.xlu0 %v1643
    %v1645 = vpop.xlane.xlu0 %1644
    %v1646 = vsel %vm365, %v1627, 0.0
    %1647 = vadd.xlane.f32.xlu0 %v1646
    %v1648 = vpop.xlane.xlu0 %1647
    %v1649 = vsel %vm365, %v1629, 0.0
    %1650 = vadd.xlane.f32.xlu0 %v1649
    %v1651 = vpop.xlane.xlu0 %1650
    %v1652 = vsel %vm365, %v1631, 0.0
    %1653 = vadd.xlane.f32.xlu0 %v1652
    %v1654 = vpop.xlane.xlu0 %1653
    %v1655 = vsel %vm365, %v1633, 0.0
    %1656 = vadd.xlane.f32.xlu0 %v1655
    %v1657 = vpop.xlane.xlu0 %1656
    %v1658 = vrcp.pop %v1636
    %v1659 = vrcp.pop %v1639
    %v1660 = vrcp.pop %v1642
    %v1661 = vrcp.pop %v1645
    %v1662 = vrcp.pop %v1648
    %v1663 = vrcp.pop %v1651
    %v1664 = vrcp.pop %v1654
    %v1665 = vrcp.pop %v1657
    %v1666 = vmul.f32 %v1619, %v1658
    %v1667 = vmul.f32 %v1621, %v1659
    %v1668 = vmul.f32 %v1623, %v1660
    %v1669 = vmul.f32 %v1625, %v1661
    %v1670 = vmul.f32 %v1627, %v1662
    %v1671 = vmul.f32 %v1629, %v1663
    %v1672 = vmul.f32 %v1631, %v1664
    %v1673 = vmul.f32 %v1633, %v1665
    %v1674 = vpack.c.bf16 %v1666, %v1666
    %v1675 = vpack.c.bf16 %v1667, %v1667
    %v1676 = vpack.c.bf16 %v1668, %v1668
    %v1677 = vpack.c.bf16 %v1669, %v1669
    %v1678 = vpack.c.bf16 %v1670, %v1670
    %v1679 = vpack.c.bf16 %v1671, %v1671
    %v1680 = vpack.c.bf16 %v1672, %v1672
    %v1681 = vpack.c.bf16 %v1673, %v1673
    %1682 = vrot.lane.b32.xlu0 %v1154, 112
    %v1683 = vpop.permute.xlu0 %1682
    %v1685 = vsel %vm365, %v1674, 0
    %v1688 = vsel %vm617, %v1683, 0
    %1690 = vmatpush.bf16.msra.mxu0 0
    %1691 = vmatpush.bf16.msra.mxu0 0
    %1692 = vmatpush.bf16.msra.mxu0 0
    %1693 = vmatpush.bf16.msra.mxu0 0
    %1694 = vmatpush.bf16.msra.mxu0 0
    %1695 = vmatpush.bf16.msra.mxu0 0
    %1696 = vmatpush.bf16.msra.mxu0 0
    %1697 = vmatpush.bf16.msra.mxu0 %v1688
    %1698 = vmatmul.bf16.gmra.mxu0 %v1685
    %v1699 = vpop.f32.mrf.mxu0
    %v1700 = vadd.f32 0.0, %v1699
    %v1701 = vpop.f32.mrf.mxu0
    %1702 = vdwg.mxu0
    %1703 = vrot.lane.b32.xlu0 %v1178, 112
    %v1704 = vpop.permute.xlu0 %1703
    %v1706 = vsel %vm365, %v1675, 0
    %v1709 = vsel %vm617, %v1704, 0
    %1711 = vmatpush.bf16.msra.mxu0 0
    %1712 = vmatpush.bf16.msra.mxu0 0
    %1713 = vmatpush.bf16.msra.mxu0 0
    %1714 = vmatpush.bf16.msra.mxu0 0
    %1715 = vmatpush.bf16.msra.mxu0 0
    %1716 = vmatpush.bf16.msra.mxu0 0
    %1717 = vmatpush.bf16.msra.mxu0 0
    %1718 = vmatpush.bf16.msra.mxu0 %v1709
    %1719 = vmatmul.bf16.gmra.mxu0 %v1706
    %v1720 = vpop.f32.mrf.mxu0
    %v1721 = vadd.f32 0.0, %v1720
    %v1722 = vpop.f32.mrf.mxu0
    %1723 = vdwg.mxu0
    %1724 = vrot.lane.b32.xlu0 %v1202, 112
    %v1725 = vpop.permute.xlu0 %1724
    %v1727 = vsel %vm365, %v1676, 0
    %v1730 = vsel %vm617, %v1725, 0
    %1732 = vmatpush.bf16.msra.mxu0 0
    %1733 = vmatpush.bf16.msra.mxu0 0
    %1734 = vmatpush.bf16.msra.mxu0 0
    %1735 = vmatpush.bf16.msra.mxu0 0
    %1736 = vmatpush.bf16.msra.mxu0 0
    %1737 = vmatpush.bf16.msra.mxu0 0
    %1738 = vmatpush.bf16.msra.mxu0 0
    %1739 = vmatpush.bf16.msra.mxu0 %v1730
    %1740 = vmatmul.bf16.gmra.mxu0 %v1727
    %v1741 = vpop.f32.mrf.mxu0
    %v1742 = vadd.f32 0.0, %v1741
    %v1743 = vpop.f32.mrf.mxu0
    %1744 = vdwg.mxu0
    %1745 = vrot.lane.b32.xlu0 %v1226, 112
    %v1746 = vpop.permute.xlu0 %1745
    %v1748 = vsel %vm365, %v1677, 0
    %v1751 = vsel %vm617, %v1746, 0
    %1753 = vmatpush.bf16.msra.mxu0 0
    %1754 = vmatpush.bf16.msra.mxu0 0
    %1755 = vmatpush.bf16.msra.mxu0 0
    %1756 = vmatpush.bf16.msra.mxu0 0
    %1757 = vmatpush.bf16.msra.mxu0 0
    %1758 = vmatpush.bf16.msra.mxu0 0
    %1759 = vmatpush.bf16.msra.mxu0 0
    %1760 = vmatpush.bf16.msra.mxu0 %v1751
    %1761 = vmatmul.bf16.gmra.mxu0 %v1748
    %v1762 = vpop.f32.mrf.mxu0
    %v1763 = vadd.f32 0.0, %v1762
    %v1764 = vpop.f32.mrf.mxu0
    %1765 = vdwg.mxu0
    %1766 = vrot.lane.b32.xlu0 %v1250, 112
    %v1767 = vpop.permute.xlu0 %1766
    %v1769 = vsel %vm365, %v1678, 0
    %v1772 = vsel %vm617, %v1767, 0
    %1774 = vmatpush.bf16.msra.mxu0 0
    %1775 = vmatpush.bf16.msra.mxu0 0
    %1776 = vmatpush.bf16.msra.mxu0 0
    %1777 = vmatpush.bf16.msra.mxu0 0
    %1778 = vmatpush.bf16.msra.mxu0 0
    %1779 = vmatpush.bf16.msra.mxu0 0
    %1780 = vmatpush.bf16.msra.mxu0 0
    %1781 = vmatpush.bf16.msra.mxu0 %v1772
    %1782 = vmatmul.bf16.gmra.mxu0 %v1769
    %v1783 = vpop.f32.mrf.mxu0
    %v1784 = vadd.f32 0.0, %v1783
    %v1785 = vpop.f32.mrf.mxu0
    %1786 = vdwg.mxu0
    %1787 = vrot.lane.b32.xlu0 %v1274, 112
    %v1788 = vpop.permute.xlu0 %1787
    %v1790 = vsel %vm365, %v1679, 0
    %v1793 = vsel %vm617, %v1788, 0
    %1795 = vmatpush.bf16.msra.mxu0 0
    %1796 = vmatpush.bf16.msra.mxu0 0
    %1797 = vmatpush.bf16.msra.mxu0 0
    %1798 = vmatpush.bf16.msra.mxu0 0
    %1799 = vmatpush.bf16.msra.mxu0 0
    %1800 = vmatpush.bf16.msra.mxu0 0
    %1801 = vmatpush.bf16.msra.mxu0 0
    %1802 = vmatpush.bf16.msra.mxu0 %v1793
    %1803 = vmatmul.bf16.gmra.mxu0 %v1790
    %v1804 = vpop.f32.mrf.mxu0
    %v1805 = vadd.f32 0.0, %v1804
    %v1806 = vpop.f32.mrf.mxu0
    %1807 = vdwg.mxu0
    %1808 = vrot.lane.b32.xlu0 %v1298, 112
    %v1809 = vpop.permute.xlu0 %1808
    %v1811 = vsel %vm365, %v1680, 0
    %v1814 = vsel %vm617, %v1809, 0
    %1816 = vmatpush.bf16.msra.mxu0 0
    %1817 = vmatpush.bf16.msra.mxu0 0
    %1818 = vmatpush.bf16.msra.mxu0 0
    %1819 = vmatpush.bf16.msra.mxu0 0
    %1820 = vmatpush.bf16.msra.mxu0 0
    %1821 = vmatpush.bf16.msra.mxu0 0
    %1822 = vmatpush.bf16.msra.mxu0 0
    %1823 = vmatpush.bf16.msra.mxu0 %v1814
    %1824 = vmatmul.bf16.gmra.mxu0 %v1811
    %v1825 = vpop.f32.mrf.mxu0
    %v1826 = vadd.f32 0.0, %v1825
    %v1827 = vpop.f32.mrf.mxu0
    %1828 = vdwg.mxu0
    %1829 = vrot.lane.b32.xlu0 %v1322, 112
    %v1830 = vpop.permute.xlu0 %1829
    %v1832 = vsel %vm365, %v1681, 0
    %v1835 = vsel %vm617, %v1830, 0
    %1837 = vmatpush.bf16.msra.mxu0 0
    %1838 = vmatpush.bf16.msra.mxu0 0
    %1839 = vmatpush.bf16.msra.mxu0 0
    %1840 = vmatpush.bf16.msra.mxu0 0
    %1841 = vmatpush.bf16.msra.mxu0 0
    %1842 = vmatpush.bf16.msra.mxu0 0
    %1843 = vmatpush.bf16.msra.mxu0 0
    %1844 = vmatpush.bf16.msra.mxu0 %v1835
    %1845 = vmatmul.bf16.gmra.mxu0 %v1832
    %v1846 = vpop.f32.mrf.mxu0
    %v1847 = vadd.f32 0.0, %v1846
    %v1848 = vpop.f32.mrf.mxu0
    %1849 = vdwg.mxu0
    %v1850 = vpack.c.bf16 %v1721, %v1700
    %v1851 = vpack.c.bf16 %v1763, %v1742
    %v1852 = vpack.c.bf16 %v1805, %v1784
    %v1853 = vpack.c.bf16 %v1847, %v1826
    %s1854 = scalar_lea.vmem [#allocation7], 8
    %v1855 = vld [vmem:[%s1854] sm:$0xf]
    %v1857 = vsel %vm365, %v1850, 0
    %v1860 = vsel %vm365, %v1851, 0
    %v1863 = vsel %vm365, %v1852, 0
    %v1866 = vsel %vm365, %v1853, 0
    %v1869 = vsel %vm617, %v1855, 0
    %1871 = vmatpush.bf16.msra.mxu0 0
    %1872 = vmatpush.bf16.msra.mxu0 0
    %1873 = vmatpush.bf16.msra.mxu0 0
    %1874 = vmatpush.bf16.msra.mxu0 0
    %1875 = vmatpush.bf16.msra.mxu0 0
    %1876 = vmatpush.bf16.msra.mxu0 0
    %1877 = vmatpush.bf16.msra.mxu0 0
    %1878 = vmatpush.bf16.msra.mxu0 %v1869
    %1879 = vmatmul.bf16.gmra.mxu0 %v1857
    %v1880 = vpop.f32.mrf.mxu0
    %v1881 = vadd.f32 0.0, %v1880
    %v1882 = vpop.f32.mrf.mxu0
    %v1883 = vadd.f32 0.0, %v1882
    %1884 = vmatmul.bf16.gmra.mxu0 %v1860
    %v1885 = vpop.f32.mrf.mxu0
    %v1886 = vadd.f32 0.0, %v1885
    %v1887 = vpop.f32.mrf.mxu0
    %v1888 = vadd.f32 0.0, %v1887
    %1889 = vmatmul.bf16.gmra.mxu0 %v1863
    %v1890 = vpop.f32.mrf.mxu0
    %v1891 = vadd.f32 0.0, %v1890
    %v1892 = vpop.f32.mrf.mxu0
    %v1893 = vadd.f32 0.0, %v1892
    %1894 = vmatmul.bf16.gmra.mxu0 %v1866
    %v1895 = vpop.f32.mrf.mxu0
    %v1896 = vadd.f32 0.0, %v1895
    %v1897 = vpop.f32.mrf.mxu0
    %v1898 = vadd.f32 0.0, %v1897
    %1899 = vdwg.mxu0
    %v1900 = vadd.f32 %v1394, %v1881
    %v1901 = vadd.f32 %v1395, %v1883
    %v1902 = vadd.f32 %v1396, %v1886
    %v1903 = vadd.f32 %v1397, %v1888
    %v1904 = vadd.f32 %v1398, %v1891
    %v1905 = vadd.f32 %v1399, %v1893
    %v1906 = vadd.f32 %v1400, %v1896
    %v1907 = vadd.f32 %v1401, %v1898
    %1908 = vrot.lane.b32.xlu0 %v826, 104
    %v1909 = vpop.permute.xlu0 %1908
    %1910 = vrot.lane.b32.xlu0 %v831, 104
    %v1911 = vpop.permute.xlu0 %1910
    %v1913 = vsel %vm365, %v1909, 0
    %v1916 = vsel %vm365, %v1911, 0
    %1918 = vmatpush.bf16.xpose.msra.mxu0 0
    %1919 = vmatpush.bf16.xpose.msra.mxu0 0
    %1920 = vmatpush.bf16.xpose.msra.mxu0 0
    %1921 = vmatpush.bf16.xpose.msra.mxu0 0
    %1922 = vmatpush.bf16.xpose.msra.mxu0 0
    %1923 = vmatpush.bf16.xpose.msra.mxu0 0
    %1924 = vmatpush.bf16.xpose.msra.mxu0 0
    %1925 = vmatpush.bf16.xpose.msra.mxu0 %v1916
    %1926 = vmatmul.bf16.gmra.mxu0 %v1913
    %v1927 = vpop.f32.mrf.mxu0
    %v1928 = vadd.f32 %v344, %v1927
    %v1929 = vpop.f32.mrf.mxu0
    %1930 = vdwg.mxu0
    %1931 = vrot.lane.b32.xlu0 %v855, 104
    %v1932 = vpop.permute.xlu0 %1931
    %1933 = vrot.lane.b32.xlu0 %v860, 104
    %v1934 = vpop.permute.xlu0 %1933
    %v1936 = vsel %vm365, %v1932, 0
    %v1939 = vsel %vm365, %v1934, 0
    %1941 = vmatpush.bf16.xpose.msra.mxu0 0
    %1942 = vmatpush.bf16.xpose.msra.mxu0 0
    %1943 = vmatpush.bf16.xpose.msra.mxu0 0
    %1944 = vmatpush.bf16.xpose.msra.mxu0 0
    %1945 = vmatpush.bf16.xpose.msra.mxu0 0
    %1946 = vmatpush.bf16.xpose.msra.mxu0 0
    %1947 = vmatpush.bf16.xpose.msra.mxu0 0
    %1948 = vmatpush.bf16.xpose.msra.mxu0 %v1939
    %1949 = vmatmul.bf16.gmra.mxu0 %v1936
    %v1950 = vpop.f32.mrf.mxu0
    %v1951 = vadd.f32 %v345, %v1950
    %v1952 = vpop.f32.mrf.mxu0
    %1953 = vdwg.mxu0
    %1954 = vrot.lane.b32.xlu0 %v884, 104
    %v1955 = vpop.permute.xlu0 %1954
    %1956 = vrot.lane.b32.xlu0 %v889, 104
    %v1957 = vpop.permute.xlu0 %1956
    %v1959 = vsel %vm365, %v1955, 0
    %v1962 = vsel %vm365, %v1957, 0
    %1964 = vmatpush.bf16.xpose.msra.mxu0 0
    %1965 = vmatpush.bf16.xpose.msra.mxu0 0
    %1966 = vmatpush.bf16.xpose.msra.mxu0 0
    %1967 = vmatpush.bf16.xpose.msra.mxu0 0
    %1968 = vmatpush.bf16.xpose.msra.mxu0 0
    %1969 = vmatpush.bf16.xpose.msra.mxu0 0
    %1970 = vmatpush.bf16.xpose.msra.mxu0 0
    %1971 = vmatpush.bf16.xpose.msra.mxu0 %v1962
    %1972 = vmatmul.bf16.gmra.mxu0 %v1959
    %v1973 = vpop.f32.mrf.mxu0
    %v1974 = vadd.f32 %v346, %v1973
    %v1975 = vpop.f32.mrf.mxu0
    %1976 = vdwg.mxu0
    %1977 = vrot.lane.b32.xlu0 %v913, 104
    %v1978 = vpop.permute.xlu0 %1977
    %1979 = vrot.lane.b32.xlu0 %v918, 104
    %v1980 = vpop.permute.xlu0 %1979
    %v1982 = vsel %vm365, %v1978, 0
    %v1985 = vsel %vm365, %v1980, 0
    %1987 = vmatpush.bf16.xpose.msra.mxu0 0
    %1988 = vmatpush.bf16.xpose.msra.mxu0 0
    %1989 = vmatpush.bf16.xpose.msra.mxu0 0
    %1990 = vmatpush.bf16.xpose.msra.mxu0 0
    %1991 = vmatpush.bf16.xpose.msra.mxu0 0
    %1992 = vmatpush.bf16.xpose.msra.mxu0 0
    %1993 = vmatpush.bf16.xpose.msra.mxu0 0
    %1994 = vmatpush.bf16.xpose.msra.mxu0 %v1985
    %1995 = vmatmul.bf16.gmra.mxu0 %v1982
    %v1996 = vpop.f32.mrf.mxu0
    %v1997 = vadd.f32 %v347, %v1996
    %v1998 = vpop.f32.mrf.mxu0
    %1999 = vdwg.mxu0
    %2000 = vrot.lane.b32.xlu0 %v942, 104
    %v2001 = vpop.permute.xlu0 %2000
    %2002 = vrot.lane.b32.xlu0 %v947, 104
    %v2003 = vpop.permute.xlu0 %2002
    %v2005 = vsel %vm365, %v2001, 0
    %v2008 = vsel %vm365, %v2003, 0
    %2010 = vmatpush.bf16.xpose.msra.mxu0 0
    %2011 = vmatpush.bf16.xpose.msra.mxu0 0
    %2012 = vmatpush.bf16.xpose.msra.mxu0 0
    %2013 = vmatpush.bf16.xpose.msra.mxu0 0
    %2014 = vmatpush.bf16.xpose.msra.mxu0 0
    %2015 = vmatpush.bf16.xpose.msra.mxu0 0
    %2016 = vmatpush.bf16.xpose.msra.mxu0 0
    %2017 = vmatpush.bf16.xpose.msra.mxu0 %v2008
    %2018 = vmatmul.bf16.gmra.mxu0 %v2005
    %v2019 = vpop.f32.mrf.mxu0
    %v2020 = vadd.f32 %v348, %v2019
    %v2021 = vpop.f32.mrf.mxu0
    %2022 = vdwg.mxu0
    %2023 = vrot.lane.b32.xlu0 %v971, 104
    %v2024 = vpop.permute.xlu0 %2023
    %2025 = vrot.lane.b32.xlu0 %v976, 104
    %v2026 = vpop.permute.xlu0 %2025
    %v2028 = vsel %vm365, %v2024, 0
    %v2031 = vsel %vm365, %v2026, 0
    %2033 = vmatpush.bf16.xpose.msra.mxu0 0
    %2034 = vmatpush.bf16.xpose.msra.mxu0 0
    %2035 = vmatpush.bf16.xpose.msra.mxu0 0
    %2036 = vmatpush.bf16.xpose.msra.mxu0 0
    %2037 = vmatpush.bf16.xpose.msra.mxu0 0
    %2038 = vmatpush.bf16.xpose.msra.mxu0 0
    %2039 = vmatpush.bf16.xpose.msra.mxu0 0
    %2040 = vmatpush.bf16.xpose.msra.mxu0 %v2031
    %2041 = vmatmul.bf16.gmra.mxu0 %v2028
    %v2042 = vpop.f32.mrf.mxu0
    %v2043 = vadd.f32 %v349, %v2042
    %v2044 = vpop.f32.mrf.mxu0
    %2045 = vdwg.mxu0
    %2046 = vrot.lane.b32.xlu0 %v1000, 104
    %v2047 = vpop.permute.xlu0 %2046
    %2048 = vrot.lane.b32.xlu0 %v1005, 104
    %v2049 = vpop.permute.xlu0 %2048
    %v2051 = vsel %vm365, %v2047, 0
    %v2054 = vsel %vm365, %v2049, 0
    %2056 = vmatpush.bf16.xpose.msra.mxu0 0
    %2057 = vmatpush.bf16.xpose.msra.mxu0 0
    %2058 = vmatpush.bf16.xpose.msra.mxu0 0
    %2059 = vmatpush.bf16.xpose.msra.mxu0 0
    %2060 = vmatpush.bf16.xpose.msra.mxu0 0
    %2061 = vmatpush.bf16.xpose.msra.mxu0 0
    %2062 = vmatpush.bf16.xpose.msra.mxu0 0
    %2063 = vmatpush.bf16.xpose.msra.mxu0 %v2054
    %2064 = vmatmul.bf16.gmra.mxu0 %v2051
    %v2065 = vpop.f32.mrf.mxu0
    %v2066 = vadd.f32 %v350, %v2065
    %v2067 = vpop.f32.mrf.mxu0
    %2068 = vdwg.mxu0
    %2069 = vrot.lane.b32.xlu0 %v1029, 104
    %v2070 = vpop.permute.xlu0 %2069
    %2071 = vrot.lane.b32.xlu0 %v1034, 104
    %v2072 = vpop.permute.xlu0 %2071
    %v2074 = vsel %vm365, %v2070, 0
    %v2077 = vsel %vm365, %v2072, 0
    %2079 = vmatpush.bf16.xpose.msra.mxu0 0
    %2080 = vmatpush.bf16.xpose.msra.mxu0 0
    %2081 = vmatpush.bf16.xpose.msra.mxu0 0
    %2082 = vmatpush.bf16.xpose.msra.mxu0 0
    %2083 = vmatpush.bf16.xpose.msra.mxu0 0
    %2084 = vmatpush.bf16.xpose.msra.mxu0 0
    %2085 = vmatpush.bf16.xpose.msra.mxu0 0
    %2086 = vmatpush.bf16.xpose.msra.mxu0 %v2077
    %2087 = vmatmul.bf16.gmra.mxu0 %v2074
    %v2088 = vpop.f32.mrf.mxu0
    %v2089 = vadd.f32 %v351, %v2088
    %v2090 = vpop.f32.mrf.mxu0
    %2091 = vdwg.mxu0
    %v2092 = vsel %vm365, %v1928, -inf
    %2093 = vmax.xlane.f32.xlu0 %v2092
    %v2094 = vpop.xlane.xlu0 %2093
    %v2095 = vsel %vm365, %v1951, -inf
    %2096 = vmax.xlane.f32.xlu0 %v2095
    %v2097 = vpop.xlane.xlu0 %2096
    %v2098 = vsel %vm365, %v1974, -inf
    %2099 = vmax.xlane.f32.xlu0 %v2098
    %v2100 = vpop.xlane.xlu0 %2099
    %v2101 = vsel %vm365, %v1997, -inf
    %2102 = vmax.xlane.f32.xlu0 %v2101
    %v2103 = vpop.xlane.xlu0 %2102
    %v2104 = vsel %vm365, %v2020, -inf
    %2105 = vmax.xlane.f32.xlu0 %v2104
    %v2106 = vpop.xlane.xlu0 %2105
    %v2107 = vsel %vm365, %v2043, -inf
    %2108 = vmax.xlane.f32.xlu0 %v2107
    %v2109 = vpop.xlane.xlu0 %2108
    %v2110 = vsel %vm365, %v2066, -inf
    %2111 = vmax.xlane.f32.xlu0 %v2110
    %v2112 = vpop.xlane.xlu0 %2111
    %v2113 = vsel %vm365, %v2089, -inf
    %2114 = vmax.xlane.f32.xlu0 %v2113
    %v2115 = vpop.xlane.xlu0 %2114
    %v2116 = vsub.f32 %v1928, %v2094
    %v2117 = vsub.f32 %v1951, %v2097
    %v2118 = vsub.f32 %v1974, %v2100
    %v2119 = vsub.f32 %v1997, %v2103
    %v2120 = vsub.f32 %v2020, %v2106
    %v2121 = vsub.f32 %v2043, %v2109
    %v2122 = vsub.f32 %v2066, %v2112
    %v2123 = vsub.f32 %v2089, %v2115
    %v2124 = vmul.f32 %v2116, 1.442695
    %v2125 = vpow.pop %v2124
    %v2126 = vmul.f32 %v2117, 1.442695
    %v2127 = vpow.pop %v2126
    %v2128 = vmul.f32 %v2118, 1.442695
    %v2129 = vpow.pop %v2128
    %v2130 = vmul.f32 %v2119, 1.442695
    %v2131 = vpow.pop %v2130
    %v2132 = vmul.f32 %v2120, 1.442695
    %v2133 = vpow.pop %v2132
    %v2134 = vmul.f32 %v2121, 1.442695
    %v2135 = vpow.pop %v2134
    %v2136 = vmul.f32 %v2122, 1.442695
    %v2137 = vpow.pop %v2136
    %v2138 = vmul.f32 %v2123, 1.442695
    %v2139 = vpow.pop %v2138
    %v2140 = vsel %vm365, %v2125, 0.0
    %2141 = vadd.xlane.f32.xlu0 %v2140
    %v2142 = vpop.xlane.xlu0 %2141
    %v2143 = vsel %vm365, %v2127, 0.0
    %2144 = vadd.xlane.f32.xlu0 %v2143
    %v2145 = vpop.xlane.xlu0 %2144
    %v2146 = vsel %vm365, %v2129, 0.0
    %2147 = vadd.xlane.f32.xlu0 %v2146
    %v2148 = vpop.xlane.xlu0 %2147
    %v2149 = vsel %vm365, %v2131, 0.0
    %2150 = vadd.xlane.f32.xlu0 %v2149
    %v2151 = vpop.xlane.xlu0 %2150
    %v2152 = vsel %vm365, %v2133, 0.0
    %2153 = vadd.xlane.f32.xlu0 %v2152
    %v2154 = vpop.xlane.xlu0 %2153
    %v2155 = vsel %vm365, %v2135, 0.0
    %2156 = vadd.xlane.f32.xlu0 %v2155
    %v2157 = vpop.xlane.xlu0 %2156
    %v2158 = vsel %vm365, %v2137, 0.0
    %2159 = vadd.xlane.f32.xlu0 %v2158
    %v2160 = vpop.xlane.xlu0 %2159
    %v2161 = vsel %vm365, %v2139, 0.0
    %2162 = vadd.xlane.f32.xlu0 %v2161
    %v2163 = vpop.xlane.xlu0 %2162
    %v2164 = vrcp.pop %v2142
    %v2165 = vrcp.pop %v2145
    %v2166 = vrcp.pop %v2148
    %v2167 = vrcp.pop %v2151
    %v2168 = vrcp.pop %v2154
    %v2169 = vrcp.pop %v2157
    %v2170 = vrcp.pop %v2160
    %v2171 = vrcp.pop %v2163
    %v2172 = vmul.f32 %v2125, %v2164
    %v2173 = vmul.f32 %v2127, %v2165
    %v2174 = vmul.f32 %v2129, %v2166
    %v2175 = vmul.f32 %v2131, %v2167
    %v2176 = vmul.f32 %v2133, %v2168
    %v2177 = vmul.f32 %v2135, %v2169
    %v2178 = vmul.f32 %v2137, %v2170
    %v2179 = vmul.f32 %v2139, %v2171
    %v2180 = vpack.c.bf16 %v2172, %v2172
    %v2181 = vpack.c.bf16 %v2173, %v2173
    %v2182 = vpack.c.bf16 %v2174, %v2174
    %v2183 = vpack.c.bf16 %v2175, %v2175
    %v2184 = vpack.c.bf16 %v2176, %v2176
    %v2185 = vpack.c.bf16 %v2177, %v2177
    %v2186 = vpack.c.bf16 %v2178, %v2178
    %v2187 = vpack.c.bf16 %v2179, %v2179
    %2188 = vrot.lane.b32.xlu0 %v1154, 104
    %v2189 = vpop.permute.xlu0 %2188
    %v2191 = vsel %vm365, %v2180, 0
    %v2194 = vsel %vm617, %v2189, 0
    %2196 = vmatpush.bf16.msra.mxu0 0
    %2197 = vmatpush.bf16.msra.mxu0 0
    %2198 = vmatpush.bf16.msra.mxu0 0
    %2199 = vmatpush.bf16.msra.mxu0 0
    %2200 = vmatpush.bf16.msra.mxu0 0
    %2201 = vmatpush.bf16.msra.mxu0 0
    %2202 = vmatpush.bf16.msra.mxu0 0
    %2203 = vmatpush.bf16.msra.mxu0 %v2194
    %2204 = vmatmul.bf16.gmra.mxu0 %v2191
    %v2205 = vpop.f32.mrf.mxu0
    %v2206 = vadd.f32 0.0, %v2205
    %v2207 = vpop.f32.mrf.mxu0
    %2208 = vdwg.mxu0
    %2209 = vrot.lane.b32.xlu0 %v1178, 104
    %v2210 = vpop.permute.xlu0 %2209
    %v2212 = vsel %vm365, %v2181, 0
    %v2215 = vsel %vm617, %v2210, 0
    %2217 = vmatpush.bf16.msra.mxu0 0
    %2218 = vmatpush.bf16.msra.mxu0 0
    %2219 = vmatpush.bf16.msra.mxu0 0
    %2220 = vmatpush.bf16.msra.mxu0 0
    %2221 = vmatpush.bf16.msra.mxu0 0
    %2222 = vmatpush.bf16.msra.mxu0 0
    %2223 = vmatpush.bf16.msra.mxu0 0
    %2224 = vmatpush.bf16.msra.mxu0 %v2215
    %2225 = vmatmul.bf16.gmra.mxu0 %v2212
    %v2226 = vpop.f32.mrf.mxu0
    %v2227 = vadd.f32 0.0, %v2226
    %v2228 = vpop.f32.mrf.mxu0
    %2229 = vdwg.mxu0
    %2230 = vrot.lane.b32.xlu0 %v1202, 104
    %v2231 = vpop.permute.xlu0 %2230
    %v2233 = vsel %vm365, %v2182, 0
    %v2236 = vsel %vm617, %v2231, 0
    %2238 = vmatpush.bf16.msra.mxu0 0
    %2239 = vmatpush.bf16.msra.mxu0 0
    %2240 = vmatpush.bf16.msra.mxu0 0
    %2241 = vmatpush.bf16.msra.mxu0 0
    %2242 = vmatpush.bf16.msra.mxu0 0
    %2243 = vmatpush.bf16.msra.mxu0 0
    %2244 = vmatpush.bf16.msra.mxu0 0
    %2245 = vmatpush.bf16.msra.mxu0 %v2236
    %2246 = vmatmul.bf16.gmra.mxu0 %v2233
    %v2247 = vpop.f32.mrf.mxu0
    %v2248 = vadd.f32 0.0, %v2247
    %v2249 = vpop.f32.mrf.mxu0
    %2250 = vdwg.mxu0
    %2251 = vrot.lane.b32.xlu0 %v1226, 104
    %v2252 = vpop.permute.xlu0 %2251
    %v2254 = vsel %vm365, %v2183, 0
    %v2257 = vsel %vm617, %v2252, 0
    %2259 = vmatpush.bf16.msra.mxu0 0
    %2260 = vmatpush.bf16.msra.mxu0 0
    %2261 = vmatpush.bf16.msra.mxu0 0
    %2262 = vmatpush.bf16.msra.mxu0 0
    %2263 = vmatpush.bf16.msra.mxu0 0
    %2264 = vmatpush.bf16.msra.mxu0 0
    %2265 = vmatpush.bf16.msra.mxu0 0
    %2266 = vmatpush.bf16.msra.mxu0 %v2257
    %2267 = vmatmul.bf16.gmra.mxu0 %v2254
    %v2268 = vpop.f32.mrf.mxu0
    %v2269 = vadd.f32 0.0, %v2268
    %v2270 = vpop.f32.mrf.mxu0
    %2271 = vdwg.mxu0
    %2272 = vrot.lane.b32.xlu0 %v1250, 104
    %v2273 = vpop.permute.xlu0 %2272
    %v2275 = vsel %vm365, %v2184, 0
    %v2278 = vsel %vm617, %v2273, 0
    %2280 = vmatpush.bf16.msra.mxu0 0
    %2281 = vmatpush.bf16.msra.mxu0 0
    %2282 = vmatpush.bf16.msra.mxu0 0
    %2283 = vmatpush.bf16.msra.mxu0 0
    %2284 = vmatpush.bf16.msra.mxu0 0
    %2285 = vmatpush.bf16.msra.mxu0 0
    %2286 = vmatpush.bf16.msra.mxu0 0
    %2287 = vmatpush.bf16.msra.mxu0 %v2278
    %2288 = vmatmul.bf16.gmra.mxu0 %v2275
    %v2289 = vpop.f32.mrf.mxu0
    %v2290 = vadd.f32 0.0, %v2289
    %v2291 = vpop.f32.mrf.mxu0
    %2292 = vdwg.mxu0
    %2293 = vrot.lane.b32.xlu0 %v1274, 104
    %v2294 = vpop.permute.xlu0 %2293
    %v2296 = vsel %vm365, %v2185, 0
    %v2299 = vsel %vm617, %v2294, 0
    %2301 = vmatpush.bf16.msra.mxu0 0
    %2302 = vmatpush.bf16.msra.mxu0 0
    %2303 = vmatpush.bf16.msra.mxu0 0
    %2304 = vmatpush.bf16.msra.mxu0 0
    %2305 = vmatpush.bf16.msra.mxu0 0
    %2306 = vmatpush.bf16.msra.mxu0 0
    %2307 = vmatpush.bf16.msra.mxu0 0
    %2308 = vmatpush.bf16.msra.mxu0 %v2299
    %2309 = vmatmul.bf16.gmra.mxu0 %v2296
    %v2310 = vpop.f32.mrf.mxu0
    %v2311 = vadd.f32 0.0, %v2310
    %v2312 = vpop.f32.mrf.mxu0
    %2313 = vdwg.mxu0
    %2314 = vrot.lane.b32.xlu0 %v1298, 104
    %v2315 = vpop.permute.xlu0 %2314
    %v2317 = vsel %vm365, %v2186, 0
    %v2320 = vsel %vm617, %v2315, 0
    %2322 = vmatpush.bf16.msra.mxu0 0
    %2323 = vmatpush.bf16.msra.mxu0 0
    %2324 = vmatpush.bf16.msra.mxu0 0
    %2325 = vmatpush.bf16.msra.mxu0 0
    %2326 = vmatpush.bf16.msra.mxu0 0
    %2327 = vmatpush.bf16.msra.mxu0 0
    %2328 = vmatpush.bf16.msra.mxu0 0
    %2329 = vmatpush.bf16.msra.mxu0 %v2320
    %2330 = vmatmul.bf16.gmra.mxu0 %v2317
    %v2331 = vpop.f32.mrf.mxu0
    %v2332 = vadd.f32 0.0, %v2331
    %v2333 = vpop.f32.mrf.mxu0
    %2334 = vdwg.mxu0
    %2335 = vrot.lane.b32.xlu0 %v1322, 104
    %v2336 = vpop.permute.xlu0 %2335
    %v2338 = vsel %vm365, %v2187, 0
    %v2341 = vsel %vm617, %v2336, 0
    %2343 = vmatpush.bf16.msra.mxu0 0
    %2344 = vmatpush.bf16.msra.mxu0 0
    %2345 = vmatpush.bf16.msra.mxu0 0
    %2346 = vmatpush.bf16.msra.mxu0 0
    %2347 = vmatpush.bf16.msra.mxu0 0
    %2348 = vmatpush.bf16.msra.mxu0 0
    %2349 = vmatpush.bf16.msra.mxu0 0
    %2350 = vmatpush.bf16.msra.mxu0 %v2341
    %2351 = vmatmul.bf16.gmra.mxu0 %v2338
    %v2352 = vpop.f32.mrf.mxu0
    %v2353 = vadd.f32 0.0, %v2352
    %v2354 = vpop.f32.mrf.mxu0
    %2355 = vdwg.mxu0
    %v2356 = vpack.c.bf16 %v2227, %v2206
    %v2357 = vpack.c.bf16 %v2269, %v2248
    %v2358 = vpack.c.bf16 %v2311, %v2290
    %v2359 = vpack.c.bf16 %v2353, %v2332
    %s2360 = scalar_lea.vmem [#allocation7], 12
    %v2361 = vld [vmem:[%s2360] sm:$0xf]
    %v2363 = vsel %vm365, %v2356, 0
    %v2366 = vsel %vm365, %v2357, 0
    %v2369 = vsel %vm365, %v2358, 0
    %v2372 = vsel %vm365, %v2359, 0
    %v2375 = vsel %vm617, %v2361, 0
    %2377 = vmatpush.bf16.msra.mxu0 0
    %2378 = vmatpush.bf16.msra.mxu0 0
    %2379 = vmatpush.bf16.msra.mxu0 0
    %2380 = vmatpush.bf16.msra.mxu0 0
    %2381 = vmatpush.bf16.msra.mxu0 0
    %2382 = vmatpush.bf16.msra.mxu0 0
    %2383 = vmatpush.bf16.msra.mxu0 0
    %2384 = vmatpush.bf16.msra.mxu0 %v2375
    %2385 = vmatmul.bf16.gmra.mxu0 %v2363
    %v2386 = vpop.f32.mrf.mxu0
    %v2387 = vadd.f32 0.0, %v2386
    %v2388 = vpop.f32.mrf.mxu0
    %v2389 = vadd.f32 0.0, %v2388
    %2390 = vmatmul.bf16.gmra.mxu0 %v2366
    %v2391 = vpop.f32.mrf.mxu0
    %v2392 = vadd.f32 0.0, %v2391
    %v2393 = vpop.f32.mrf.mxu0
    %v2394 = vadd.f32 0.0, %v2393
    %2395 = vmatmul.bf16.gmra.mxu0 %v2369
    %v2396 = vpop.f32.mrf.mxu0
    %v2397 = vadd.f32 0.0, %v2396
    %v2398 = vpop.f32.mrf.mxu0
    %v2399 = vadd.f32 0.0, %v2398
    %2400 = vmatmul.bf16.gmra.mxu0 %v2372
    %v2401 = vpop.f32.mrf.mxu0
    %v2402 = vadd.f32 0.0, %v2401
    %v2403 = vpop.f32.mrf.mxu0
    %v2404 = vadd.f32 0.0, %v2403
    %2405 = vdwg.mxu0
    %v2406 = vadd.f32 %v1900, %v2387
    %v2407 = vadd.f32 %v1901, %v2389
    %v2408 = vadd.f32 %v1902, %v2392
    %v2409 = vadd.f32 %v1903, %v2394
    %v2410 = vadd.f32 %v1904, %v2397
    %v2411 = vadd.f32 %v1905, %v2399
    %v2412 = vadd.f32 %v1906, %v2402
    %v2413 = vadd.f32 %v1907, %v2404
    %v2414 = vadd.f32 %v2406, %v124
    %v2415 = vadd.f32 %v2407, %v125
    %v2416 = vadd.f32 %v2408, %v126
    %v2417 = vadd.f32 %v2409, %v127
    %v2418 = vadd.f32 %v2410, %v128
    %v2419 = vadd.f32 %v2411, %v129
    %v2420 = vadd.f32 %v2412, %v130
    %v2421 = vadd.f32 %v2413, %v131
    %v2422 = vld [vmem:[%s10] sm:$0x1]
    %v2423 = vld [vmem:[%s11] sm:$0x1]
    %v2424 = vsel %vm156, %v2414, 0.0
    %2425 = vadd.xlane.f32.xlu0 %v2424
    %v2426 = vpop.xlane.xlu0 %2425
    %v2427 = vsel %vm156, %v2415, 0.0
    %2428 = vadd.xlane.f32.xlu0 %v2427
    %v2429 = vpop.xlane.xlu0 %2428
    %v2430 = vsel %vm156, %v2416, 0.0
    %2431 = vadd.xlane.f32.xlu0 %v2430
    %v2432 = vpop.xlane.xlu0 %2431
    %v2433 = vsel %vm156, %v2417, 0.0
    %2434 = vadd.xlane.f32.xlu0 %v2433
    %v2435 = vpop.xlane.xlu0 %2434
    %v2436 = vsel %vm156, %v2418, 0.0
    %2437 = vadd.xlane.f32.xlu0 %v2436
    %v2438 = vpop.xlane.xlu0 %2437
    %v2439 = vsel %vm156, %v2419, 0.0
    %2440 = vadd.xlane.f32.xlu0 %v2439
    %v2441 = vpop.xlane.xlu0 %2440
    %v2442 = vsel %vm156, %v2420, 0.0
    %2443 = vadd.xlane.f32.xlu0 %v2442
    %v2444 = vpop.xlane.xlu0 %2443
    %v2445 = vsel %vm156, %v2421, 0.0
    %2446 = vadd.xlane.f32.xlu0 %v2445
    %v2447 = vpop.xlane.xlu0 %2446
    %v2448 = vrcp.pop 32.0
    %v2449 = vmul.f32 32.0, %v2448
    %v2450 = vsub.f32 1.0, %v2449
    %v2451 = vmul.f32 %v2448, %v2450
    %v2452 = vadd.f32 %v2448, %v2451
    %vm2453 = vweird.f32 %v2448
    %v2454 = vsel %vm2453, %v2448, %v2452
    %v2455 = vmul.f32 %v2426, %v2454
    %v2456 = vmul.f32 %v2429, %v2454
    %v2457 = vmul.f32 %v2432, %v2454
    %v2458 = vmul.f32 %v2435, %v2454
    %v2459 = vmul.f32 %v2438, %v2454
    %v2460 = vmul.f32 %v2441, %v2454
    %v2461 = vmul.f32 %v2444, %v2454
    %v2462 = vmul.f32 %v2447, %v2454
    %v2463 = vsub.f32 %v2414, %v2455
    %v2464 = vsub.f32 %v2415, %v2456
    %v2465 = vsub.f32 %v2416, %v2457
    %v2466 = vsub.f32 %v2417, %v2458
    %v2467 = vsub.f32 %v2418, %v2459
    %v2468 = vsub.f32 %v2419, %v2460
    %v2469 = vsub.f32 %v2420, %v2461
    %v2470 = vsub.f32 %v2421, %v2462
    %v2471 = vmul.f32 %v2463, %v2463
    %v2472 = vmul.f32 %v2464, %v2464
    %v2473 = vmul.f32 %v2465, %v2465
    %v2474 = vmul.f32 %v2466, %v2466
    %v2475 = vmul.f32 %v2467, %v2467
    %v2476 = vmul.f32 %v2468, %v2468
    %v2477 = vmul.f32 %v2469, %v2469
    %v2478 = vmul.f32 %v2470, %v2470
    %v2479 = vsel %vm156, %v2471, 0.0
    %2480 = vadd.xlane.f32.xlu0 %v2479
    %v2481 = vpop.xlane.xlu0 %2480
    %v2482 = vsel %vm156, %v2472, 0.0
    %2483 = vadd.xlane.f32.xlu0 %v2482
    %v2484 = vpop.xlane.xlu0 %2483
    %v2485 = vsel %vm156, %v2473, 0.0
    %2486 = vadd.xlane.f32.xlu0 %v2485
    %v2487 = vpop.xlane.xlu0 %2486
    %v2488 = vsel %vm156, %v2474, 0.0
    %2489 = vadd.xlane.f32.xlu0 %v2488
    %v2490 = vpop.xlane.xlu0 %2489
    %v2491 = vsel %vm156, %v2475, 0.0
    %2492 = vadd.xlane.f32.xlu0 %v2491
    %v2493 = vpop.xlane.xlu0 %2492
    %v2494 = vsel %vm156, %v2476, 0.0
    %2495 = vadd.xlane.f32.xlu0 %v2494
    %v2496 = vpop.xlane.xlu0 %2495
    %v2497 = vsel %vm156, %v2477, 0.0
    %2498 = vadd.xlane.f32.xlu0 %v2497
    %v2499 = vpop.xlane.xlu0 %2498
    %v2500 = vsel %vm156, %v2478, 0.0
    %2501 = vadd.xlane.f32.xlu0 %v2500
    %v2502 = vpop.xlane.xlu0 %2501
    %v2503 = vmul.f32 %v2481, %v2454
    %v2504 = vmul.f32 %v2484, %v2454
    %v2505 = vmul.f32 %v2487, %v2454
    %v2506 = vmul.f32 %v2490, %v2454
    %v2507 = vmul.f32 %v2493, %v2454
    %v2508 = vmul.f32 %v2496, %v2454
    %v2509 = vmul.f32 %v2499, %v2454
    %v2510 = vmul.f32 %v2502, %v2454
    %v2511 = vadd.f32 %v2503, 1e-12
    %v2512 = vadd.f32 %v2504, 1e-12
    %v2513 = vadd.f32 %v2505, 1e-12
    %v2514 = vadd.f32 %v2506, 1e-12
    %v2515 = vadd.f32 %v2507, 1e-12
    %v2516 = vadd.f32 %v2508, 1e-12
    %v2517 = vadd.f32 %v2509, 1e-12
    %v2518 = vadd.f32 %v2510, 1e-12
    %v2519 = vrsqrt.pop %v2511
    %v2520 = vmul.f32 %v2519, %v2511
    %v2521 = vmul.f32 %v2520, %v2519
    %v2522 = vmul.f32 0.5, %v2521
    %v2523 = vsub.f32 1.5, %v2522
    %v2524 = vmul.f32 %v2519, %v2523
    %vm2525 = vweird.f32 %v2511
    %vm2526 = vweird.f32 %v2519
    %vm2527 = vmor %vm2525, %vm2526
    %v2528 = vsel %vm2527, %v2519, %v2524
    %v2529 = vrsqrt.pop %v2512
    %v2530 = vmul.f32 %v2529, %v2512
    %v2531 = vmul.f32 %v2530, %v2529
    %v2532 = vmul.f32 0.5, %v2531
    %v2533 = vsub.f32 1.5, %v2532
    %v2534 = vmul.f32 %v2529, %v2533
    %vm2535 = vweird.f32 %v2512
    %vm2536 = vweird.f32 %v2529
    %vm2537 = vmor %vm2535, %vm2536
    %v2538 = vsel %vm2537, %v2529, %v2534
    %v2539 = vrsqrt.pop %v2513
    %v2540 = vmul.f32 %v2539, %v2513
    %v2541 = vmul.f32 %v2540, %v2539
    %v2542 = vmul.f32 0.5, %v2541
    %v2543 = vsub.f32 1.5, %v2542
    %v2544 = vmul.f32 %v2539, %v2543
    %vm2545 = vweird.f32 %v2513
    %vm2546 = vweird.f32 %v2539
    %vm2547 = vmor %vm2545, %vm2546
    %v2548 = vsel %vm2547, %v2539, %v2544
    %v2549 = vrsqrt.pop %v2514
    %v2550 = vmul.f32 %v2549, %v2514
    %v2551 = vmul.f32 %v2550, %v2549
    %v2552 = vmul.f32 0.5, %v2551
    %v2553 = vsub.f32 1.5, %v2552
    %v2554 = vmul.f32 %v2549, %v2553
    %vm2555 = vweird.f32 %v2514
    %vm2556 = vweird.f32 %v2549
    %vm2557 = vmor %vm2555, %vm2556
    %v2558 = vsel %vm2557, %v2549, %v2554
    %v2559 = vrsqrt.pop %v2515
    %v2560 = vmul.f32 %v2559, %v2515
    %v2561 = vmul.f32 %v2560, %v2559
    %v2562 = vmul.f32 0.5, %v2561
    %v2563 = vsub.f32 1.5, %v2562
    %v2564 = vmul.f32 %v2559, %v2563
    %vm2565 = vweird.f32 %v2515
    %vm2566 = vweird.f32 %v2559
    %vm2567 = vmor %vm2565, %vm2566
    %v2568 = vsel %vm2567, %v2559, %v2564
    %v2569 = vrsqrt.pop %v2516
    %v2570 = vmul.f32 %v2569, %v2516
    %v2571 = vmul.f32 %v2570, %v2569
    %v2572 = vmul.f32 0.5, %v2571
    %v2573 = vsub.f32 1.5, %v2572
    %v2574 = vmul.f32 %v2569, %v2573
    %vm2575 = vweird.f32 %v2516
    %vm2576 = vweird.f32 %v2569
    %vm2577 = vmor %vm2575, %vm2576
    %v2578 = vsel %vm2577, %v2569, %v2574
    %v2579 = vrsqrt.pop %v2517
    %v2580 = vmul.f32 %v2579, %v2517
    %v2581 = vmul.f32 %v2580, %v2579
    %v2582 = vmul.f32 0.5, %v2581
    %v2583 = vsub.f32 1.5, %v2582
    %v2584 = vmul.f32 %v2579, %v2583
    %vm2585 = vweird.f32 %v2517
    %vm2586 = vweird.f32 %v2579
    %vm2587 = vmor %vm2585, %vm2586
    %v2588 = vsel %vm2587, %v2579, %v2584
    %v2589 = vrsqrt.pop %v2518
    %v2590 = vmul.f32 %v2589, %v2518
    %v2591 = vmul.f32 %v2590, %v2589
    %v2592 = vmul.f32 0.5, %v2591
    %v2593 = vsub.f32 1.5, %v2592
    %v2594 = vmul.f32 %v2589, %v2593
    %vm2595 = vweird.f32 %v2518
    %vm2596 = vweird.f32 %v2589
    %vm2597 = vmor %vm2595, %vm2596
    %v2598 = vsel %vm2597, %v2589, %v2594
    %v2599 = vmul.f32 %v2463, %v2528
    %v2600 = vmul.f32 %v2464, %v2538
    %v2601 = vmul.f32 %v2465, %v2548
    %v2602 = vmul.f32 %v2466, %v2558
    %v2603 = vmul.f32 %v2467, %v2568
    %v2604 = vmul.f32 %v2468, %v2578
    %v2605 = vmul.f32 %v2469, %v2588
    %v2606 = vmul.f32 %v2470, %v2598
    %v2608 = vperm.slane %v2422, 0
    %v2610 = vmul.f32 %v2599, %v2608
    %v2611 = vmul.f32 %v2600, %v2608
    %v2612 = vmul.f32 %v2601, %v2608
    %v2613 = vmul.f32 %v2602, %v2608
    %v2614 = vmul.f32 %v2603, %v2608
    %v2615 = vmul.f32 %v2604, %v2608
    %v2616 = vmul.f32 %v2605, %v2608
    %v2617 = vmul.f32 %v2606, %v2608
    %v2619 = vperm.slane %v2423, 0
    %v2621 = vadd.f32 %v2610, %v2619
    %v2622 = vadd.f32 %v2611, %v2619
    %v2623 = vadd.f32 %v2612, %v2619
    %v2624 = vadd.f32 %v2613, %v2619
    %v2625 = vadd.f32 %v2614, %v2619
    %v2626 = vadd.f32 %v2615, %v2619
    %v2627 = vadd.f32 %v2616, %v2619
    %v2628 = vadd.f32 %v2617, %v2619
    %v2629 = vpack.c.bf16 %v2622, %v2621
    %v2630 = vpack.c.bf16 %v2624, %v2623
    %v2631 = vpack.c.bf16 %v2626, %v2625
    %v2632 = vpack.c.bf16 %v2628, %v2627
    %v2633 = vld [vmem:[%s15] sm:$0x1]
    %v2635 = vperm.slane %v2633, 0
    %v2637 = vadd.f32 %v2635, 0.0
    %v2638 = vld [vmem:[#allocation8] sm:$0xf]
    %v2639 = vld [vmem:[#allocation8 + $0x4] sm:$0xf]
    %v2640 = vld [vmem:[#allocation8 + $0x8] sm:$0xf]
    %v2641 = vld [vmem:[#allocation8 + $0xc] sm:$0xf]
    %v2642 = vld [vmem:[%s13] sm:$0x1]
    %v2644 = vperm.slane %v2642, 0
    %v2650 = vunpack.c.l.b16 %v2638
    %v2651 = vunpack.c.l.b16 %v2639
    %v2652 = vunpack.c.l.b16 %v2640
    %v2653 = vunpack.c.l.b16 %v2641
    %v2654 = vpack.c.b16 %v2651, %v2650
    %v2655 = vpack.c.b16 %v2653, %v2652
    %v2659 = vsel %vm156, %v2629, 0
    %v2662 = vsel %vm156, %v2630, 0
    %v2665 = vsel %vm156, %v2631, 0
    %v2668 = vsel %vm156, %v2632, 0
    %2670 = vmatpush.bf16.msra.mxu0 0
    %2671 = vmatpush.bf16.msra.mxu0 0
    %2672 = vmatpush.bf16.msra.mxu0 0
    %2673 = vmatpush.bf16.msra.mxu0 0
    %2674 = vmatpush.bf16.msra.mxu0 0
    %2675 = vmatpush.bf16.msra.mxu0 0
    %2676 = vmatpush.bf16.msra.mxu0 %v2655
    %2677 = vmatpush.bf16.msra.mxu0 %v2654
    %2678 = vmatmul.bf16.gmra.mxu0 %v2659
    %v2679 = vpop.f32.mrf.mxu0
    %v2680 = vadd.f32 %v2644, %v2679
    %v2681 = vpop.f32.mrf.mxu0
    %v2682 = vadd.f32 %v2644, %v2681
    %2683 = vmatmul.bf16.gmra.mxu0 %v2662
    %v2684 = vpop.f32.mrf.mxu0
    %v2685 = vadd.f32 %v2644, %v2684
    %v2686 = vpop.f32.mrf.mxu0
    %v2687 = vadd.f32 %v2644, %v2686
    %2688 = vmatmul.bf16.gmra.mxu0 %v2665
    %v2689 = vpop.f32.mrf.mxu0
    %v2690 = vadd.f32 %v2644, %v2689
    %v2691 = vpop.f32.mrf.mxu0
    %v2692 = vadd.f32 %v2644, %v2691
    %2693 = vmatmul.bf16.gmra.mxu0 %v2668
    %v2694 = vpop.f32.mrf.mxu0
    %v2695 = vadd.f32 %v2644, %v2694
    %v2696 = vpop.f32.mrf.mxu0
    %v2697 = vadd.f32 %v2644, %v2696
    %2698 = vdwg.mxu0
    %v2699 = vmul.f32 %v2680, 0.5
    %v2700 = vmul.f32 %v2682, 0.5
    %v2701 = vmul.f32 %v2685, 0.5
    %v2702 = vmul.f32 %v2687, 0.5
    %v2703 = vmul.f32 %v2690, 0.5
    %v2704 = vmul.f32 %v2692, 0.5
    %v2705 = vmul.f32 %v2695, 0.5
    %v2706 = vmul.f32 %v2697, 0.5
    %v2707 = vmul.f32 %v2680, 0.70710677
    %v2708 = vmul.f32 %v2682, 0.70710677
    %v2709 = vmul.f32 %v2685, 0.70710677
    %v2710 = vmul.f32 %v2687, 0.70710677
    %v2711 = vmul.f32 %v2690, 0.70710677
    %v2712 = vmul.f32 %v2692, 0.70710677
    %v2713 = vmul.f32 %v2695, 0.70710677
    %v2714 = vmul.f32 %v2697, 0.70710677
    %v2715 = vmul.f32 %v2707, %v2707
    %v2716 = vmin.f32 16.0, %v2715
    %v2717 = vmul.f32 %v2716, 2.1237322e-06
    %v2718 = vadd.f32 %v2717, 0.00028619796
    %v2719 = vmul.f32 %v2716, %v2718
    %v2720 = vadd.f32 %v2719, 0.0036580483
    %v2721 = vmul.f32 %v2716, %v2720
    %v2722 = vadd.f32 %v2721, 0.05243302
    %v2723 = vmul.f32 %v2716, %v2722
    %v2724 = vadd.f32 %v2723, 0.18741608
    %v2725 = vmul.f32 %v2716, %v2724
    %v2726 = vadd.f32 %v2725, 1.1283791
    %v2727 = vmul.f32 %v2707, %v2726
    %v2728 = vmul.f32 %v2716, 3.8918573e-05
    %v2729 = vadd.f32 %v2728, 0.001143296
    %v2730 = vmul.f32 %v2716, %v2729
    %v2731 = vadd.f32 %v2730, 0.014752088
    %v2732 = vmul.f32 %v2716, %v2731
    %v2733 = vadd.f32 %v2732, 0.112945676
    %v2734 = vmul.f32 %v2716, %v2733
    %v2735 = vadd.f32 %v2734, 0.4994258
    %v2736 = vmul.f32 %v2716, %v2735
    %v2737 = vadd.f32 %v2736, 1.0
    %v2738 = vrcp.pop %v2737
    %v2739 = vmul.f32 %v2737, %v2738
    %v2740 = vsub.f32 1.0, %v2739
    %v2741 = vmul.f32 %v2738, %v2740
    %v2742 = vadd.f32 %v2738, %v2741
    %vm2743 = vweird.f32 %v2737
    %vm2744 = vweird.f32 %v2738
    %vm2745 = vmor %vm2743, %vm2744
    %v2746 = vsel %vm2745, %v2738, %v2742
    %v2747 = vand.u32 2147483647, %v2737
    %vm2748 = vcmp.eq.f32.partialorder %v2747, 8.507059e+37
    %v2749 = vand.u32 %v2737, 2147483648
    %v2750 = vor.u32 1.1754944e-38, %v2749
    %v2751 = vsel %vm2748, %v2750, %v2746
    %v2752 = vmul.f32 %v2727, %v2751
    %v2753 = vmin.f32 %v2752, 1.0
    %v2754 = vmax.f32 %v2753, -1.0
    %v2755 = vmul.f32 %v2708, %v2708
    %v2756 = vmin.f32 16.0, %v2755
    %v2757 = vmul.f32 %v2756, 2.1237322e-06
    %v2758 = vadd.f32 %v2757, 0.00028619796
    %v2759 = vmul.f32 %v2756, %v2758
    %v2760 = vadd.f32 %v2759, 0.0036580483
    %v2761 = vmul.f32 %v2756, %v2760
    %v2762 = vadd.f32 %v2761, 0.05243302
    %v2763 = vmul.f32 %v2756, %v2762
    %v2764 = vadd.f32 %v2763, 0.18741608
    %v2765 = vmul.f32 %v2756, %v2764
    %v2766 = vadd.f32 %v2765, 1.1283791
    %v2767 = vmul.f32 %v2708, %v2766
    %v2768 = vmul.f32 %v2756, 3.8918573e-05
    %v2769 = vadd.f32 %v2768, 0.001143296
    %v2770 = vmul.f32 %v2756, %v2769
    %v2771 = vadd.f32 %v2770, 0.014752088
    %v2772 = vmul.f32 %v2756, %v2771
    %v2773 = vadd.f32 %v2772, 0.112945676
    %v2774 = vmul.f32 %v2756, %v2773
    %v2775 = vadd.f32 %v2774, 0.4994258
    %v2776 = vmul.f32 %v2756, %v2775
    %v2777 = vadd.f32 %v2776, 1.0
    %v2778 = vrcp.pop %v2777
    %v2779 = vmul.f32 %v2777, %v2778
    %v2780 = vsub.f32 1.0, %v2779
    %v2781 = vmul.f32 %v2778, %v2780
    %v2782 = vadd.f32 %v2778, %v2781
    %vm2783 = vweird.f32 %v2777
    %vm2784 = vweird.f32 %v2778
    %vm2785 = vmor %vm2783, %vm2784
    %v2786 = vsel %vm2785, %v2778, %v2782
    %v2787 = vand.u32 2147483647, %v2777
    %vm2788 = vcmp.eq.f32.partialorder %v2787, 8.507059e+37
    %v2789 = vand.u32 %v2777, 2147483648
    %v2790 = vor.u32 1.1754944e-38, %v2789
    %v2791 = vsel %vm2788, %v2790, %v2786
    %v2792 = vmul.f32 %v2767, %v2791
    %v2793 = vmin.f32 %v2792, 1.0
    %v2794 = vmax.f32 %v2793, -1.0
    %v2795 = vmul.f32 %v2709, %v2709
    %v2796 = vmin.f32 16.0, %v2795
    %v2797 = vmul.f32 %v2796, 2.1237322e-06
    %v2798 = vadd.f32 %v2797, 0.00028619796
    %v2799 = vmul.f32 %v2796, %v2798
    %v2800 = vadd.f32 %v2799, 0.0036580483
    %v2801 = vmul.f32 %v2796, %v2800
    %v2802 = vadd.f32 %v2801, 0.05243302
    %v2803 = vmul.f32 %v2796, %v2802
    %v2804 = vadd.f32 %v2803, 0.18741608
    %v2805 = vmul.f32 %v2796, %v2804
    %v2806 = vadd.f32 %v2805, 1.1283791
    %v2807 = vmul.f32 %v2709, %v2806
    %v2808 = vmul.f32 %v2796, 3.8918573e-05
    %v2809 = vadd.f32 %v2808, 0.001143296
    %v2810 = vmul.f32 %v2796, %v2809
    %v2811 = vadd.f32 %v2810, 0.014752088
    %v2812 = vmul.f32 %v2796, %v2811
    %v2813 = vadd.f32 %v2812, 0.112945676
    %v2814 = vmul.f32 %v2796, %v2813
    %v2815 = vadd.f32 %v2814, 0.4994258
    %v2816 = vmul.f32 %v2796, %v2815
    %v2817 = vadd.f32 %v2816, 1.0
    %v2818 = vrcp.pop %v2817
    %v2819 = vmul.f32 %v2817, %v2818
    %v2820 = vsub.f32 1.0, %v2819
    %v2821 = vmul.f32 %v2818, %v2820
    %v2822 = vadd.f32 %v2818, %v2821
    %vm2823 = vweird.f32 %v2817
    %vm2824 = vweird.f32 %v2818
    %vm2825 = vmor %vm2823, %vm2824
    %v2826 = vsel %vm2825, %v2818, %v2822
    %v2827 = vand.u32 2147483647, %v2817
    %vm2828 = vcmp.eq.f32.partialorder %v2827, 8.507059e+37
    %v2829 = vand.u32 %v2817, 2147483648
    %v2830 = vor.u32 1.1754944e-38, %v2829
    %v2831 = vsel %vm2828, %v2830, %v2826
    %v2832 = vmul.f32 %v2807, %v2831
    %v2833 = vmin.f32 %v2832, 1.0
    %v2834 = vmax.f32 %v2833, -1.0
    %v2835 = vmul.f32 %v2710, %v2710
    %v2836 = vmin.f32 16.0, %v2835
    %v2837 = vmul.f32 %v2836, 2.1237322e-06
    %v2838 = vadd.f32 %v2837, 0.00028619796
    %v2839 = vmul.f32 %v2836, %v2838
    %v2840 = vadd.f32 %v2839, 0.0036580483
    %v2841 = vmul.f32 %v2836, %v2840
    %v2842 = vadd.f32 %v2841, 0.05243302
    %v2843 = vmul.f32 %v2836, %v2842
    %v2844 = vadd.f32 %v2843, 0.18741608
    %v2845 = vmul.f32 %v2836, %v2844
    %v2846 = vadd.f32 %v2845, 1.1283791
    %v2847 = vmul.f32 %v2710, %v2846
    %v2848 = vmul.f32 %v2836, 3.8918573e-05
    %v2849 = vadd.f32 %v2848, 0.001143296
    %v2850 = vmul.f32 %v2836, %v2849
    %v2851 = vadd.f32 %v2850, 0.014752088
    %v2852 = vmul.f32 %v2836, %v2851
    %v2853 = vadd.f32 %v2852, 0.112945676
    %v2854 = vmul.f32 %v2836, %v2853
    %v2855 = vadd.f32 %v2854, 0.4994258
    %v2856 = vmul.f32 %v2836, %v2855
    %v2857 = vadd.f32 %v2856, 1.0
    %v2858 = vrcp.pop %v2857
    %v2859 = vmul.f32 %v2857, %v2858
    %v2860 = vsub.f32 1.0, %v2859
    %v2861 = vmul.f32 %v2858, %v2860
    %v2862 = vadd.f32 %v2858, %v2861
    %vm2863 = vweird.f32 %v2857
    %vm2864 = vweird.f32 %v2858
    %vm2865 = vmor %vm2863, %vm2864
    %v2866 = vsel %vm2865, %v2858, %v2862
    %v2867 = vand.u32 2147483647, %v2857
    %vm2868 = vcmp.eq.f32.partialorder %v2867, 8.507059e+37
    %v2869 = vand.u32 %v2857, 2147483648
    %v2870 = vor.u32 1.1754944e-38, %v2869
    %v2871 = vsel %vm2868, %v2870, %v2866
    %v2872 = vmul.f32 %v2847, %v2871
    %v2873 = vmin.f32 %v2872, 1.0
    %v2874 = vmax.f32 %v2873, -1.0
    %v2875 = vmul.f32 %v2711, %v2711
    %v2876 = vmin.f32 16.0, %v2875
    %v2877 = vmul.f32 %v2876, 2.1237322e-06
    %v2878 = vadd.f32 %v2877, 0.00028619796
    %v2879 = vmul.f32 %v2876, %v2878
    %v2880 = vadd.f32 %v2879, 0.0036580483
    %v2881 = vmul.f32 %v2876, %v2880
    %v2882 = vadd.f32 %v2881, 0.05243302
    %v2883 = vmul.f32 %v2876, %v2882
    %v2884 = vadd.f32 %v2883, 0.18741608
    %v2885 = vmul.f32 %v2876, %v2884
    %v2886 = vadd.f32 %v2885, 1.1283791
    %v2887 = vmul.f32 %v2711, %v2886
    %v2888 = vmul.f32 %v2876, 3.8918573e-05
    %v2889 = vadd.f32 %v2888, 0.001143296
    %v2890 = vmul.f32 %v2876, %v2889
    %v2891 = vadd.f32 %v2890, 0.014752088
    %v2892 = vmul.f32 %v2876, %v2891
    %v2893 = vadd.f32 %v2892, 0.112945676
    %v2894 = vmul.f32 %v2876, %v2893
    %v2895 = vadd.f32 %v2894, 0.4994258
    %v2896 = vmul.f32 %v2876, %v2895
    %v2897 = vadd.f32 %v2896, 1.0
    %v2898 = vrcp.pop %v2897
    %v2899 = vmul.f32 %v2897, %v2898
    %v2900 = vsub.f32 1.0, %v2899
    %v2901 = vmul.f32 %v2898, %v2900
    %v2902 = vadd.f32 %v2898, %v2901
    %vm2903 = vweird.f32 %v2897
    %vm2904 = vweird.f32 %v2898
    %vm2905 = vmor %vm2903, %vm2904
    %v2906 = vsel %vm2905, %v2898, %v2902
    %v2907 = vand.u32 2147483647, %v2897
    %vm2908 = vcmp.eq.f32.partialorder %v2907, 8.507059e+37
    %v2909 = vand.u32 %v2897, 2147483648
    %v2910 = vor.u32 1.1754944e-38, %v2909
    %v2911 = vsel %vm2908, %v2910, %v2906
    %v2912 = vmul.f32 %v2887, %v2911
    %v2913 = vmin.f32 %v2912, 1.0
    %v2914 = vmax.f32 %v2913, -1.0
    %v2915 = vmul.f32 %v2712, %v2712
    %v2916 = vmin.f32 16.0, %v2915
    %v2917 = vmul.f32 %v2916, 2.1237322e-06
    %v2918 = vadd.f32 %v2917, 0.00028619796
    %v2919 = vmul.f32 %v2916, %v2918
    %v2920 = vadd.f32 %v2919, 0.0036580483
    %v2921 = vmul.f32 %v2916, %v2920
    %v2922 = vadd.f32 %v2921, 0.05243302
    %v2923 = vmul.f32 %v2916, %v2922
    %v2924 = vadd.f32 %v2923, 0.18741608
    %v2925 = vmul.f32 %v2916, %v2924
    %v2926 = vadd.f32 %v2925, 1.1283791
    %v2927 = vmul.f32 %v2712, %v2926
    %v2928 = vmul.f32 %v2916, 3.8918573e-05
    %v2929 = vadd.f32 %v2928, 0.001143296
    %v2930 = vmul.f32 %v2916, %v2929
    %v2931 = vadd.f32 %v2930, 0.014752088
    %v2932 = vmul.f32 %v2916, %v2931
    %v2933 = vadd.f32 %v2932, 0.112945676
    %v2934 = vmul.f32 %v2916, %v2933
    %v2935 = vadd.f32 %v2934, 0.4994258
    %v2936 = vmul.f32 %v2916, %v2935
    %v2937 = vadd.f32 %v2936, 1.0
    %v2938 = vrcp.pop %v2937
    %v2939 = vmul.f32 %v2937, %v2938
    %v2940 = vsub.f32 1.0, %v2939
    %v2941 = vmul.f32 %v2938, %v2940
    %v2942 = vadd.f32 %v2938, %v2941
    %vm2943 = vweird.f32 %v2937
    %vm2944 = vweird.f32 %v2938
    %vm2945 = vmor %vm2943, %vm2944
    %v2946 = vsel %vm2945, %v2938, %v2942
    %v2947 = vand.u32 2147483647, %v2937
    %vm2948 = vcmp.eq.f32.partialorder %v2947, 8.507059e+37
    %v2949 = vand.u32 %v2937, 2147483648
    %v2950 = vor.u32 1.1754944e-38, %v2949
    %v2951 = vsel %vm2948, %v2950, %v2946
    %v2952 = vmul.f32 %v2927, %v2951
    %v2953 = vmin.f32 %v2952, 1.0
    %v2954 = vmax.f32 %v2953, -1.0
    %v2955 = vmul.f32 %v2713, %v2713
    %v2956 = vmin.f32 16.0, %v2955
    %v2957 = vmul.f32 %v2956, 2.1237322e-06
    %v2958 = vadd.f32 %v2957, 0.00028619796
    %v2959 = vmul.f32 %v2956, %v2958
    %v2960 = vadd.f32 %v2959, 0.0036580483
    %v2961 = vmul.f32 %v2956, %v2960
    %v2962 = vadd.f32 %v2961, 0.05243302
    %v2963 = vmul.f32 %v2956, %v2962
    %v2964 = vadd.f32 %v2963, 0.18741608
    %v2965 = vmul.f32 %v2956, %v2964
    %v2966 = vadd.f32 %v2965, 1.1283791
    %v2967 = vmul.f32 %v2713, %v2966
    %v2968 = vmul.f32 %v2956, 3.8918573e-05
    %v2969 = vadd.f32 %v2968, 0.001143296
    %v2970 = vmul.f32 %v2956, %v2969
    %v2971 = vadd.f32 %v2970, 0.014752088
    %v2972 = vmul.f32 %v2956, %v2971
    %v2973 = vadd.f32 %v2972, 0.112945676
    %v2974 = vmul.f32 %v2956, %v2973
    %v2975 = vadd.f32 %v2974, 0.4994258
    %v2976 = vmul.f32 %v2956, %v2975
    %v2977 = vadd.f32 %v2976, 1.0
    %v2978 = vrcp.pop %v2977
    %v2979 = vmul.f32 %v2977, %v2978
    %v2980 = vsub.f32 1.0, %v2979
    %v2981 = vmul.f32 %v2978, %v2980
    %v2982 = vadd.f32 %v2978, %v2981
    %vm2983 = vweird.f32 %v2977
    %vm2984 = vweird.f32 %v2978
    %vm2985 = vmor %vm2983, %vm2984
    %v2986 = vsel %vm2985, %v2978, %v2982
    %v2987 = vand.u32 2147483647, %v2977
    %vm2988 = vcmp.eq.f32.partialorder %v2987, 8.507059e+37
    %v2989 = vand.u32 %v2977, 2147483648
    %v2990 = vor.u32 1.1754944e-38, %v2989
    %v2991 = vsel %vm2988, %v2990, %v2986
    %v2992 = vmul.f32 %v2967, %v2991
    %v2993 = vmin.f32 %v2992, 1.0
    %v2994 = vmax.f32 %v2993, -1.0
    %v2995 = vmul.f32 %v2714, %v2714
    %v2996 = vmin.f32 16.0, %v2995
    %v2997 = vmul.f32 %v2996, 2.1237322e-06
    %v2998 = vadd.f32 %v2997, 0.00028619796
    %v2999 = vmul.f32 %v2996, %v2998
    %v3000 = vadd.f32 %v2999, 0.0036580483
    %v3001 = vmul.f32 %v2996, %v3000
    %v3002 = vadd.f32 %v3001, 0.05243302
    %v3003 = vmul.f32 %v2996, %v3002
    %v3004 = vadd.f32 %v3003, 0.18741608
    %v3005 = vmul.f32 %v2996, %v3004
    %v3006 = vadd.f32 %v3005, 1.1283791
    %v3007 = vmul.f32 %v2714, %v3006
    %v3008 = vmul.f32 %v2996, 3.8918573e-05
    %v3009 = vadd.f32 %v3008, 0.001143296
    %v3010 = vmul.f32 %v2996, %v3009
    %v3011 = vadd.f32 %v3010, 0.014752088
    %v3012 = vmul.f32 %v2996, %v3011
    %v3013 = vadd.f32 %v3012, 0.112945676
    %v3014 = vmul.f32 %v2996, %v3013
    %v3015 = vadd.f32 %v3014, 0.4994258
    %v3016 = vmul.f32 %v2996, %v3015
    %v3017 = vadd.f32 %v3016, 1.0
    %v3018 = vrcp.pop %v3017
    %v3019 = vmul.f32 %v3017, %v3018
    %v3020 = vsub.f32 1.0, %v3019
    %v3021 = vmul.f32 %v3018, %v3020
    %v3022 = vadd.f32 %v3018, %v3021
    %vm3023 = vweird.f32 %v3017
    %vm3024 = vweird.f32 %v3018
    %vm3025 = vmor %vm3023, %vm3024
    %v3026 = vsel %vm3025, %v3018, %v3022
    %v3027 = vand.u32 2147483647, %v3017
    %vm3028 = vcmp.eq.f32.partialorder %v3027, 8.507059e+37
    %v3029 = vand.u32 %v3017, 2147483648
    %v3030 = vor.u32 1.1754944e-38, %v3029
    %v3031 = vsel %vm3028, %v3030, %v3026
    %v3032 = vmul.f32 %v3007, %v3031
    %v3033 = vmin.f32 %v3032, 1.0
    %v3034 = vmax.f32 %v3033, -1.0
    %v3035 = vadd.f32 %v2754, 1.0
    %v3036 = vadd.f32 %v2794, 1.0
    %v3037 = vadd.f32 %v2834, 1.0
    %v3038 = vadd.f32 %v2874, 1.0
    %v3039 = vadd.f32 %v2914, 1.0
    %v3040 = vadd.f32 %v2954, 1.0
    %v3041 = vadd.f32 %v2994, 1.0
    %v3042 = vadd.f32 %v3034, 1.0
    %v3043 = vmul.f32 %v2699, %v3035
    %v3044 = vmul.f32 %v2700, %v3036
    %v3045 = vmul.f32 %v2701, %v3037
    %v3046 = vmul.f32 %v2702, %v3038
    %v3047 = vmul.f32 %v2703, %v3039
    %v3048 = vmul.f32 %v2704, %v3040
    %v3049 = vmul.f32 %v2705, %v3041
    %v3050 = vmul.f32 %v2706, %v3042
    %v3051 = vpack.c.bf16 %v3044, %v3043
    %v3052 = vpack.c.bf16 %v3046, %v3045
    %v3053 = vpack.c.bf16 %v3048, %v3047
    %v3054 = vpack.c.bf16 %v3050, %v3049
    %v3055 = vld [vmem:[%s14] sm:$0xf]
    %v3056 = vld [vmem:[%s14 + $0x4] sm:$0xf]
    %v3057 = vld [vmem:[%s14 + $0x8] sm:$0xf]
    %v3058 = vld [vmem:[%s14 + $0xc] sm:$0xf]
    %v3059 = vld [vmem:[%s14 + $0x10] sm:$0xf]
    %v3060 = vld [vmem:[%s14 + $0x14] sm:$0xf]
    %v3061 = vld [vmem:[%s14 + $0x18] sm:$0xf]
    %v3062 = vld [vmem:[%s14 + $0x1c] sm:$0xf]
    %v3071 = vunpack.c.l.b16 %v3055
    %v3072 = vunpack.c.l.b16 %v3056
    %v3073 = vunpack.c.l.b16 %v3057
    %v3074 = vunpack.c.l.b16 %v3058
    %v3075 = vunpack.c.l.b16 %v3059
    %v3076 = vunpack.c.l.b16 %v3060
    %v3077 = vunpack.c.l.b16 %v3061
    %v3078 = vunpack.c.l.b16 %v3062
    %v3079 = vpack.c.b16 %v3072, %v3071
    %v3080 = vpack.c.b16 %v3074, %v3073
    %v3081 = vpack.c.b16 %v3076, %v3075
    %v3082 = vpack.c.b16 %v3078, %v3077
    %vm3087 = vcmask 523264
    %v3089 = vsel %vm3087, %v3051, 0
    %v3092 = vsel %vm3087, %v3052, 0
    %v3095 = vsel %vm3087, %v3053, 0
    %v3098 = vsel %vm3087, %v3054, 0
    %3100 = vmatpush.bf16.msra.mxu0 0
    %3101 = vmatpush.bf16.msra.mxu0 0
    %3102 = vmatpush.bf16.msra.mxu0 0
    %3103 = vmatpush.bf16.msra.mxu0 0
    %3104 = vmatpush.bf16.msra.mxu0 %v3082
    %3105 = vmatpush.bf16.msra.mxu0 %v3081
    %3106 = vmatpush.bf16.msra.mxu0 %v3080
    %3107 = vmatpush.bf16.msra.mxu0 %v3079
    %3108 = vmatmul.bf16.gmra.mxu0 %v3089
    %v3109 = vpop.f32.mrf.mxu0
    %v3110 = vadd.f32 0.0, %v3109
    %v3111 = vpop.f32.mrf.mxu0
    %v3112 = vadd.f32 0.0, %v3111
    %3113 = vmatmul.bf16.gmra.mxu0 %v3092
    %v3114 = vpop.f32.mrf.mxu0
    %v3115 = vadd.f32 0.0, %v3114
    %v3116 = vpop.f32.mrf.mxu0
    %v3117 = vadd.f32 0.0, %v3116
    %3118 = vmatmul.bf16.gmra.mxu0 %v3095
    %v3119 = vpop.f32.mrf.mxu0
    %v3120 = vadd.f32 0.0, %v3119
    %v3121 = vpop.f32.mrf.mxu0
    %v3122 = vadd.f32 0.0, %v3121
    %3123 = vmatmul.bf16.gmra.mxu0 %v3098
    %v3124 = vpop.f32.mrf.mxu0
    %v3125 = vadd.f32 0.0, %v3124
    %v3126 = vpop.f32.mrf.mxu0
    %v3127 = vadd.f32 0.0, %v3126
    %3128 = vdwg.mxu0
    %v3129 = vadd.f32 %v2637, %v3110
    %v3130 = vadd.f32 %v2637, %v3112
    %v3131 = vadd.f32 %v2637, %v3115
    %v3132 = vadd.f32 %v2637, %v3117
    %v3133 = vadd.f32 %v2637, %v3120
    %v3134 = vadd.f32 %v2637, %v3122
    %v3135 = vadd.f32 %v2637, %v3125
    %v3136 = vadd.f32 %v2637, %v3127
    %v3137 = vadd.f32 %v3129, %v2621
    %v3138 = vadd.f32 %v3130, %v2622
    %v3139 = vadd.f32 %v3131, %v2623
    %v3140 = vadd.f32 %v3132, %v2624
    %v3141 = vadd.f32 %v3133, %v2625
    %v3142 = vadd.f32 %v3134, %v2626
    %v3143 = vadd.f32 %v3135, %v2627
    %v3144 = vadd.f32 %v3136, %v2628
    %v3145 = vld [vmem:[%s16] sm:$0x1]
    %v3146 = vld [vmem:[%s17] sm:$0x1]
    %v3147 = vsel %vm156, %v3137, 0.0
    %3148 = vadd.xlane.f32.xlu0 %v3147
    %v3149 = vpop.xlane.xlu0 %3148
    %v3150 = vsel %vm156, %v3138, 0.0
    %3151 = vadd.xlane.f32.xlu0 %v3150
    %v3152 = vpop.xlane.xlu0 %3151
    %v3153 = vsel %vm156, %v3139, 0.0
    %3154 = vadd.xlane.f32.xlu0 %v3153
    %v3155 = vpop.xlane.xlu0 %3154
    %v3156 = vsel %vm156, %v3140, 0.0
    %3157 = vadd.xlane.f32.xlu0 %v3156
    %v3158 = vpop.xlane.xlu0 %3157
    %v3159 = vsel %vm156, %v3141, 0.0
    %3160 = vadd.xlane.f32.xlu0 %v3159
    %v3161 = vpop.xlane.xlu0 %3160
    %v3162 = vsel %vm156, %v3142, 0.0
    %3163 = vadd.xlane.f32.xlu0 %v3162
    %v3164 = vpop.xlane.xlu0 %3163
    %v3165 = vsel %vm156, %v3143, 0.0
    %3166 = vadd.xlane.f32.xlu0 %v3165
    %v3167 = vpop.xlane.xlu0 %3166
    %v3168 = vsel %vm156, %v3144, 0.0
    %3169 = vadd.xlane.f32.xlu0 %v3168
    %v3170 = vpop.xlane.xlu0 %3169
    %v3171 = vmul.f32 %v3149, %v2454
    %v3172 = vmul.f32 %v3152, %v2454
    %v3173 = vmul.f32 %v3155, %v2454
    %v3174 = vmul.f32 %v3158, %v2454
    %v3175 = vmul.f32 %v3161, %v2454
    %v3176 = vmul.f32 %v3164, %v2454
    %v3177 = vmul.f32 %v3167, %v2454
    %v3178 = vmul.f32 %v3170, %v2454
    %v3179 = vsub.f32 %v3137, %v3171
    %v3180 = vsub.f32 %v3138, %v3172
    %v3181 = vsub.f32 %v3139, %v3173
    %v3182 = vsub.f32 %v3140, %v3174
    %v3183 = vsub.f32 %v3141, %v3175
    %v3184 = vsub.f32 %v3142, %v3176
    %v3185 = vsub.f32 %v3143, %v3177
    %v3186 = vsub.f32 %v3144, %v3178
    %v3187 = vmul.f32 %v3179, %v3179
    %v3188 = vmul.f32 %v3180, %v3180
    %v3189 = vmul.f32 %v3181, %v3181
    %v3190 = vmul.f32 %v3182, %v3182
    %v3191 = vmul.f32 %v3183, %v3183
    %v3192 = vmul.f32 %v3184, %v3184
    %v3193 = vmul.f32 %v3185, %v3185
    %v3194 = vmul.f32 %v3186, %v3186
    %v3195 = vsel %vm156, %v3187, 0.0
    %3196 = vadd.xlane.f32.xlu0 %v3195
    %v3197 = vpop.xlane.xlu0 %3196
    %v3198 = vsel %vm156, %v3188, 0.0
    %3199 = vadd.xlane.f32.xlu0 %v3198
    %v3200 = vpop.xlane.xlu0 %3199
    %v3201 = vsel %vm156, %v3189, 0.0
    %3202 = vadd.xlane.f32.xlu0 %v3201
    %v3203 = vpop.xlane.xlu0 %3202
    %v3204 = vsel %vm156, %v3190, 0.0
    %3205 = vadd.xlane.f32.xlu0 %v3204
    %v3206 = vpop.xlane.xlu0 %3205
    %v3207 = vsel %vm156, %v3191, 0.0
    %3208 = vadd.xlane.f32.xlu0 %v3207
    %v3209 = vpop.xlane.xlu0 %3208
    %v3210 = vsel %vm156, %v3192, 0.0
    %3211 = vadd.xlane.f32.xlu0 %v3210
    %v3212 = vpop.xlane.xlu0 %3211
    %v3213 = vsel %vm156, %v3193, 0.0
    %3214 = vadd.xlane.f32.xlu0 %v3213
    %v3215 = vpop.xlane.xlu0 %3214
    %v3216 = vsel %vm156, %v3194, 0.0
    %3217 = vadd.xlane.f32.xlu0 %v3216
    %v3218 = vpop.xlane.xlu0 %3217
    %v3219 = vmul.f32 %v3197, %v2454
    %v3220 = vmul.f32 %v3200, %v2454
    %v3221 = vmul.f32 %v3203, %v2454
    %v3222 = vmul.f32 %v3206, %v2454
    %v3223 = vmul.f32 %v3209, %v2454
    %v3224 = vmul.f32 %v3212, %v2454
    %v3225 = vmul.f32 %v3215, %v2454
    %v3226 = vmul.f32 %v3218, %v2454
    %v3227 = vadd.f32 %v3219, 1e-12
    %v3228 = vadd.f32 %v3220, 1e-12
    %v3229 = vadd.f32 %v3221, 1e-12
    %v3230 = vadd.f32 %v3222, 1e-12
    %v3231 = vadd.f32 %v3223, 1e-12
    %v3232 = vadd.f32 %v3224, 1e-12
    %v3233 = vadd.f32 %v3225, 1e-12
    %v3234 = vadd.f32 %v3226, 1e-12
    %v3235 = vrsqrt.pop %v3227
    %v3236 = vmul.f32 %v3235, %v3227
    %v3237 = vmul.f32 %v3236, %v3235
    %v3238 = vmul.f32 0.5, %v3237
    %v3239 = vsub.f32 1.5, %v3238
    %v3240 = vmul.f32 %v3235, %v3239
    %vm3241 = vweird.f32 %v3227
    %vm3242 = vweird.f32 %v3235
    %vm3243 = vmor %vm3241, %vm3242
    %v3244 = vsel %vm3243, %v3235, %v3240
    %v3245 = vrsqrt.pop %v3228
    %v3246 = vmul.f32 %v3245, %v3228
    %v3247 = vmul.f32 %v3246, %v3245
    %v3248 = vmul.f32 0.5, %v3247
    %v3249 = vsub.f32 1.5, %v3248
    %v3250 = vmul.f32 %v3245, %v3249
    %vm3251 = vweird.f32 %v3228
    %vm3252 = vweird.f32 %v3245
    %vm3253 = vmor %vm3251, %vm3252
    %v3254 = vsel %vm3253, %v3245, %v3250
    %v3255 = vrsqrt.pop %v3229
    %v3256 = vmul.f32 %v3255, %v3229
    %v3257 = vmul.f32 %v3256, %v3255
    %v3258 = vmul.f32 0.5, %v3257
    %v3259 = vsub.f32 1.5, %v3258
    %v3260 = vmul.f32 %v3255, %v3259
    %vm3261 = vweird.f32 %v3229
    %vm3262 = vweird.f32 %v3255
    %vm3263 = vmor %vm3261, %vm3262
    %v3264 = vsel %vm3263, %v3255, %v3260
    %v3265 = vrsqrt.pop %v3230
    %v3266 = vmul.f32 %v3265, %v3230
    %v3267 = vmul.f32 %v3266, %v3265
    %v3268 = vmul.f32 0.5, %v3267
    %v3269 = vsub.f32 1.5, %v3268
    %v3270 = vmul.f32 %v3265, %v3269
    %vm3271 = vweird.f32 %v3230
    %vm3272 = vweird.f32 %v3265
    %vm3273 = vmor %vm3271, %vm3272
    %v3274 = vsel %vm3273, %v3265, %v3270
    %v3275 = vrsqrt.pop %v3231
    %v3276 = vmul.f32 %v3275, %v3231
    %v3277 = vmul.f32 %v3276, %v3275
    %v3278 = vmul.f32 0.5, %v3277
    %v3279 = vsub.f32 1.5, %v3278
    %v3280 = vmul.f32 %v3275, %v3279
    %vm3281 = vweird.f32 %v3231
    %vm3282 = vweird.f32 %v3275
    %vm3283 = vmor %vm3281, %vm3282
    %v3284 = vsel %vm3283, %v3275, %v3280
    %v3285 = vrsqrt.pop %v3232
    %v3286 = vmul.f32 %v3285, %v3232
    %v3287 = vmul.f32 %v3286, %v3285
    %v3288 = vmul.f32 0.5, %v3287
    %v3289 = vsub.f32 1.5, %v3288
    %v3290 = vmul.f32 %v3285, %v3289
    %vm3291 = vweird.f32 %v3232
    %vm3292 = vweird.f32 %v3285
    %vm3293 = vmor %vm3291, %vm3292
    %v3294 = vsel %vm3293, %v3285, %v3290
    %v3295 = vrsqrt.pop %v3233
    %v3296 = vmul.f32 %v3295, %v3233
    %v3297 = vmul.f32 %v3296, %v3295
    %v3298 = vmul.f32 0.5, %v3297
    %v3299 = vsub.f32 1.5, %v3298
    %v3300 = vmul.f32 %v3295, %v3299
    %vm3301 = vweird.f32 %v3233
    %vm3302 = vweird.f32 %v3295
    %vm3303 = vmor %vm3301, %vm3302
    %v3304 = vsel %vm3303, %v3295, %v3300
    %v3305 = vrsqrt.pop %v3234
    %v3306 = vmul.f32 %v3305, %v3234
    %v3307 = vmul.f32 %v3306, %v3305
    %v3308 = vmul.f32 0.5, %v3307
    %v3309 = vsub.f32 1.5, %v3308
    %v3310 = vmul.f32 %v3305, %v3309
    %vm3311 = vweird.f32 %v3234
    %vm3312 = vweird.f32 %v3305
    %vm3313 = vmor %vm3311, %vm3312
    %v3314 = vsel %vm3313, %v3305, %v3310
    %v3315 = vmul.f32 %v3179, %v3244
    %v3316 = vmul.f32 %v3180, %v3254
    %v3317 = vmul.f32 %v3181, %v3264
    %v3318 = vmul.f32 %v3182, %v3274
    %v3319 = vmul.f32 %v3183, %v3284
    %v3320 = vmul.f32 %v3184, %v3294
    %v3321 = vmul.f32 %v3185, %v3304
    %v3322 = vmul.f32 %v3186, %v3314
    %v3324 = vperm.slane %v3145, 0
    %v3326 = vmul.f32 %v3315, %v3324
    %v3327 = vmul.f32 %v3316, %v3324
    %v3328 = vmul.f32 %v3317, %v3324
    %v3329 = vmul.f32 %v3318, %v3324
    %v3330 = vmul.f32 %v3319, %v3324
    %v3331 = vmul.f32 %v3320, %v3324
    %v3332 = vmul.f32 %v3321, %v3324
    %v3333 = vmul.f32 %v3322, %v3324
    %v3335 = vperm.slane %v3146, 0
    %v3337 = vadd.f32 %v3326, %v3335
    %v3338 = vadd.f32 %v3327, %v3335
    %v3339 = vadd.f32 %v3328, %v3335
    %v3340 = vadd.f32 %v3329, %v3335
    %v3341 = vadd.f32 %v3330, %v3335
    %v3342 = vadd.f32 %v3331, %v3335
    %v3343 = vadd.f32 %v3332, %v3335
    %v3344 = vadd.f32 %v3333, %v3335
    %3345 = vst.msk [vmem:[#allocation10] sm:$0xff] %vm156, %v3337
    %3346 = vst.msk [vmem:[#allocation10 + $0x8] sm:$0xff] %vm156, %v3338
    %3347 = vst.msk [vmem:[#allocation10 + $0x10] sm:$0xff] %vm156, %v3339
    %3348 = vst.msk [vmem:[#allocation10 + $0x18] sm:$0xff] %vm156, %v3340
    %3349 = vst.msk [vmem:[#allocation10 + $0x20] sm:$0xff] %vm156, %v3341
    %3350 = vst.msk [vmem:[#allocation10 + $0x28] sm:$0xff] %vm156, %v3342
    %3351 = vst.msk [vmem:[#allocation10 + $0x30] sm:$0xff] %vm156, %v3343
    %3352 = vst.msk [vmem:[#allocation10 + $0x38] sm:$0xff] %vm156, %v3344
    // Predicated region
    $region90: #{tpu_custom_call.1} parent=1 // pred_check
      _
    $region91: #{tpu_custom_call.1} parent=1 // pred_check_branch
      %3354 = sbr.rel (0) target = $region93
    $region92: #{tpu_custom_call.1} parent=1 // pred_region
      %3356 = vsyncadd [#allocation4], 0
      %s3357 = sshll.u32 [#allocation10], 4
      %s3358 = int_to_ptr.vmem [resolvable:$true] %s3357
      %s3359 = sshll.u32 %s18, 4
      %s3360 = int_to_ptr.hbm [resolvable:$true] %s3359
      %3365 = dma.vmem_to_hbm [thread:$0]  %s3358, 1024, %s3360, [#allocation4], 128, 128, 8
    $region93: #{tpu_custom_call.1} parent=1 // pred_fallthru
      _
    // Predicated region
    $region94: #{tpu_custom_call.1} parent=1 // pred_check
      _
    $region95: #{tpu_custom_call.1} parent=1 // pred_check_branch
      %3367 = sbr.rel (0) target = $region97
    $region96: #{tpu_custom_call.1} parent=1 // pred_region
      %3369 = dma.done [#allocation4], 1024
    $region97: #{tpu_custom_call.1} parent=1 // pred_fallthru
      _
    %3370 = vsyncpa [#allocation3], 1
    %3371 = vsyncpa [#allocation6], 1
    %3372 = vsyncpa [#allocation9], 1
    %3373 = vsyncpa [#allocation4], 1

</llo_original>
